<compile_context>
chip_gen: v5e
topology: v5e:2x2
jax: 0.10.0
libtpu: 0.0.40
codegen_flags: <defaults>
</compile_context>

<pallas_src>
import jax
import jax.numpy as jnp
import numpy as np
from jax.experimental import pallas as pl
from jax.experimental.pallas import tpu as pltpu

EPS = 1e-5  # PyTorch BatchNorm default eps


# ======================================================================================
# The single fused kernel
# ======================================================================================
def _three_deep_net_kernel(gx_ref, attw_ref, attb_ref, wpsi_ref, w14_ref, b14_ref,
                           wsl_ref, bs_ref, w1h_ref, w1s_ref, b1_ref, w2_ref,
                           misc_ref, out_ref):
    f32 = jnp.float32
    oc = w1s_ref.shape[0]            # out_chanel
    npix = gx_ref.shape[2]           # B*15 pixels on the lane axis (lane index b*15+h)
    nb = out_ref.shape[1]            # B (number of candidate actions)
    nh = w1h_ref.shape[0]            # 15
    nw = gx_ref.shape[0]             # 4
    nc = gx_ref.shape[1]             # 7 (6 state channels + 1 action channel)

    misc = misc_ref[...]
    tpsi1 = misc[0:1, 0:1]           # folded psi bias of Att1
    tpsi2 = misc[0:1, 1:2]           # folded psi bias of Att
    fc2_b = misc[0:1, 2:3]           # fc2 bias

    # Lane-index helper matrices (mul/add/compare only; no vector div/mod).
    p_row = jax.lax.broadcasted_iota(jnp.int32, (npix, nb), 0)     # pixel id  b*15+h
    b_col = jax.lax.broadcasted_iota(jnp.int32, (npix, nb), 1)     # action id b
    lo = b_col * nh
    cb = jnp.logical_and(p_row >= lo, p_row < lo + nh).astype(f32)  # [NP,B] 1 if pixel in action b

    chan = jax.lax.broadcasted_iota(jnp.int32, (nc, npix), 0)       # channel row index

    y1 = None                        # conv1..4 accumulator            [4*OC, NP]
    z2 = None                        # conv_s running max over w        [OC, B]
    for w in range(nw):
        gxw = gx_ref[w]              # [7, NP]: rows 0..5 = state, row 6 = actions

        # --- both Attention_blocks (Conv2d 1x1 + BN folded -> ReLU -> Conv->1 + BN ->
        #     sigmoid -> gate).  Att1 has a zero column for the action channel so both
        #     share the same [OC,7]@[7,NP] MXU contraction.
        a1 = jnp.maximum(jnp.dot(attw_ref[0], gxw, preferred_element_type=f32)
                         + attb_ref[0], 0.0)                               # [OC, NP]
        a2 = jnp.maximum(jnp.dot(attw_ref[1], gxw, preferred_element_type=f32)
                         + attb_ref[1], 0.0)
        p1 = jnp.dot(wpsi_ref[0], a1, preferred_element_type=f32) + tpsi1  # [1, NP]
        p2 = jnp.dot(wpsi_ref[1], a2, preferred_element_type=f32) + tpsi2
        psi1 = 0.5 * (jnp.tanh(0.5 * p1) + 1.0)   # sigmoid as a single EUP tanh
        psi2 = 0.5 * (jnp.tanh(0.5 * p2) + 1.0)
        psi = jnp.where(chan < nc - 1, psi1, psi2)  # state rows gated by Att1, action row by Att
        sa_w = gxw * psi                            # gated state_action slab [7, NP]

        # --- head branch 1: conv1..conv4 ((1,1,k), stride (1,1,4)) with BN folded and
        #     the four weights stacked along M -> one [4*OC,7]@[7,NP] push per width tap.
        c1 = jnp.dot(w14_ref[w], sa_w, preferred_element_type=f32)          # [4*OC, NP]
        y1 = c1 if y1 is None else y1 + c1

        # --- head branch 2: conv_s ((1,15,1)) with BN folded.  Per-lane channel
        #     contraction (VPU, 7 sublane-broadcast FMAs), then the "sum over h within
        #     each action" reduction as one [OC,NP]@[NP,B] MXU dot.
        u = wsl_ref[0] * sa_w[0:1, :]
        for ci in range(1, nc):
            u = u + wsl_ref[ci] * sa_w[ci:ci + 1, :]                        # [OC, NP]
        zw = jnp.dot(u, cb, preferred_element_type=f32)                     # [OC, B]
        z2 = zw if z2 is None else jnp.maximum(z2, zw)                      # MaxPool3d((1,1,4))

    # branch 1 epilogue: bias, MaxPool over the 4 conv variants (row groups), ReLU.
    # (Folding BN per branch before the max is valid: eval-mode BN is an elementwise
    #  per-channel affine applied identically to every pooled element.)
    y1 = y1 + b14_ref[...]
    x1 = jnp.maximum(jnp.maximum(y1[0:oc], y1[oc:2 * oc]),
                     jnp.maximum(y1[2 * oc:3 * oc], y1[3 * oc:4 * oc]))
    x1 = jnp.maximum(x1, 0.0)                                               # [OC, NP]
    # branch 2 epilogue: bias, ReLU
    x2 = jnp.maximum(z2 + bs_ref[...], 0.0)                                 # [OC, B]

    # fc1 + ReLU + fc2.  Dropout(0.5) is eval-mode identity here.
    # TODO(synk): training-mode dropout would use pltpu.prng_seed / prng_random_bits.
    # The x1 (pixels-on-lanes) -> per-action relayout is done with 15 one-hot gather
    # matmuls, each accumulated straight into the fc1 result (no transposes, no HBM).
    acc = jnp.dot(w1s_ref[...], x2, preferred_element_type=f32)             # [OC, B]
    for hh in range(nh):
        sel_h = (p_row == b_col * nh + hh).astype(f32)                      # [NP, B] one-hot
        x1h = jnp.dot(x1, sel_h, preferred_element_type=f32)                # x1[:, b*15+hh] -> [OC, B]
        acc = acc + jnp.dot(w1h_ref[hh], x1h, preferred_element_type=f32)
    hid = jnp.maximum(acc + b1_ref[...], 0.0)                               # [OC, B]
    out = jnp.dot(w2_ref[...], hid, preferred_element_type=f32) + fc2_b     # [1, B]
    out_ref[...] = out.astype(out_ref.dtype)


def _full_block(shape):
    n = len(shape)

    def idx(i):
        return (0,) * n

    return pl.BlockSpec(shape, idx)


# ======================================================================================
# Forward wrapper (input layout prep + the single pallas_call)
# ======================================================================================
def three_deep_net_forward(folded, state, actions):
    b = actions.shape[0]
    if state.ndim == 3:                                   # state.unsqueeze(0).repeat(...)
        state = jnp.broadcast_to(state[None], (b,) + state.shape)
    _, c, h, w = state.shape                              # [B, 6, 15, 4]
    npix = b * h

    # single input slab in (width, channel, b*15+h) layout:
    # channels 0..5 = state, channel 6 = actions (torch's actions.unsqueeze(1)).
    sa_in = jnp.concatenate([state, actions[:, None]], axis=1)        # [B, 7, 15, 4]
    gx = jnp.transpose(sa_in, (3, 1, 0, 2)).reshape(w, c + 1, npix)   # [4, 7, B*15]

    # conv_s weight replicated along the pixel/lane axis (lane p=b*15+h uses ws[..., h])
    wsl = jnp.tile(folded["ws3"], (1, 1, b))                          # [7, OC, B*15]

    in_arrays = (gx, folded["attw"], folded["attb"], folded["wpsi"], folded["w14"],
                 folded["b14"], wsl, folded["bs"], folded["w1h"], folded["w1s"],
                 folded["b1"], folded["w2"], folded["misc"])

    out = pl.pallas_call(
        _three_deep_net_kernel,
        out_shape=jax.ShapeDtypeStruct((1, b), jnp.float32),
        grid_spec=pltpu.PrefetchScalarGridSpec(
            num_scalar_prefetch=0,
            grid=(1,),
            in_specs=[_full_block(a.shape) for a in in_arrays],
            out_specs=_full_block((1, b)),
        ),
        compiler_params=pltpu.CompilerParams(dimension_semantics=("arbitrary",)),
    )(*in_arrays)
    return out.reshape(b, 1)


# ======================================================================================
# Parameter construction + eval-mode BatchNorm folding (pure JAX parameter algebra)
# ======================================================================================
def make_params(key, oc):
    keys = iter(jax.random.split(key, 64))

    def rnd(shape, scale=1.0):
        return scale * jax.random.normal(next(keys), shape, dtype=jnp.float32)

    def bn_p(c):
        gamma = 1.0 + rnd((c,), 0.1)
        beta = rnd((c,), 0.1)
        mean = rnd((c,), 0.1)
        var = 1.0 + 0.1 * jax.random.uniform(next(keys), (c,), jnp.float32)
        return (gamma, beta, mean, var)

    # Attention_block(F_g, F_l, F_int) builds W_g = Conv2d(F_l, F_int) (applied to g)
    # and W_x = Conv2d(F_g, F_int) (applied to x); cg/cx below are channels of g/x.
    def att_p(cg, cx, f_int):
        return dict(
            wg=rnd((f_int, cg), 0.3), bg=rnd((f_int,), 0.1), bn_g=bn_p(f_int),
            wx=rnd((f_int, cx), 0.3), bx=rnd((f_int,), 0.1), bn_x=bn_p(f_int),
            wpsi=rnd((1, f_int), 0.3), bpsi=rnd((1,), 0.1), bn_psi=bn_p(1),
        )

    return dict(
        att1=att_p(6, 6, oc),                 # Att1(F_g=6, F_l=6, F_int=oc)
        att=att_p(6, 1, oc),                  # Att (F_g=1, F_l=6, F_int=oc)
        head=dict(
            w1=rnd((oc, 7, 1), 0.2), b1=rnd((oc,), 0.1),
            w2=rnd((oc, 7, 2), 0.2), b2=rnd((oc,), 0.1),
            w3=rnd((oc, 7, 3), 0.2), b3=rnd((oc,), 0.1),
            w4=rnd((oc, 7, 4), 0.2), b4=rnd((oc,), 0.1),
            ws=rnd((oc, 7, 15), 0.1), bs=rnd((oc,), 0.1),
            bn=bn_p(oc),
        ),
        fc=dict(w1=rnd((oc, oc * 16), 0.05), b1=rnd((oc,), 0.05),
                w2=rnd((1, oc), 0.1), b2=rnd((1,), 0.1)),
    )


def _fold_bn(w, b, bn):
    gamma, beta, mean, var = bn
    s = gamma / jnp.sqrt(var + EPS)
    w_eff = w * s.reshape((-1,) + (1,) * (w.ndim - 1))
    b_eff = (b - mean) * s + beta
    return w_eff, b_eff


def fold_params(raw):
    oc = raw["fc"]["w1"].shape[0]

    def fold_att(p):
        wg, tg = _fold_bn(p["wg"], p["bg"], p["bn_g"])
        wx, tx = _fold_bn(p["wx"], p["bx"], p["bn_x"])
        wpsi, tpsi = _fold_bn(p["wpsi"], p["bpsi"], p["bn_psi"])
        return wg, wx, tg + tx, wpsi, tpsi

    # Att1: g = x = state -> the two folded 1x1 convs collapse into one 6-channel
    # weight; channel 6 (actions) gets a zero column so both attention blocks share
    # the same [OC,7]@[7,NP] contraction in the kernel.
    wg1, wx1, t1, wpsi1, tpsi1 = fold_att(raw["att1"])
    w_att1 = jnp.pad(wg1 + wx1, ((0, 0), (0, 1)))                  # [OC, 7]
    # Att: W_g acts on the 6 state channels, W_x on the single action channel.
    wg2, wx2, t2, wpsi2, tpsi2 = fold_att(raw["att"])
    w_att2 = jnp.concatenate([wg2, wx2], axis=1)                   # [OC, 7]

    attw = jnp.stack([w_att1, w_att2])                             # [2, OC, 7]
    attb = jnp.stack([t1[:, None], t2[:, None]])                   # [2, OC, 1]
    wpsi = jnp.stack([wpsi1, wpsi2])                               # [2, 1, OC]

    # conv1..4 + shared BatchNorm3d folded, stacked along M (rows (k-1)*OC+oc), split
    # per width tap and zero-padded where the conv kernel has no tap.
    hp = raw["head"]
    w14 = jnp.zeros((4, 4 * oc, 7), jnp.float32)
    b14 = jnp.zeros((4 * oc, 1), jnp.float32)
    for k in range(1, 5):
        wk, bk = _fold_bn(hp[f"w{k}"], hp[f"b{k}"], hp["bn"])      # [OC, 7, k], [OC]
        for w in range(k):
            w14 = w14.at[w, (k - 1) * oc:k * oc, :].set(wk[:, :, w])
        b14 = b14.at[(k - 1) * oc:k * oc, 0].set(bk)
    ws_f, bs_f = _fold_bn(hp["ws"], hp["bs"], hp["bn"])            # [OC, 7, 15], [OC]
    ws3 = jnp.transpose(ws_f, (1, 0, 2))                           # [7, OC, 15]
    bs = bs_f[:, None]                                             # [OC, 1]

    # fc1 split: columns for the conv1..4 features rearranged h-major ([15, OC, OC])
    # so the kernel accumulates per h, plus the conv_s feature columns ([OC, OC]).
    fc = raw["fc"]
    nh = hp["ws"].shape[2]
    w1a = fc["w1"][:, :oc * nh].reshape(oc, oc, nh)                # [j, oc_in, h]
    w1h = jnp.transpose(w1a, (2, 0, 1))                            # [15, OC, OC]
    w1s = fc["w1"][:, oc * nh:]                                    # [OC, OC]
    b1 = fc["b1"][:, None]                                         # [OC, 1]
    w2 = fc["w2"]                                                  # [1, OC]
    misc = jnp.zeros((1, 8), jnp.float32)
    misc = misc.at[0, 0].set(tpsi1[0]).at[0, 1].set(tpsi2[0]).at[0, 2].set(fc["b2"][0])

    return dict(attw=attw, attb=attb, wpsi=wpsi, w14=w14, b14=b14, ws3=ws3, bs=bs,
                w1h=w1h, w1s=w1s, b1=b1, w2=w2, misc=misc)


# ======================================================================================
# Plain-JAX reference (faithful to the PyTorch forward, un-folded BN, eval mode)
# ======================================================================================
_HI = jax.lax.Precision.HIGHEST


def _attention_reference(p, g, x):
    def bn2d(bn, y):
        gamma, beta, mean, var = bn
        inv = gamma / jnp.sqrt(var + EPS)
        return (y - mean[None, :, None, None]) * inv[None, :, None, None] + beta[None, :, None, None]

    def conv1x1(wt, bias, inp):
        return jnp.einsum("oc,bchw->bohw", wt, inp, precision=_HI) + bias[None, :, None, None]

    g1 = bn2d(p["bn_g"], conv1x1(p["wg"], p["bg"], g))
    x1 = bn2d(p["bn_x"], conv1x1(p["wx"], p["bx"], x))
    a = jnp.maximum(g1 + x1, 0.0)
    pp = bn2d(p["bn_psi"], conv1x1(p["wpsi"], p["bpsi"], a))
    return x * jax.nn.sigmoid(pp)


def reference_forward(raw, state, actions):
    b = actions.shape[0]
    if state.ndim == 3:
        state = jnp.broadcast_to(state[None], (b,) + state.shape)
    acts = actions[:, None, :, :]                                   # [B,1,15,4]

    state1 = _attention_reference(raw["att1"], state, state)
    act1 = _attention_reference(raw["att"], state, acts)
    sa = jnp.transpose(jnp.concatenate([state1, act1], axis=1), (1, 0, 2, 3))  # [7,B,15,4]

    hp = raw["head"]
    oc = hp["w1"].shape[0]
    gamma, beta, mean, var = hp["bn"]
    inv = gamma / jnp.sqrt(var + EPS)

    def bn3d(y):  # channel on axis 0
        shp = (oc,) + (1,) * (y.ndim - 1)
        return (y - mean.reshape(shp)) * inv.reshape(shp) + beta.reshape(shp)

    res = []
    for k in range(1, 5):
        yk = jnp.einsum("ocw,cbhw->obh", hp[f"w{k}"], sa[:, :, :, :k],
                        precision=_HI) + hp[f"b{k}"][:, None, None]
        res.append(yk)
    xcat = bn3d(jnp.stack(res, axis=-1))                            # [OC,B,15,4]
    x1 = jnp.maximum(jnp.max(xcat, axis=-1), 0.0)                   # pool + relu
    x1 = jnp.transpose(x1, (1, 0, 2)).reshape(b, oc * 15)

    ys = jnp.einsum("och,cbhw->obw", hp["ws"], sa, precision=_HI) + hp["bs"][:, None, None]
    x2 = jnp.maximum(jnp.max(bn3d(ys), axis=-1), 0.0).T             # [B, OC]

    xf = jnp.concatenate([x1, x2], axis=-1)                         # [B, OC*16]
    fc = raw["fc"]
    hh = jnp.maximum(jnp.dot(xf, fc["w1"].T, precision=_HI) + fc["b1"][None, :], 0.0)
    return jnp.dot(hh, fc["w2"].T, precision=_HI) + fc["b2"][None, :]


# ======================================================================================
if __name__ == "__main__":
    key = jax.random.PRNGKey(0)
    k_state, k_act, k_par = jax.random.split(key, 3)

    OC = 32          # out_chanel (PyTorch default 256; small for the demo)
    B = 8            # number of candidate actions

    # Single 3-D state + B actions (the state.dim()==3 branch of the torch forward).
    state = jax.random.normal(k_state, (6, 15, 4), jnp.float32)
    actions = jax.random.normal(k_act, (B, 15, 4), jnp.float32)

    raw = make_params(k_par, OC)
    folded = fold_params(raw)

    fwd = jax.jit(three_deep_net_forward)
    out = jax.block_until_ready(fwd(folded, state, actions))        # [B, 1]

    ref = jax.block_until_ready(reference_forward(raw, state, actions))
    np.testing.assert_allclose(np.asarray(out), np.asarray(ref), rtol=5e-3, atol=5e-3)

    print("KERNEL_OK")
</pallas_src>

<mosaic_0001>
module attributes {stable_mosaic.version = 11 : i64} {
  func.func @_three_deep_net_kernel(%arg0: i32, %arg1: memref<4x7x120xf32, #tpu.memory_space<vmem>>, %arg2: memref<2x32x7xf32, #tpu.memory_space<vmem>>, %arg3: memref<2x32x1xf32, #tpu.memory_space<vmem>>, %arg4: memref<2x1x32xf32, #tpu.memory_space<vmem>>, %arg5: memref<4x128x7xf32, #tpu.memory_space<vmem>>, %arg6: memref<128x1xf32, #tpu.memory_space<vmem>>, %arg7: memref<7x32x120xf32, #tpu.memory_space<vmem>>, %arg8: memref<32x1xf32, #tpu.memory_space<vmem>>, %arg9: memref<15x32x32xf32, #tpu.memory_space<vmem>>, %arg10: memref<32x32xf32, #tpu.memory_space<vmem>>, %arg11: memref<32x1xf32, #tpu.memory_space<vmem>>, %arg12: memref<1x32xf32, #tpu.memory_space<vmem>>, %arg13: memref<1x8xf32, #tpu.memory_space<vmem>>, %arg14: memref<1x8xf32, #tpu.memory_space<vmem>>) attributes {dimension_semantics = [#tpu.dimension_semantics<arbitrary>], iteration_bounds = array<i64: 1>, scalar_prefetch = 0 : i64, scratch_operands = 0 : i64, tpu.core_type = #tpu.core_type<tc>, window_params = [{pipeline_mode = #tpu.pipeline_mode<synchronous>, transform_indices = @transform_0, window_bounds = array<i64: 4, 7, 120>}, {pipeline_mode = #tpu.pipeline_mode<synchronous>, transform_indices = @transform_1, window_bounds = array<i64: 2, 32, 7>}, {pipeline_mode = #tpu.pipeline_mode<synchronous>, transform_indices = @transform_2, window_bounds = array<i64: 2, 32, 1>}, {pipeline_mode = #tpu.pipeline_mode<synchronous>, transform_indices = @transform_3, window_bounds = array<i64: 2, 1, 32>}, {pipeline_mode = #tpu.pipeline_mode<synchronous>, transform_indices = @transform_4, window_bounds = array<i64: 4, 128, 7>}, {pipeline_mode = #tpu.pipeline_mode<synchronous>, transform_indices = @transform_5, window_bounds = array<i64: 128, 1>}, {pipeline_mode = #tpu.pipeline_mode<synchronous>, transform_indices = @transform_6, window_bounds = array<i64: 7, 32, 120>}, {pipeline_mode = #tpu.pipeline_mode<synchronous>, transform_indices = @transform_7, window_bounds = array<i64: 32, 1>}, {pipeline_mode = #tpu.pipeline_mode<synchronous>, transform_indices = @transform_8, window_bounds = array<i64: 15, 32, 32>}, {pipeline_mode = #tpu.pipeline_mode<synchronous>, transform_indices = @transform_9, window_bounds = array<i64: 32, 32>}, {pipeline_mode = #tpu.pipeline_mode<synchronous>, transform_indices = @transform_10, window_bounds = array<i64: 32, 1>}, {pipeline_mode = #tpu.pipeline_mode<synchronous>, transform_indices = @transform_11, window_bounds = array<i64: 1, 32>}, {pipeline_mode = #tpu.pipeline_mode<synchronous>, transform_indices = @transform_12, window_bounds = array<i64: 1, 8>}, {pipeline_mode = #tpu.pipeline_mode<synchronous>, transform_indices = @transform_13, window_bounds = array<i64: 1, 8>}]} {
    %c0 = arith.constant 0 : index
    %c0_0 = arith.constant 0 : index
    %0 = vector.load %arg13[%c0, %c0_0] : memref<1x8xf32, #tpu.memory_space<vmem>>, vector<1x8xf32>
    %1 = vector.extract_strided_slice %0 {offsets = [0, 0], sizes = [1, 1], strides = [1, 1]} : vector<1x8xf32> to vector<1x1xf32>
    %2 = vector.extract_strided_slice %0 {offsets = [0, 1], sizes = [1, 1], strides = [1, 1]} : vector<1x8xf32> to vector<1x1xf32>
    %3 = vector.extract_strided_slice %0 {offsets = [0, 2], sizes = [1, 1], strides = [1, 1]} : vector<1x8xf32> to vector<1x1xf32>
    %4 = tpu.iota {dimensions = array<i32: 0>} : vector<120x8xi32>
    %5 = tpu.iota {dimensions = array<i32: 1>} : vector<120x8xi32>
    %c15_i32 = arith.constant 15 : i32
    %6 = vector.broadcast %c15_i32 : i32 to vector<120x8xi32>
    %7 = arith.muli %5, %6 : vector<120x8xi32>
    %8 = arith.cmpi sge, %4, %7 : vector<120x8xi32>
    %c15_i32_1 = arith.constant 15 : i32
    %9 = vector.broadcast %c15_i32_1 : i32 to vector<120x8xi32>
    %10 = arith.addi %7, %9 : vector<120x8xi32>
    %11 = arith.cmpi slt, %4, %10 : vector<120x8xi32>
    %12 = arith.andi %8, %11 : vector<120x8xi1>
    %13 = arith.extui %12 : vector<120x8xi1> to vector<120x8xi32>
    %14 = arith.sitofp %13 : vector<120x8xi32> to vector<120x8xf32>
    %15 = tpu.iota {dimensions = array<i32: 0>} : vector<7x120xi32>
    %c0_2 = arith.constant 0 : index
    %c0_3 = arith.constant 0 : index
    %c0_4 = arith.constant 0 : index
    %16 = vector.load %arg1[%c0_2, %c0_3, %c0_4] : memref<4x7x120xf32, #tpu.memory_space<vmem>>, vector<1x7x120xf32>
    %17 = vector.shape_cast %16 : vector<1x7x120xf32> to vector<7x120xf32>
    %c0_5 = arith.constant 0 : index
    %c0_6 = arith.constant 0 : index
    %c0_7 = arith.constant 0 : index
    %18 = vector.load %arg2[%c0_5, %c0_6, %c0_7] : memref<2x32x7xf32, #tpu.memory_space<vmem>>, vector<1x32x7xf32>
    %19 = vector.shape_cast %18 : vector<1x32x7xf32> to vector<32x7xf32>
    %cst = arith.constant dense<0.000000e+00> : vector<32x120xf32>
    %20 = tpu.matmul %19, %17, %cst {dimension_numbers = #tpu.dot_dimension_numbers<[1], [0], [0], [1], [0, 0, 1, 1], [], []>} : vector<32x7xf32>, vector<7x120xf32>, vector<32x120xf32> -> vector<32x120xf32>
    %c0_8 = arith.constant 0 : index
    %c0_9 = arith.constant 0 : index
    %c0_10 = arith.constant 0 : index
    %21 = vector.load %arg3[%c0_8, %c0_9, %c0_10] : memref<2x32x1xf32, #tpu.memory_space<vmem>>, vector<1x32x1xf32>
    %22 = vector.shape_cast %21 : vector<1x32x1xf32> to vector<32x1xf32>
    %23 = vector.broadcast %22 : vector<32x1xf32> to vector<32x120xf32>
    %24 = arith.addf %20, %23 : vector<32x120xf32>
    %cst_11 = arith.constant 0.000000e+00 : f32
    %25 = vector.broadcast %cst_11 : f32 to vector<32x120xf32>
    %26 = arith.maximumf %24, %25 : vector<32x120xf32>
    %c1 = arith.constant 1 : index
    %c0_12 = arith.constant 0 : index
    %c0_13 = arith.constant 0 : index
    %27 = vector.load %arg2[%c1, %c0_12, %c0_13] : memref<2x32x7xf32, #tpu.memory_space<vmem>>, vector<1x32x7xf32>
    %28 = vector.shape_cast %27 : vector<1x32x7xf32> to vector<32x7xf32>
    %cst_14 = arith.constant dense<0.000000e+00> : vector<32x120xf32>
    %29 = tpu.matmul %28, %17, %cst_14 {dimension_numbers = #tpu.dot_dimension_numbers<[1], [0], [0], [1], [0, 0, 1, 1], [], []>} : vector<32x7xf32>, vector<7x120xf32>, vector<32x120xf32> -> vector<32x120xf32>
    %c1_15 = arith.constant 1 : index
    %c0_16 = arith.constant 0 : index
    %c0_17 = arith.constant 0 : index
    %30 = vector.load %arg3[%c1_15, %c0_16, %c0_17] : memref<2x32x1xf32, #tpu.memory_space<vmem>>, vector<1x32x1xf32>
    %31 = vector.shape_cast %30 : vector<1x32x1xf32> to vector<32x1xf32>
    %32 = vector.broadcast %31 : vector<32x1xf32> to vector<32x120xf32>
    %33 = arith.addf %29, %32 : vector<32x120xf32>
    %cst_18 = arith.constant 0.000000e+00 : f32
    %34 = vector.broadcast %cst_18 : f32 to vector<32x120xf32>
    %35 = arith.maximumf %33, %34 : vector<32x120xf32>
    %c0_19 = arith.constant 0 : index
    %c0_20 = arith.constant 0 : index
    %c0_21 = arith.constant 0 : index
    %36 = vector.load %arg4[%c0_19, %c0_20, %c0_21] : memref<2x1x32xf32, #tpu.memory_space<vmem>>, vector<1x1x32xf32>
    %37 = vector.shape_cast %36 : vector<1x1x32xf32> to vector<1x32xf32>
    %cst_22 = arith.constant dense<0.000000e+00> : vector<1x120xf32>
    %38 = tpu.matmul %37, %26, %cst_22 {dimension_numbers = #tpu.dot_dimension_numbers<[1], [0], [0], [1], [0, 0, 1, 1], [], []>} : vector<1x32xf32>, vector<32x120xf32>, vector<1x120xf32> -> vector<1x120xf32>
    %39 = vector.broadcast %1 : vector<1x1xf32> to vector<1x120xf32>
    %40 = arith.addf %38, %39 : vector<1x120xf32>
    %c1_23 = arith.constant 1 : index
    %c0_24 = arith.constant 0 : index
    %c0_25 = arith.constant 0 : index
    %41 = vector.load %arg4[%c1_23, %c0_24, %c0_25] : memref<2x1x32xf32, #tpu.memory_space<vmem>>, vector<1x1x32xf32>
    %42 = vector.shape_cast %41 : vector<1x1x32xf32> to vector<1x32xf32>
    %cst_26 = arith.constant dense<0.000000e+00> : vector<1x120xf32>
    %43 = tpu.matmul %42, %35, %cst_26 {dimension_numbers = #tpu.dot_dimension_numbers<[1], [0], [0], [1], [0, 0, 1, 1], [], []>} : vector<1x32xf32>, vector<32x120xf32>, vector<1x120xf32> -> vector<1x120xf32>
    %44 = vector.broadcast %2 : vector<1x1xf32> to vector<1x120xf32>
    %45 = arith.addf %43, %44 : vector<1x120xf32>
    %cst_27 = arith.constant 5.000000e-01 : f32
    %46 = vector.broadcast %cst_27 : f32 to vector<1x120xf32>
    %47 = arith.mulf %46, %40 : vector<1x120xf32>
    %48 = math.tanh %47 : vector<1x120xf32>
    %cst_28 = arith.constant 1.000000e+00 : f32
    %49 = vector.broadcast %cst_28 : f32 to vector<1x120xf32>
    %50 = arith.addf %48, %49 : vector<1x120xf32>
    %cst_29 = arith.constant 5.000000e-01 : f32
    %51 = vector.broadcast %cst_29 : f32 to vector<1x120xf32>
    %52 = arith.mulf %51, %50 : vector<1x120xf32>
    %cst_30 = arith.constant 5.000000e-01 : f32
    %53 = vector.broadcast %cst_30 : f32 to vector<1x120xf32>
    %54 = arith.mulf %53, %45 : vector<1x120xf32>
    %55 = math.tanh %54 : vector<1x120xf32>
    %cst_31 = arith.constant 1.000000e+00 : f32
    %56 = vector.broadcast %cst_31 : f32 to vector<1x120xf32>
    %57 = arith.addf %55, %56 : vector<1x120xf32>
    %cst_32 = arith.constant 5.000000e-01 : f32
    %58 = vector.broadcast %cst_32 : f32 to vector<1x120xf32>
    %59 = arith.mulf %58, %57 : vector<1x120xf32>
    %c6_i32 = arith.constant 6 : i32
    %60 = vector.broadcast %c6_i32 : i32 to vector<7x120xi32>
    %61 = arith.cmpi slt, %15, %60 : vector<7x120xi32>
    %62 = vector.shape_cast %52 : vector<1x120xf32> to vector<1x120xf32>
    %63 = vector.broadcast %62 : vector<1x120xf32> to vector<7x120xf32>
    %64 = vector.shape_cast %59 : vector<1x120xf32> to vector<1x120xf32>
    %65 = vector.broadcast %64 : vector<1x120xf32> to vector<7x120xf32>
    %66 = arith.select %61, %63, %65 : vector<7x120xi1>, vector<7x120xf32>
    %67 = arith.mulf %17, %66 : vector<7x120xf32>
    %c0_33 = arith.constant 0 : index
    %c0_34 = arith.constant 0 : index
    %c0_35 = arith.constant 0 : index
    %68 = vector.load %arg5[%c0_33, %c0_34, %c0_35] : memref<4x128x7xf32, #tpu.memory_space<vmem>>, vector<1x128x7xf32>
    %69 = vector.shape_cast %68 : vector<1x128x7xf32> to vector<128x7xf32>
    %cst_36 = arith.constant dense<0.000000e+00> : vector<128x120xf32>
    %70 = tpu.matmul %69, %67, %cst_36 {dimension_numbers = #tpu.dot_dimension_numbers<[1], [0], [0], [1], [0, 0, 1, 1], [], []>} : vector<128x7xf32>, vector<7x120xf32>, vector<128x120xf32> -> vector<128x120xf32>
    %c0_37 = arith.constant 0 : index
    %c0_38 = arith.constant 0 : index
    %c0_39 = arith.constant 0 : index
    %71 = vector.load %arg7[%c0_37, %c0_38, %c0_39] : memref<7x32x120xf32, #tpu.memory_space<vmem>>, vector<1x32x120xf32>
    %72 = vector.shape_cast %71 : vector<1x32x120xf32> to vector<32x120xf32>
    %73 = vector.extract_strided_slice %67 {offsets = [0, 0], sizes = [1, 120], strides = [1, 1]} : vector<7x120xf32> to vector<1x120xf32>
    %74 = vector.broadcast %73 : vector<1x120xf32> to vector<32x120xf32>
    %75 = arith.mulf %72, %74 : vector<32x120xf32>
    %c1_40 = arith.constant 1 : index
    %c0_41 = arith.constant 0 : index
    %c0_42 = arith.constant 0 : index
    %76 = vector.load %arg7[%c1_40, %c0_41, %c0_42] : memref<7x32x120xf32, #tpu.memory_space<vmem>>, vector<1x32x120xf32>
    %77 = vector.shape_cast %76 : vector<1x32x120xf32> to vector<32x120xf32>
    %78 = vector.extract_strided_slice %67 {offsets = [1, 0], sizes = [1, 120], strides = [1, 1]} : vector<7x120xf32> to vector<1x120xf32>
    %79 = vector.broadcast %78 : vector<1x120xf32> to vector<32x120xf32>
    %80 = arith.mulf %77, %79 : vector<32x120xf32>
    %81 = arith.addf %75, %80 : vector<32x120xf32>
    %c2 = arith.constant 2 : index
    %c0_43 = arith.constant 0 : index
    %c0_44 = arith.constant 0 : index
    %82 = vector.load %arg7[%c2, %c0_43, %c0_44] : memref<7x32x120xf32, #tpu.memory_space<vmem>>, vector<1x32x120xf32>
    %83 = vector.shape_cast %82 : vector<1x32x120xf32> to vector<32x120xf32>
    %84 = vector.extract_strided_slice %67 {offsets = [2, 0], sizes = [1, 120], strides = [1, 1]} : vector<7x120xf32> to vector<1x120xf32>
    %85 = vector.broadcast %84 : vector<1x120xf32> to vector<32x120xf32>
    %86 = arith.mulf %83, %85 : vector<32x120xf32>
    %87 = arith.addf %81, %86 : vector<32x120xf32>
    %c3 = arith.constant 3 : index
    %c0_45 = arith.constant 0 : index
    %c0_46 = arith.constant 0 : index
    %88 = vector.load %arg7[%c3, %c0_45, %c0_46] : memref<7x32x120xf32, #tpu.memory_space<vmem>>, vector<1x32x120xf32>
    %89 = vector.shape_cast %88 : vector<1x32x120xf32> to vector<32x120xf32>
    %90 = vector.extract_strided_slice %67 {offsets = [3, 0], sizes = [1, 120], strides = [1, 1]} : vector<7x120xf32> to vector<1x120xf32>
    %91 = vector.broadcast %90 : vector<1x120xf32> to vector<32x120xf32>
    %92 = arith.mulf %89, %91 : vector<32x120xf32>
    %93 = arith.addf %87, %92 : vector<32x120xf32>
    %c4 = arith.constant 4 : index
    %c0_47 = arith.constant 0 : index
    %c0_48 = arith.constant 0 : index
    %94 = vector.load %arg7[%c4, %c0_47, %c0_48] : memref<7x32x120xf32, #tpu.memory_space<vmem>>, vector<1x32x120xf32>
    %95 = vector.shape_cast %94 : vector<1x32x120xf32> to vector<32x120xf32>
    %96 = vector.extract_strided_slice %67 {offsets = [4, 0], sizes = [1, 120], strides = [1, 1]} : vector<7x120xf32> to vector<1x120xf32>
    %97 = vector.broadcast %96 : vector<1x120xf32> to vector<32x120xf32>
    %98 = arith.mulf %95, %97 : vector<32x120xf32>
    %99 = arith.addf %93, %98 : vector<32x120xf32>
    %c5 = arith.constant 5 : index
    %c0_49 = arith.constant 0 : index
    %c0_50 = arith.constant 0 : index
    %100 = vector.load %arg7[%c5, %c0_49, %c0_50] : memref<7x32x120xf32, #tpu.memory_space<vmem>>, vector<1x32x120xf32>
    %101 = vector.shape_cast %100 : vector<1x32x120xf32> to vector<32x120xf32>
    %102 = vector.extract_strided_slice %67 {offsets = [5, 0], sizes = [1, 120], strides = [1, 1]} : vector<7x120xf32> to vector<1x120xf32>
    %103 = vector.broadcast %102 : vector<1x120xf32> to vector<32x120xf32>
    %104 = arith.mulf %101, %103 : vector<32x120xf32>
    %105 = arith.addf %99, %104 : vector<32x120xf32>
    %c6 = arith.constant 6 : index
    %c0_51 = arith.constant 0 : index
    %c0_52 = arith.constant 0 : index
    %106 = vector.load %arg7[%c6, %c0_51, %c0_52] : memref<7x32x120xf32, #tpu.memory_space<vmem>>, vector<1x32x120xf32>
    %107 = vector.shape_cast %106 : vector<1x32x120xf32> to vector<32x120xf32>
    %108 = vector.extract_strided_slice %67 {offsets = [6, 0], sizes = [1, 120], strides = [1, 1]} : vector<7x120xf32> to vector<1x120xf32>
    %109 = vector.broadcast %108 : vector<1x120xf32> to vector<32x120xf32>
    %110 = arith.mulf %107, %109 : vector<32x120xf32>
    %111 = arith.addf %105, %110 : vector<32x120xf32>
    %cst_53 = arith.constant dense<0.000000e+00> : vector<32x8xf32>
    %112 = tpu.matmul %111, %14, %cst_53 {dimension_numbers = #tpu.dot_dimension_numbers<[1], [0], [0], [1], [0, 0, 1, 1], [], []>} : vector<32x120xf32>, vector<120x8xf32>, vector<32x8xf32> -> vector<32x8xf32>
    %c1_54 = arith.constant 1 : index
    %c0_55 = arith.constant 0 : index
    %c0_56 = arith.constant 0 : index
    %113 = vector.load %arg1[%c1_54, %c0_55, %c0_56] : memref<4x7x120xf32, #tpu.memory_space<vmem>>, vector<1x7x120xf32>
    %114 = vector.shape_cast %113 : vector<1x7x120xf32> to vector<7x120xf32>
    %c0_57 = arith.constant 0 : index
    %c0_58 = arith.constant 0 : index
    %c0_59 = arith.constant 0 : index
    %115 = vector.load %arg2[%c0_57, %c0_58, %c0_59] : memref<2x32x7xf32, #tpu.memory_space<vmem>>, vector<1x32x7xf32>
    %116 = vector.shape_cast %115 : vector<1x32x7xf32> to vector<32x7xf32>
    %cst_60 = arith.constant dense<0.000000e+00> : vector<32x120xf32>
    %117 = tpu.matmul %116, %114, %cst_60 {dimension_numbers = #tpu.dot_dimension_numbers<[1], [0], [0], [1], [0, 0, 1, 1], [], []>} : vector<32x7xf32>, vector<7x120xf32>, vector<32x120xf32> -> vector<32x120xf32>
    %c0_61 = arith.constant 0 : index
    %c0_62 = arith.constant 0 : index
    %c0_63 = arith.constant 0 : index
    %118 = vector.load %arg3[%c0_61, %c0_62, %c0_63] : memref<2x32x1xf32, #tpu.memory_space<vmem>>, vector<1x32x1xf32>
    %119 = vector.shape_cast %118 : vector<1x32x1xf32> to vector<32x1xf32>
    %120 = vector.broadcast %119 : vector<32x1xf32> to vector<32x120xf32>
    %121 = arith.addf %117, %120 : vector<32x120xf32>
    %cst_64 = arith.constant 0.000000e+00 : f32
    %122 = vector.broadcast %cst_64 : f32 to vector<32x120xf32>
    %123 = arith.maximumf %121, %122 : vector<32x120xf32>
    %c1_65 = arith.constant 1 : index
    %c0_66 = arith.constant 0 : index
    %c0_67 = arith.constant 0 : index
    %124 = vector.load %arg2[%c1_65, %c0_66, %c0_67] : memref<2x32x7xf32, #tpu.memory_space<vmem>>, vector<1x32x7xf32>
    %125 = vector.shape_cast %124 : vector<1x32x7xf32> to vector<32x7xf32>
    %cst_68 = arith.constant dense<0.000000e+00> : vector<32x120xf32>
    %126 = tpu.matmul %125, %114, %cst_68 {dimension_numbers = #tpu.dot_dimension_numbers<[1], [0], [0], [1], [0, 0, 1, 1], [], []>} : vector<32x7xf32>, vector<7x120xf32>, vector<32x120xf32> -> vector<32x120xf32>
    %c1_69 = arith.constant 1 : index
    %c0_70 = arith.constant 0 : index
    %c0_71 = arith.constant 0 : index
    %127 = vector.load %arg3[%c1_69, %c0_70, %c0_71] : memref<2x32x1xf32, #tpu.memory_space<vmem>>, vector<1x32x1xf32>
    %128 = vector.shape_cast %127 : vector<1x32x1xf32> to vector<32x1xf32>
    %129 = vector.broadcast %128 : vector<32x1xf32> to vector<32x120xf32>
    %130 = arith.addf %126, %129 : vector<32x120xf32>
    %cst_72 = arith.constant 0.000000e+00 : f32
    %131 = vector.broadcast %cst_72 : f32 to vector<32x120xf32>
    %132 = arith.maximumf %130, %131 : vector<32x120xf32>
    %c0_73 = arith.constant 0 : index
    %c0_74 = arith.constant 0 : index
    %c0_75 = arith.constant 0 : index
    %133 = vector.load %arg4[%c0_73, %c0_74, %c0_75] : memref<2x1x32xf32, #tpu.memory_space<vmem>>, vector<1x1x32xf32>
    %134 = vector.shape_cast %133 : vector<1x1x32xf32> to vector<1x32xf32>
    %cst_76 = arith.constant dense<0.000000e+00> : vector<1x120xf32>
    %135 = tpu.matmul %134, %123, %cst_76 {dimension_numbers = #tpu.dot_dimension_numbers<[1], [0], [0], [1], [0, 0, 1, 1], [], []>} : vector<1x32xf32>, vector<32x120xf32>, vector<1x120xf32> -> vector<1x120xf32>
    %136 = vector.broadcast %1 : vector<1x1xf32> to vector<1x120xf32>
    %137 = arith.addf %135, %136 : vector<1x120xf32>
    %c1_77 = arith.constant 1 : index
    %c0_78 = arith.constant 0 : index
    %c0_79 = arith.constant 0 : index
    %138 = vector.load %arg4[%c1_77, %c0_78, %c0_79] : memref<2x1x32xf32, #tpu.memory_space<vmem>>, vector<1x1x32xf32>
    %139 = vector.shape_cast %138 : vector<1x1x32xf32> to vector<1x32xf32>
    %cst_80 = arith.constant dense<0.000000e+00> : vector<1x120xf32>
    %140 = tpu.matmul %139, %132, %cst_80 {dimension_numbers = #tpu.dot_dimension_numbers<[1], [0], [0], [1], [0, 0, 1, 1], [], []>} : vector<1x32xf32>, vector<32x120xf32>, vector<1x120xf32> -> vector<1x120xf32>
    %141 = vector.broadcast %2 : vector<1x1xf32> to vector<1x120xf32>
    %142 = arith.addf %140, %141 : vector<1x120xf32>
    %cst_81 = arith.constant 5.000000e-01 : f32
    %143 = vector.broadcast %cst_81 : f32 to vector<1x120xf32>
    %144 = arith.mulf %143, %137 : vector<1x120xf32>
    %145 = math.tanh %144 : vector<1x120xf32>
    %cst_82 = arith.constant 1.000000e+00 : f32
    %146 = vector.broadcast %cst_82 : f32 to vector<1x120xf32>
    %147 = arith.addf %145, %146 : vector<1x120xf32>
    %cst_83 = arith.constant 5.000000e-01 : f32
    %148 = vector.broadcast %cst_83 : f32 to vector<1x120xf32>
    %149 = arith.mulf %148, %147 : vector<1x120xf32>
    %cst_84 = arith.constant 5.000000e-01 : f32
    %150 = vector.broadcast %cst_84 : f32 to vector<1x120xf32>
    %151 = arith.mulf %150, %142 : vector<1x120xf32>
    %152 = math.tanh %151 : vector<1x120xf32>
    %cst_85 = arith.constant 1.000000e+00 : f32
    %153 = vector.broadcast %cst_85 : f32 to vector<1x120xf32>
    %154 = arith.addf %152, %153 : vector<1x120xf32>
    %cst_86 = arith.constant 5.000000e-01 : f32
    %155 = vector.broadcast %cst_86 : f32 to vector<1x120xf32>
    %156 = arith.mulf %155, %154 : vector<1x120xf32>
    %c6_i32_87 = arith.constant 6 : i32
    %157 = vector.broadcast %c6_i32_87 : i32 to vector<7x120xi32>
    %158 = arith.cmpi slt, %15, %157 : vector<7x120xi32>
    %159 = vector.shape_cast %149 : vector<1x120xf32> to vector<1x120xf32>
    %160 = vector.broadcast %159 : vector<1x120xf32> to vector<7x120xf32>
    %161 = vector.shape_cast %156 : vector<1x120xf32> to vector<1x120xf32>
    %162 = vector.broadcast %161 : vector<1x120xf32> to vector<7x120xf32>
    %163 = arith.select %158, %160, %162 : vector<7x120xi1>, vector<7x120xf32>
    %164 = arith.mulf %114, %163 : vector<7x120xf32>
    %c1_88 = arith.constant 1 : index
    %c0_89 = arith.constant 0 : index
    %c0_90 = arith.constant 0 : index
    %165 = vector.load %arg5[%c1_88, %c0_89, %c0_90] : memref<4x128x7xf32, #tpu.memory_space<vmem>>, vector<1x128x7xf32>
    %166 = vector.shape_cast %165 : vector<1x128x7xf32> to vector<128x7xf32>
    %cst_91 = arith.constant dense<0.000000e+00> : vector<128x120xf32>
    %167 = tpu.matmul %166, %164, %cst_91 {dimension_numbers = #tpu.dot_dimension_numbers<[1], [0], [0], [1], [0, 0, 1, 1], [], []>} : vector<128x7xf32>, vector<7x120xf32>, vector<128x120xf32> -> vector<128x120xf32>
    %168 = arith.addf %70, %167 : vector<128x120xf32>
    %c0_92 = arith.constant 0 : index
    %c0_93 = arith.constant 0 : index
    %c0_94 = arith.constant 0 : index
    %169 = vector.load %arg7[%c0_92, %c0_93, %c0_94] : memref<7x32x120xf32, #tpu.memory_space<vmem>>, vector<1x32x120xf32>
    %170 = vector.shape_cast %169 : vector<1x32x120xf32> to vector<32x120xf32>
    %171 = vector.extract_strided_slice %164 {offsets = [0, 0], sizes = [1, 120], strides = [1, 1]} : vector<7x120xf32> to vector<1x120xf32>
    %172 = vector.broadcast %171 : vector<1x120xf32> to vector<32x120xf32>
    %173 = arith.mulf %170, %172 : vector<32x120xf32>
    %c1_95 = arith.constant 1 : index
    %c0_96 = arith.constant 0 : index
    %c0_97 = arith.constant 0 : index
    %174 = vector.load %arg7[%c1_95, %c0_96, %c0_97] : memref<7x32x120xf32, #tpu.memory_space<vmem>>, vector<1x32x120xf32>
    %175 = vector.shape_cast %174 : vector<1x32x120xf32> to vector<32x120xf32>
    %176 = vector.extract_strided_slice %164 {offsets = [1, 0], sizes = [1, 120], strides = [1, 1]} : vector<7x120xf32> to vector<1x120xf32>
    %177 = vector.broadcast %176 : vector<1x120xf32> to vector<32x120xf32>
    %178 = arith.mulf %175, %177 : vector<32x120xf32>
    %179 = arith.addf %173, %178 : vector<32x120xf32>
    %c2_98 = arith.constant 2 : index
    %c0_99 = arith.constant 0 : index
    %c0_100 = arith.constant 0 : index
    %180 = vector.load %arg7[%c2_98, %c0_99, %c0_100] : memref<7x32x120xf32, #tpu.memory_space<vmem>>, vector<1x32x120xf32>
    %181 = vector.shape_cast %180 : vector<1x32x120xf32> to vector<32x120xf32>
    %182 = vector.extract_strided_slice %164 {offsets = [2, 0], sizes = [1, 120], strides = [1, 1]} : vector<7x120xf32> to vector<1x120xf32>
    %183 = vector.broadcast %182 : vector<1x120xf32> to vector<32x120xf32>
    %184 = arith.mulf %181, %183 : vector<32x120xf32>
    %185 = arith.addf %179, %184 : vector<32x120xf32>
    %c3_101 = arith.constant 3 : index
    %c0_102 = arith.constant 0 : index
    %c0_103 = arith.constant 0 : index
    %186 = vector.load %arg7[%c3_101, %c0_102, %c0_103] : memref<7x32x120xf32, #tpu.memory_space<vmem>>, vector<1x32x120xf32>
    %187 = vector.shape_cast %186 : vector<1x32x120xf32> to vector<32x120xf32>
    %188 = vector.extract_strided_slice %164 {offsets = [3, 0], sizes = [1, 120], strides = [1, 1]} : vector<7x120xf32> to vector<1x120xf32>
    %189 = vector.broadcast %188 : vector<1x120xf32> to vector<32x120xf32>
    %190 = arith.mulf %187, %189 : vector<32x120xf32>
    %191 = arith.addf %185, %190 : vector<32x120xf32>
    %c4_104 = arith.constant 4 : index
    %c0_105 = arith.constant 0 : index
    %c0_106 = arith.constant 0 : index
    %192 = vector.load %arg7[%c4_104, %c0_105, %c0_106] : memref<7x32x120xf32, #tpu.memory_space<vmem>>, vector<1x32x120xf32>
    %193 = vector.shape_cast %192 : vector<1x32x120xf32> to vector<32x120xf32>
    %194 = vector.extract_strided_slice %164 {offsets = [4, 0], sizes = [1, 120], strides = [1, 1]} : vector<7x120xf32> to vector<1x120xf32>
    %195 = vector.broadcast %194 : vector<1x120xf32> to vector<32x120xf32>
    %196 = arith.mulf %193, %195 : vector<32x120xf32>
    %197 = arith.addf %191, %196 : vector<32x120xf32>
    %c5_107 = arith.constant 5 : index
    %c0_108 = arith.constant 0 : index
    %c0_109 = arith.constant 0 : index
    %198 = vector.load %arg7[%c5_107, %c0_108, %c0_109] : memref<7x32x120xf32, #tpu.memory_space<vmem>>, vector<1x32x120xf32>
    %199 = vector.shape_cast %198 : vector<1x32x120xf32> to vector<32x120xf32>
    %200 = vector.extract_strided_slice %164 {offsets = [5, 0], sizes = [1, 120], strides = [1, 1]} : vector<7x120xf32> to vector<1x120xf32>
    %201 = vector.broadcast %200 : vector<1x120xf32> to vector<32x120xf32>
    %202 = arith.mulf %199, %201 : vector<32x120xf32>
    %203 = arith.addf %197, %202 : vector<32x120xf32>
    %c6_110 = arith.constant 6 : index
    %c0_111 = arith.constant 0 : index
    %c0_112 = arith.constant 0 : index
    %204 = vector.load %arg7[%c6_110, %c0_111, %c0_112] : memref<7x32x120xf32, #tpu.memory_space<vmem>>, vector<1x32x120xf32>
    %205 = vector.shape_cast %204 : vector<1x32x120xf32> to vector<32x120xf32>
    %206 = vector.extract_strided_slice %164 {offsets = [6, 0], sizes = [1, 120], strides = [1, 1]} : vector<7x120xf32> to vector<1x120xf32>
    %207 = vector.broadcast %206 : vector<1x120xf32> to vector<32x120xf32>
    %208 = arith.mulf %205, %207 : vector<32x120xf32>
    %209 = arith.addf %203, %208 : vector<32x120xf32>
    %cst_113 = arith.constant dense<0.000000e+00> : vector<32x8xf32>
    %210 = tpu.matmul %209, %14, %cst_113 {dimension_numbers = #tpu.dot_dimension_numbers<[1], [0], [0], [1], [0, 0, 1, 1], [], []>} : vector<32x120xf32>, vector<120x8xf32>, vector<32x8xf32> -> vector<32x8xf32>
    %211 = arith.maximumf %112, %210 : vector<32x8xf32>
    %c2_114 = arith.constant 2 : index
    %c0_115 = arith.constant 0 : index
    %c0_116 = arith.constant 0 : index
    %212 = vector.load %arg1[%c2_114, %c0_115, %c0_116] : memref<4x7x120xf32, #tpu.memory_space<vmem>>, vector<1x7x120xf32>
    %213 = vector.shape_cast %212 : vector<1x7x120xf32> to vector<7x120xf32>
    %c0_117 = arith.constant 0 : index
    %c0_118 = arith.constant 0 : index
    %c0_119 = arith.constant 0 : index
    %214 = vector.load %arg2[%c0_117, %c0_118, %c0_119] : memref<2x32x7xf32, #tpu.memory_space<vmem>>, vector<1x32x7xf32>
    %215 = vector.shape_cast %214 : vector<1x32x7xf32> to vector<32x7xf32>
    %cst_120 = arith.constant dense<0.000000e+00> : vector<32x120xf32>
    %216 = tpu.matmul %215, %213, %cst_120 {dimension_numbers = #tpu.dot_dimension_numbers<[1], [0], [0], [1], [0, 0, 1, 1], [], []>} : vector<32x7xf32>, vector<7x120xf32>, vector<32x120xf32> -> vector<32x120xf32>
    %c0_121 = arith.constant 0 : index
    %c0_122 = arith.constant 0 : index
    %c0_123 = arith.constant 0 : index
    %217 = vector.load %arg3[%c0_121, %c0_122, %c0_123] : memref<2x32x1xf32, #tpu.memory_space<vmem>>, vector<1x32x1xf32>
    %218 = vector.shape_cast %217 : vector<1x32x1xf32> to vector<32x1xf32>
    %219 = vector.broadcast %218 : vector<32x1xf32> to vector<32x120xf32>
    %220 = arith.addf %216, %219 : vector<32x120xf32>
    %cst_124 = arith.constant 0.000000e+00 : f32
    %221 = vector.broadcast %cst_124 : f32 to vector<32x120xf32>
    %222 = arith.maximumf %220, %221 : vector<32x120xf32>
    %c1_125 = arith.constant 1 : index
    %c0_126 = arith.constant 0 : index
    %c0_127 = arith.constant 0 : index
    %223 = vector.load %arg2[%c1_125, %c0_126, %c0_127] : memref<2x32x7xf32, #tpu.memory_space<vmem>>, vector<1x32x7xf32>
    %224 = vector.shape_cast %223 : vector<1x32x7xf32> to vector<32x7xf32>
    %cst_128 = arith.constant dense<0.000000e+00> : vector<32x120xf32>
    %225 = tpu.matmul %224, %213, %cst_128 {dimension_numbers = #tpu.dot_dimension_numbers<[1], [0], [0], [1], [0, 0, 1, 1], [], []>} : vector<32x7xf32>, vector<7x120xf32>, vector<32x120xf32> -> vector<32x120xf32>
    %c1_129 = arith.constant 1 : index
    %c0_130 = arith.constant 0 : index
    %c0_131 = arith.constant 0 : index
    %226 = vector.load %arg3[%c1_129, %c0_130, %c0_131] : memref<2x32x1xf32, #tpu.memory_space<vmem>>, vector<1x32x1xf32>
    %227 = vector.shape_cast %226 : vector<1x32x1xf32> to vector<32x1xf32>
    %228 = vector.broadcast %227 : vector<32x1xf32> to vector<32x120xf32>
    %229 = arith.addf %225, %228 : vector<32x120xf32>
    %cst_132 = arith.constant 0.000000e+00 : f32
    %230 = vector.broadcast %cst_132 : f32 to vector<32x120xf32>
    %231 = arith.maximumf %229, %230 : vector<32x120xf32>
    %c0_133 = arith.constant 0 : index
    %c0_134 = arith.constant 0 : index
    %c0_135 = arith.constant 0 : index
    %232 = vector.load %arg4[%c0_133, %c0_134, %c0_135] : memref<2x1x32xf32, #tpu.memory_space<vmem>>, vector<1x1x32xf32>
    %233 = vector.shape_cast %232 : vector<1x1x32xf32> to vector<1x32xf32>
    %cst_136 = arith.constant dense<0.000000e+00> : vector<1x120xf32>
    %234 = tpu.matmul %233, %222, %cst_136 {dimension_numbers = #tpu.dot_dimension_numbers<[1], [0], [0], [1], [0, 0, 1, 1], [], []>} : vector<1x32xf32>, vector<32x120xf32>, vector<1x120xf32> -> vector<1x120xf32>
    %235 = vector.broadcast %1 : vector<1x1xf32> to vector<1x120xf32>
    %236 = arith.addf %234, %235 : vector<1x120xf32>
    %c1_137 = arith.constant 1 : index
    %c0_138 = arith.constant 0 : index
    %c0_139 = arith.constant 0 : index
    %237 = vector.load %arg4[%c1_137, %c0_138, %c0_139] : memref<2x1x32xf32, #tpu.memory_space<vmem>>, vector<1x1x32xf32>
    %238 = vector.shape_cast %237 : vector<1x1x32xf32> to vector<1x32xf32>
    %cst_140 = arith.constant dense<0.000000e+00> : vector<1x120xf32>
    %239 = tpu.matmul %238, %231, %cst_140 {dimension_numbers = #tpu.dot_dimension_numbers<[1], [0], [0], [1], [0, 0, 1, 1], [], []>} : vector<1x32xf32>, vector<32x120xf32>, vector<1x120xf32> -> vector<1x120xf32>
    %240 = vector.broadcast %2 : vector<1x1xf32> to vector<1x120xf32>
    %241 = arith.addf %239, %240 : vector<1x120xf32>
    %cst_141 = arith.constant 5.000000e-01 : f32
    %242 = vector.broadcast %cst_141 : f32 to vector<1x120xf32>
    %243 = arith.mulf %242, %236 : vector<1x120xf32>
    %244 = math.tanh %243 : vector<1x120xf32>
    %cst_142 = arith.constant 1.000000e+00 : f32
    %245 = vector.broadcast %cst_142 : f32 to vector<1x120xf32>
    %246 = arith.addf %244, %245 : vector<1x120xf32>
    %cst_143 = arith.constant 5.000000e-01 : f32
    %247 = vector.broadcast %cst_143 : f32 to vector<1x120xf32>
    %248 = arith.mulf %247, %246 : vector<1x120xf32>
    %cst_144 = arith.constant 5.000000e-01 : f32
    %249 = vector.broadcast %cst_144 : f32 to vector<1x120xf32>
    %250 = arith.mulf %249, %241 : vector<1x120xf32>
    %251 = math.tanh %250 : vector<1x120xf32>
    %cst_145 = arith.constant 1.000000e+00 : f32
    %252 = vector.broadcast %cst_145 : f32 to vector<1x120xf32>
    %253 = arith.addf %251, %252 : vector<1x120xf32>
    %cst_146 = arith.constant 5.000000e-01 : f32
    %254 = vector.broadcast %cst_146 : f32 to vector<1x120xf32>
    %255 = arith.mulf %254, %253 : vector<1x120xf32>
    %c6_i32_147 = arith.constant 6 : i32
    %256 = vector.broadcast %c6_i32_147 : i32 to vector<7x120xi32>
    %257 = arith.cmpi slt, %15, %256 : vector<7x120xi32>
    %258 = vector.shape_cast %248 : vector<1x120xf32> to vector<1x120xf32>
    %259 = vector.broadcast %258 : vector<1x120xf32> to vector<7x120xf32>
    %260 = vector.shape_cast %255 : vector<1x120xf32> to vector<1x120xf32>
    %261 = vector.broadcast %260 : vector<1x120xf32> to vector<7x120xf32>
    %262 = arith.select %257, %259, %261 : vector<7x120xi1>, vector<7x120xf32>
    %263 = arith.mulf %213, %262 : vector<7x120xf32>
    %c2_148 = arith.constant 2 : index
    %c0_149 = arith.constant 0 : index
    %c0_150 = arith.constant 0 : index
    %264 = vector.load %arg5[%c2_148, %c0_149, %c0_150] : memref<4x128x7xf32, #tpu.memory_space<vmem>>, vector<1x128x7xf32>
    %265 = vector.shape_cast %264 : vector<1x128x7xf32> to vector<128x7xf32>
    %cst_151 = arith.constant dense<0.000000e+00> : vector<128x120xf32>
    %266 = tpu.matmul %265, %263, %cst_151 {dimension_numbers = #tpu.dot_dimension_numbers<[1], [0], [0], [1], [0, 0, 1, 1], [], []>} : vector<128x7xf32>, vector<7x120xf32>, vector<128x120xf32> -> vector<128x120xf32>
    %267 = arith.addf %168, %266 : vector<128x120xf32>
    %c0_152 = arith.constant 0 : index
    %c0_153 = arith.constant 0 : index
    %c0_154 = arith.constant 0 : index
    %268 = vector.load %arg7[%c0_152, %c0_153, %c0_154] : memref<7x32x120xf32, #tpu.memory_space<vmem>>, vector<1x32x120xf32>
    %269 = vector.shape_cast %268 : vector<1x32x120xf32> to vector<32x120xf32>
    %270 = vector.extract_strided_slice %263 {offsets = [0, 0], sizes = [1, 120], strides = [1, 1]} : vector<7x120xf32> to vector<1x120xf32>
    %271 = vector.broadcast %270 : vector<1x120xf32> to vector<32x120xf32>
    %272 = arith.mulf %269, %271 : vector<32x120xf32>
    %c1_155 = arith.constant 1 : index
    %c0_156 = arith.constant 0 : index
    %c0_157 = arith.constant 0 : index
    %273 = vector.load %arg7[%c1_155, %c0_156, %c0_157] : memref<7x32x120xf32, #tpu.memory_space<vmem>>, vector<1x32x120xf32>
    %274 = vector.shape_cast %273 : vector<1x32x120xf32> to vector<32x120xf32>
    %275 = vector.extract_strided_slice %263 {offsets = [1, 0], sizes = [1, 120], strides = [1, 1]} : vector<7x120xf32> to vector<1x120xf32>
    %276 = vector.broadcast %275 : vector<1x120xf32> to vector<32x120xf32>
    %277 = arith.mulf %274, %276 : vector<32x120xf32>
    %278 = arith.addf %272, %277 : vector<32x120xf32>
    %c2_158 = arith.constant 2 : index
    %c0_159 = arith.constant 0 : index
    %c0_160 = arith.constant 0 : index
    %279 = vector.load %arg7[%c2_158, %c0_159, %c0_160] : memref<7x32x120xf32, #tpu.memory_space<vmem>>, vector<1x32x120xf32>
    %280 = vector.shape_cast %279 : vector<1x32x120xf32> to vector<32x120xf32>
    %281 = vector.extract_strided_slice %263 {offsets = [2, 0], sizes = [1, 120], strides = [1, 1]} : vector<7x120xf32> to vector<1x120xf32>
    %282 = vector.broadcast %281 : vector<1x120xf32> to vector<32x120xf32>
    %283 = arith.mulf %280, %282 : vector<32x120xf32>
    %284 = arith.addf %278, %283 : vector<32x120xf32>
    %c3_161 = arith.constant 3 : index
    %c0_162 = arith.constant 0 : index
    %c0_163 = arith.constant 0 : index
    %285 = vector.load %arg7[%c3_161, %c0_162, %c0_163] : memref<7x32x120xf32, #tpu.memory_space<vmem>>, vector<1x32x120xf32>
    %286 = vector.shape_cast %285 : vector<1x32x120xf32> to vector<32x120xf32>
    %287 = vector.extract_strided_slice %263 {offsets = [3, 0], sizes = [1, 120], strides = [1, 1]} : vector<7x120xf32> to vector<1x120xf32>
    %288 = vector.broadcast %287 : vector<1x120xf32> to vector<32x120xf32>
    %289 = arith.mulf %286, %288 : vector<32x120xf32>
    %290 = arith.addf %284, %289 : vector<32x120xf32>
    %c4_164 = arith.constant 4 : index
    %c0_165 = arith.constant 0 : index
    %c0_166 = arith.constant 0 : index
    %291 = vector.load %arg7[%c4_164, %c0_165, %c0_166] : memref<7x32x120xf32, #tpu.memory_space<vmem>>, vector<1x32x120xf32>
    %292 = vector.shape_cast %291 : vector<1x32x120xf32> to vector<32x120xf32>
    %293 = vector.extract_strided_slice %263 {offsets = [4, 0], sizes = [1, 120], strides = [1, 1]} : vector<7x120xf32> to vector<1x120xf32>
    %294 = vector.broadcast %293 : vector<1x120xf32> to vector<32x120xf32>
    %295 = arith.mulf %292, %294 : vector<32x120xf32>
    %296 = arith.addf %290, %295 : vector<32x120xf32>
    %c5_167 = arith.constant 5 : index
    %c0_168 = arith.constant 0 : index
    %c0_169 = arith.constant 0 : index
    %297 = vector.load %arg7[%c5_167, %c0_168, %c0_169] : memref<7x32x120xf32, #tpu.memory_space<vmem>>, vector<1x32x120xf32>
    %298 = vector.shape_cast %297 : vector<1x32x120xf32> to vector<32x120xf32>
    %299 = vector.extract_strided_slice %263 {offsets = [5, 0], sizes = [1, 120], strides = [1, 1]} : vector<7x120xf32> to vector<1x120xf32>
    %300 = vector.broadcast %299 : vector<1x120xf32> to vector<32x120xf32>
    %301 = arith.mulf %298, %300 : vector<32x120xf32>
    %302 = arith.addf %296, %301 : vector<32x120xf32>
    %c6_170 = arith.constant 6 : index
    %c0_171 = arith.constant 0 : index
    %c0_172 = arith.constant 0 : index
    %303 = vector.load %arg7[%c6_170, %c0_171, %c0_172] : memref<7x32x120xf32, #tpu.memory_space<vmem>>, vector<1x32x120xf32>
    %304 = vector.shape_cast %303 : vector<1x32x120xf32> to vector<32x120xf32>
    %305 = vector.extract_strided_slice %263 {offsets = [6, 0], sizes = [1, 120], strides = [1, 1]} : vector<7x120xf32> to vector<1x120xf32>
    %306 = vector.broadcast %305 : vector<1x120xf32> to vector<32x120xf32>
    %307 = arith.mulf %304, %306 : vector<32x120xf32>
    %308 = arith.addf %302, %307 : vector<32x120xf32>
    %cst_173 = arith.constant dense<0.000000e+00> : vector<32x8xf32>
    %309 = tpu.matmul %308, %14, %cst_173 {dimension_numbers = #tpu.dot_dimension_numbers<[1], [0], [0], [1], [0, 0, 1, 1], [], []>} : vector<32x120xf32>, vector<120x8xf32>, vector<32x8xf32> -> vector<32x8xf32>
    %310 = arith.maximumf %211, %309 : vector<32x8xf32>
    %c3_174 = arith.constant 3 : index
    %c0_175 = arith.constant 0 : index
    %c0_176 = arith.constant 0 : index
    %311 = vector.load %arg1[%c3_174, %c0_175, %c0_176] : memref<4x7x120xf32, #tpu.memory_space<vmem>>, vector<1x7x120xf32>
    %312 = vector.shape_cast %311 : vector<1x7x120xf32> to vector<7x120xf32>
    %c0_177 = arith.constant 0 : index
    %c0_178 = arith.constant 0 : index
    %c0_179 = arith.constant 0 : index
    %313 = vector.load %arg2[%c0_177, %c0_178, %c0_179] : memref<2x32x7xf32, #tpu.memory_space<vmem>>, vector<1x32x7xf32>
    %314 = vector.shape_cast %313 : vector<1x32x7xf32> to vector<32x7xf32>
    %cst_180 = arith.constant dense<0.000000e+00> : vector<32x120xf32>
    %315 = tpu.matmul %314, %312, %cst_180 {dimension_numbers = #tpu.dot_dimension_numbers<[1], [0], [0], [1], [0, 0, 1, 1], [], []>} : vector<32x7xf32>, vector<7x120xf32>, vector<32x120xf32> -> vector<32x120xf32>
    %c0_181 = arith.constant 0 : index
    %c0_182 = arith.constant 0 : index
    %c0_183 = arith.constant 0 : index
    %316 = vector.load %arg3[%c0_181, %c0_182, %c0_183] : memref<2x32x1xf32, #tpu.memory_space<vmem>>, vector<1x32x1xf32>
    %317 = vector.shape_cast %316 : vector<1x32x1xf32> to vector<32x1xf32>
    %318 = vector.broadcast %317 : vector<32x1xf32> to vector<32x120xf32>
    %319 = arith.addf %315, %318 : vector<32x120xf32>
    %cst_184 = arith.constant 0.000000e+00 : f32
    %320 = vector.broadcast %cst_184 : f32 to vector<32x120xf32>
    %321 = arith.maximumf %319, %320 : vector<32x120xf32>
    %c1_185 = arith.constant 1 : index
    %c0_186 = arith.constant 0 : index
    %c0_187 = arith.constant 0 : index
    %322 = vector.load %arg2[%c1_185, %c0_186, %c0_187] : memref<2x32x7xf32, #tpu.memory_space<vmem>>, vector<1x32x7xf32>
    %323 = vector.shape_cast %322 : vector<1x32x7xf32> to vector<32x7xf32>
    %cst_188 = arith.constant dense<0.000000e+00> : vector<32x120xf32>
    %324 = tpu.matmul %323, %312, %cst_188 {dimension_numbers = #tpu.dot_dimension_numbers<[1], [0], [0], [1], [0, 0, 1, 1], [], []>} : vector<32x7xf32>, vector<7x120xf32>, vector<32x120xf32> -> vector<32x120xf32>
    %c1_189 = arith.constant 1 : index
    %c0_190 = arith.constant 0 : index
    %c0_191 = arith.constant 0 : index
    %325 = vector.load %arg3[%c1_189, %c0_190, %c0_191] : memref<2x32x1xf32, #tpu.memory_space<vmem>>, vector<1x32x1xf32>
    %326 = vector.shape_cast %325 : vector<1x32x1xf32> to vector<32x1xf32>
    %327 = vector.broadcast %326 : vector<32x1xf32> to vector<32x120xf32>
    %328 = arith.addf %324, %327 : vector<32x120xf32>
    %cst_192 = arith.constant 0.000000e+00 : f32
    %329 = vector.broadcast %cst_192 : f32 to vector<32x120xf32>
    %330 = arith.maximumf %328, %329 : vector<32x120xf32>
    %c0_193 = arith.constant 0 : index
    %c0_194 = arith.constant 0 : index
    %c0_195 = arith.constant 0 : index
    %331 = vector.load %arg4[%c0_193, %c0_194, %c0_195] : memref<2x1x32xf32, #tpu.memory_space<vmem>>, vector<1x1x32xf32>
    %332 = vector.shape_cast %331 : vector<1x1x32xf32> to vector<1x32xf32>
    %cst_196 = arith.constant dense<0.000000e+00> : vector<1x120xf32>
    %333 = tpu.matmul %332, %321, %cst_196 {dimension_numbers = #tpu.dot_dimension_numbers<[1], [0], [0], [1], [0, 0, 1, 1], [], []>} : vector<1x32xf32>, vector<32x120xf32>, vector<1x120xf32> -> vector<1x120xf32>
    %334 = vector.broadcast %1 : vector<1x1xf32> to vector<1x120xf32>
    %335 = arith.addf %333, %334 : vector<1x120xf32>
    %c1_197 = arith.constant 1 : index
    %c0_198 = arith.constant 0 : index
    %c0_199 = arith.constant 0 : index
    %336 = vector.load %arg4[%c1_197, %c0_198, %c0_199] : memref<2x1x32xf32, #tpu.memory_space<vmem>>, vector<1x1x32xf32>
    %337 = vector.shape_cast %336 : vector<1x1x32xf32> to vector<1x32xf32>
    %cst_200 = arith.constant dense<0.000000e+00> : vector<1x120xf32>
    %338 = tpu.matmul %337, %330, %cst_200 {dimension_numbers = #tpu.dot_dimension_numbers<[1], [0], [0], [1], [0, 0, 1, 1], [], []>} : vector<1x32xf32>, vector<32x120xf32>, vector<1x120xf32> -> vector<1x120xf32>
    %339 = vector.broadcast %2 : vector<1x1xf32> to vector<1x120xf32>
    %340 = arith.addf %338, %339 : vector<1x120xf32>
    %cst_201 = arith.constant 5.000000e-01 : f32
    %341 = vector.broadcast %cst_201 : f32 to vector<1x120xf32>
    %342 = arith.mulf %341, %335 : vector<1x120xf32>
    %343 = math.tanh %342 : vector<1x120xf32>
    %cst_202 = arith.constant 1.000000e+00 : f32
    %344 = vector.broadcast %cst_202 : f32 to vector<1x120xf32>
    %345 = arith.addf %343, %344 : vector<1x120xf32>
    %cst_203 = arith.constant 5.000000e-01 : f32
    %346 = vector.broadcast %cst_203 : f32 to vector<1x120xf32>
    %347 = arith.mulf %346, %345 : vector<1x120xf32>
    %cst_204 = arith.constant 5.000000e-01 : f32
    %348 = vector.broadcast %cst_204 : f32 to vector<1x120xf32>
    %349 = arith.mulf %348, %340 : vector<1x120xf32>
    %350 = math.tanh %349 : vector<1x120xf32>
    %cst_205 = arith.constant 1.000000e+00 : f32
    %351 = vector.broadcast %cst_205 : f32 to vector<1x120xf32>
    %352 = arith.addf %350, %351 : vector<1x120xf32>
    %cst_206 = arith.constant 5.000000e-01 : f32
    %353 = vector.broadcast %cst_206 : f32 to vector<1x120xf32>
    %354 = arith.mulf %353, %352 : vector<1x120xf32>
    %c6_i32_207 = arith.constant 6 : i32
    %355 = vector.broadcast %c6_i32_207 : i32 to vector<7x120xi32>
    %356 = arith.cmpi slt, %15, %355 : vector<7x120xi32>
    %357 = vector.shape_cast %347 : vector<1x120xf32> to vector<1x120xf32>
    %358 = vector.broadcast %357 : vector<1x120xf32> to vector<7x120xf32>
    %359 = vector.shape_cast %354 : vector<1x120xf32> to vector<1x120xf32>
    %360 = vector.broadcast %359 : vector<1x120xf32> to vector<7x120xf32>
    %361 = arith.select %356, %358, %360 : vector<7x120xi1>, vector<7x120xf32>
    %362 = arith.mulf %312, %361 : vector<7x120xf32>
    %c3_208 = arith.constant 3 : index
    %c0_209 = arith.constant 0 : index
    %c0_210 = arith.constant 0 : index
    %363 = vector.load %arg5[%c3_208, %c0_209, %c0_210] : memref<4x128x7xf32, #tpu.memory_space<vmem>>, vector<1x128x7xf32>
    %364 = vector.shape_cast %363 : vector<1x128x7xf32> to vector<128x7xf32>
    %cst_211 = arith.constant dense<0.000000e+00> : vector<128x120xf32>
    %365 = tpu.matmul %364, %362, %cst_211 {dimension_numbers = #tpu.dot_dimension_numbers<[1], [0], [0], [1], [0, 0, 1, 1], [], []>} : vector<128x7xf32>, vector<7x120xf32>, vector<128x120xf32> -> vector<128x120xf32>
    %366 = arith.addf %267, %365 : vector<128x120xf32>
    %c0_212 = arith.constant 0 : index
    %c0_213 = arith.constant 0 : index
    %c0_214 = arith.constant 0 : index
    %367 = vector.load %arg7[%c0_212, %c0_213, %c0_214] : memref<7x32x120xf32, #tpu.memory_space<vmem>>, vector<1x32x120xf32>
    %368 = vector.shape_cast %367 : vector<1x32x120xf32> to vector<32x120xf32>
    %369 = vector.extract_strided_slice %362 {offsets = [0, 0], sizes = [1, 120], strides = [1, 1]} : vector<7x120xf32> to vector<1x120xf32>
    %370 = vector.broadcast %369 : vector<1x120xf32> to vector<32x120xf32>
    %371 = arith.mulf %368, %370 : vector<32x120xf32>
    %c1_215 = arith.constant 1 : index
    %c0_216 = arith.constant 0 : index
    %c0_217 = arith.constant 0 : index
    %372 = vector.load %arg7[%c1_215, %c0_216, %c0_217] : memref<7x32x120xf32, #tpu.memory_space<vmem>>, vector<1x32x120xf32>
    %373 = vector.shape_cast %372 : vector<1x32x120xf32> to vector<32x120xf32>
    %374 = vector.extract_strided_slice %362 {offsets = [1, 0], sizes = [1, 120], strides = [1, 1]} : vector<7x120xf32> to vector<1x120xf32>
    %375 = vector.broadcast %374 : vector<1x120xf32> to vector<32x120xf32>
    %376 = arith.mulf %373, %375 : vector<32x120xf32>
    %377 = arith.addf %371, %376 : vector<32x120xf32>
    %c2_218 = arith.constant 2 : index
    %c0_219 = arith.constant 0 : index
    %c0_220 = arith.constant 0 : index
    %378 = vector.load %arg7[%c2_218, %c0_219, %c0_220] : memref<7x32x120xf32, #tpu.memory_space<vmem>>, vector<1x32x120xf32>
    %379 = vector.shape_cast %378 : vector<1x32x120xf32> to vector<32x120xf32>
    %380 = vector.extract_strided_slice %362 {offsets = [2, 0], sizes = [1, 120], strides = [1, 1]} : vector<7x120xf32> to vector<1x120xf32>
    %381 = vector.broadcast %380 : vector<1x120xf32> to vector<32x120xf32>
    %382 = arith.mulf %379, %381 : vector<32x120xf32>
    %383 = arith.addf %377, %382 : vector<32x120xf32>
    %c3_221 = arith.constant 3 : index
    %c0_222 = arith.constant 0 : index
    %c0_223 = arith.constant 0 : index
    %384 = vector.load %arg7[%c3_221, %c0_222, %c0_223] : memref<7x32x120xf32, #tpu.memory_space<vmem>>, vector<1x32x120xf32>
    %385 = vector.shape_cast %384 : vector<1x32x120xf32> to vector<32x120xf32>
    %386 = vector.extract_strided_slice %362 {offsets = [3, 0], sizes = [1, 120], strides = [1, 1]} : vector<7x120xf32> to vector<1x120xf32>
    %387 = vector.broadcast %386 : vector<1x120xf32> to vector<32x120xf32>
    %388 = arith.mulf %385, %387 : vector<32x120xf32>
    %389 = arith.addf %383, %388 : vector<32x120xf32>
    %c4_224 = arith.constant 4 : index
    %c0_225 = arith.constant 0 : index
    %c0_226 = arith.constant 0 : index
    %390 = vector.load %arg7[%c4_224, %c0_225, %c0_226] : memref<7x32x120xf32, #tpu.memory_space<vmem>>, vector<1x32x120xf32>
    %391 = vector.shape_cast %390 : vector<1x32x120xf32> to vector<32x120xf32>
    %392 = vector.extract_strided_slice %362 {offsets = [4, 0], sizes = [1, 120], strides = [1, 1]} : vector<7x120xf32> to vector<1x120xf32>
    %393 = vector.broadcast %392 : vector<1x120xf32> to vector<32x120xf32>
    %394 = arith.mulf %391, %393 : vector<32x120xf32>
    %395 = arith.addf %389, %394 : vector<32x120xf32>
    %c5_227 = arith.constant 5 : index
    %c0_228 = arith.constant 0 : index
    %c0_229 = arith.constant 0 : index
    %396 = vector.load %arg7[%c5_227, %c0_228, %c0_229] : memref<7x32x120xf32, #tpu.memory_space<vmem>>, vector<1x32x120xf32>
    %397 = vector.shape_cast %396 : vector<1x32x120xf32> to vector<32x120xf32>
    %398 = vector.extract_strided_slice %362 {offsets = [5, 0], sizes = [1, 120], strides = [1, 1]} : vector<7x120xf32> to vector<1x120xf32>
    %399 = vector.broadcast %398 : vector<1x120xf32> to vector<32x120xf32>
    %400 = arith.mulf %397, %399 : vector<32x120xf32>
    %401 = arith.addf %395, %400 : vector<32x120xf32>
    %c6_230 = arith.constant 6 : index
    %c0_231 = arith.constant 0 : index
    %c0_232 = arith.constant 0 : index
    %402 = vector.load %arg7[%c6_230, %c0_231, %c0_232] : memref<7x32x120xf32, #tpu.memory_space<vmem>>, vector<1x32x120xf32>
    %403 = vector.shape_cast %402 : vector<1x32x120xf32> to vector<32x120xf32>
    %404 = vector.extract_strided_slice %362 {offsets = [6, 0], sizes = [1, 120], strides = [1, 1]} : vector<7x120xf32> to vector<1x120xf32>
    %405 = vector.broadcast %404 : vector<1x120xf32> to vector<32x120xf32>
    %406 = arith.mulf %403, %405 : vector<32x120xf32>
    %407 = arith.addf %401, %406 : vector<32x120xf32>
    %cst_233 = arith.constant dense<0.000000e+00> : vector<32x8xf32>
    %408 = tpu.matmul %407, %14, %cst_233 {dimension_numbers = #tpu.dot_dimension_numbers<[1], [0], [0], [1], [0, 0, 1, 1], [], []>} : vector<32x120xf32>, vector<120x8xf32>, vector<32x8xf32> -> vector<32x8xf32>
    %409 = arith.maximumf %310, %408 : vector<32x8xf32>
    %c0_234 = arith.constant 0 : index
    %c0_235 = arith.constant 0 : index
    %410 = vector.load %arg6[%c0_234, %c0_235] : memref<128x1xf32, #tpu.memory_space<vmem>>, vector<128x1xf32>
    %411 = vector.broadcast %410 : vector<128x1xf32> to vector<128x120xf32>
    %412 = arith.addf %366, %411 : vector<128x120xf32>
    %413 = vector.extract_strided_slice %412 {offsets = [0, 0], sizes = [32, 120], strides = [1, 1]} : vector<128x120xf32> to vector<32x120xf32>
    %414 = vector.extract_strided_slice %412 {offsets = [32, 0], sizes = [32, 120], strides = [1, 1]} : vector<128x120xf32> to vector<32x120xf32>
    %415 = arith.maximumf %413, %414 : vector<32x120xf32>
    %416 = vector.extract_strided_slice %412 {offsets = [64, 0], sizes = [32, 120], strides = [1, 1]} : vector<128x120xf32> to vector<32x120xf32>
    %417 = vector.extract_strided_slice %412 {offsets = [96, 0], sizes = [32, 120], strides = [1, 1]} : vector<128x120xf32> to vector<32x120xf32>
    %418 = arith.maximumf %416, %417 : vector<32x120xf32>
    %419 = arith.maximumf %415, %418 : vector<32x120xf32>
    %cst_236 = arith.constant 0.000000e+00 : f32
    %420 = vector.broadcast %cst_236 : f32 to vector<32x120xf32>
    %421 = arith.maximumf %419, %420 : vector<32x120xf32>
    %c0_237 = arith.constant 0 : index
    %c0_238 = arith.constant 0 : index
    %422 = vector.load %arg8[%c0_237, %c0_238] : memref<32x1xf32, #tpu.memory_space<vmem>>, vector<32x1xf32>
    %423 = vector.broadcast %422 : vector<32x1xf32> to vector<32x8xf32>
    %424 = arith.addf %409, %423 : vector<32x8xf32>
    %cst_239 = arith.constant 0.000000e+00 : f32
    %425 = vector.broadcast %cst_239 : f32 to vector<32x8xf32>
    %426 = arith.maximumf %424, %425 : vector<32x8xf32>
    %c0_240 = arith.constant 0 : index
    %c0_241 = arith.constant 0 : index
    %427 = vector.load %arg10[%c0_240, %c0_241] : memref<32x32xf32, #tpu.memory_space<vmem>>, vector<32x32xf32>
    %cst_242 = arith.constant dense<0.000000e+00> : vector<32x8xf32>
    %428 = tpu.matmul %427, %426, %cst_242 {dimension_numbers = #tpu.dot_dimension_numbers<[1], [0], [0], [1], [0, 0, 1, 1], [], []>} : vector<32x32xf32>, vector<32x8xf32>, vector<32x8xf32> -> vector<32x8xf32>
    %c15_i32_243 = arith.constant 15 : i32
    %429 = vector.broadcast %c15_i32_243 : i32 to vector<120x8xi32>
    %430 = arith.muli %5, %429 : vector<120x8xi32>
    %c0_i32 = arith.constant 0 : i32
    %431 = vector.broadcast %c0_i32 : i32 to vector<120x8xi32>
    %432 = arith.addi %430, %431 : vector<120x8xi32>
    %433 = arith.cmpi eq, %4, %432 : vector<120x8xi32>
    %434 = arith.extui %433 : vector<120x8xi1> to vector<120x8xi32>
    %435 = arith.sitofp %434 : vector<120x8xi32> to vector<120x8xf32>
    %cst_244 = arith.constant dense<0.000000e+00> : vector<32x8xf32>
    %436 = tpu.matmul %421, %435, %cst_244 {dimension_numbers = #tpu.dot_dimension_numbers<[1], [0], [0], [1], [0, 0, 1, 1], [], []>} : vector<32x120xf32>, vector<120x8xf32>, vector<32x8xf32> -> vector<32x8xf32>
    %c0_245 = arith.constant 0 : index
    %c0_246 = arith.constant 0 : index
    %c0_247 = arith.constant 0 : index
    %437 = vector.load %arg9[%c0_245, %c0_246, %c0_247] : memref<15x32x32xf32, #tpu.memory_space<vmem>>, vector<1x32x32xf32>
    %438 = vector.shape_cast %437 : vector<1x32x32xf32> to vector<32x32xf32>
    %cst_248 = arith.constant dense<0.000000e+00> : vector<32x8xf32>
    %439 = tpu.matmul %438, %436, %cst_248 {dimension_numbers = #tpu.dot_dimension_numbers<[1], [0], [0], [1], [0, 0, 1, 1], [], []>} : vector<32x32xf32>, vector<32x8xf32>, vector<32x8xf32> -> vector<32x8xf32>
    %440 = arith.addf %428, %439 : vector<32x8xf32>
    %c15_i32_249 = arith.constant 15 : i32
    %441 = vector.broadcast %c15_i32_249 : i32 to vector<120x8xi32>
    %442 = arith.muli %5, %441 : vector<120x8xi32>
    %c1_i32 = arith.constant 1 : i32
    %443 = vector.broadcast %c1_i32 : i32 to vector<120x8xi32>
    %444 = arith.addi %442, %443 : vector<120x8xi32>
    %445 = arith.cmpi eq, %4, %444 : vector<120x8xi32>
    %446 = arith.extui %445 : vector<120x8xi1> to vector<120x8xi32>
    %447 = arith.sitofp %446 : vector<120x8xi32> to vector<120x8xf32>
    %cst_250 = arith.constant dense<0.000000e+00> : vector<32x8xf32>
    %448 = tpu.matmul %421, %447, %cst_250 {dimension_numbers = #tpu.dot_dimension_numbers<[1], [0], [0], [1], [0, 0, 1, 1], [], []>} : vector<32x120xf32>, vector<120x8xf32>, vector<32x8xf32> -> vector<32x8xf32>
    %c1_251 = arith.constant 1 : index
    %c0_252 = arith.constant 0 : index
    %c0_253 = arith.constant 0 : index
    %449 = vector.load %arg9[%c1_251, %c0_252, %c0_253] : memref<15x32x32xf32, #tpu.memory_space<vmem>>, vector<1x32x32xf32>
    %450 = vector.shape_cast %449 : vector<1x32x32xf32> to vector<32x32xf32>
    %cst_254 = arith.constant dense<0.000000e+00> : vector<32x8xf32>
    %451 = tpu.matmul %450, %448, %cst_254 {dimension_numbers = #tpu.dot_dimension_numbers<[1], [0], [0], [1], [0, 0, 1, 1], [], []>} : vector<32x32xf32>, vector<32x8xf32>, vector<32x8xf32> -> vector<32x8xf32>
    %452 = arith.addf %440, %451 : vector<32x8xf32>
    %c15_i32_255 = arith.constant 15 : i32
    %453 = vector.broadcast %c15_i32_255 : i32 to vector<120x8xi32>
    %454 = arith.muli %5, %453 : vector<120x8xi32>
    %c2_i32 = arith.constant 2 : i32
    %455 = vector.broadcast %c2_i32 : i32 to vector<120x8xi32>
    %456 = arith.addi %454, %455 : vector<120x8xi32>
    %457 = arith.cmpi eq, %4, %456 : vector<120x8xi32>
    %458 = arith.extui %457 : vector<120x8xi1> to vector<120x8xi32>
    %459 = arith.sitofp %458 : vector<120x8xi32> to vector<120x8xf32>
    %cst_256 = arith.constant dense<0.000000e+00> : vector<32x8xf32>
    %460 = tpu.matmul %421, %459, %cst_256 {dimension_numbers = #tpu.dot_dimension_numbers<[1], [0], [0], [1], [0, 0, 1, 1], [], []>} : vector<32x120xf32>, vector<120x8xf32>, vector<32x8xf32> -> vector<32x8xf32>
    %c2_257 = arith.constant 2 : index
    %c0_258 = arith.constant 0 : index
    %c0_259 = arith.constant 0 : index
    %461 = vector.load %arg9[%c2_257, %c0_258, %c0_259] : memref<15x32x32xf32, #tpu.memory_space<vmem>>, vector<1x32x32xf32>
    %462 = vector.shape_cast %461 : vector<1x32x32xf32> to vector<32x32xf32>
    %cst_260 = arith.constant dense<0.000000e+00> : vector<32x8xf32>
    %463 = tpu.matmul %462, %460, %cst_260 {dimension_numbers = #tpu.dot_dimension_numbers<[1], [0], [0], [1], [0, 0, 1, 1], [], []>} : vector<32x32xf32>, vector<32x8xf32>, vector<32x8xf32> -> vector<32x8xf32>
    %464 = arith.addf %452, %463 : vector<32x8xf32>
    %c15_i32_261 = arith.constant 15 : i32
    %465 = vector.broadcast %c15_i32_261 : i32 to vector<120x8xi32>
    %466 = arith.muli %5, %465 : vector<120x8xi32>
    %c3_i32 = arith.constant 3 : i32
    %467 = vector.broadcast %c3_i32 : i32 to vector<120x8xi32>
    %468 = arith.addi %466, %467 : vector<120x8xi32>
    %469 = arith.cmpi eq, %4, %468 : vector<120x8xi32>
    %470 = arith.extui %469 : vector<120x8xi1> to vector<120x8xi32>
    %471 = arith.sitofp %470 : vector<120x8xi32> to vector<120x8xf32>
    %cst_262 = arith.constant dense<0.000000e+00> : vector<32x8xf32>
    %472 = tpu.matmul %421, %471, %cst_262 {dimension_numbers = #tpu.dot_dimension_numbers<[1], [0], [0], [1], [0, 0, 1, 1], [], []>} : vector<32x120xf32>, vector<120x8xf32>, vector<32x8xf32> -> vector<32x8xf32>
    %c3_263 = arith.constant 3 : index
    %c0_264 = arith.constant 0 : index
    %c0_265 = arith.constant 0 : index
    %473 = vector.load %arg9[%c3_263, %c0_264, %c0_265] : memref<15x32x32xf32, #tpu.memory_space<vmem>>, vector<1x32x32xf32>
    %474 = vector.shape_cast %473 : vector<1x32x32xf32> to vector<32x32xf32>
    %cst_266 = arith.constant dense<0.000000e+00> : vector<32x8xf32>
    %475 = tpu.matmul %474, %472, %cst_266 {dimension_numbers = #tpu.dot_dimension_numbers<[1], [0], [0], [1], [0, 0, 1, 1], [], []>} : vector<32x32xf32>, vector<32x8xf32>, vector<32x8xf32> -> vector<32x8xf32>
    %476 = arith.addf %464, %475 : vector<32x8xf32>
    %c15_i32_267 = arith.constant 15 : i32
    %477 = vector.broadcast %c15_i32_267 : i32 to vector<120x8xi32>
    %478 = arith.muli %5, %477 : vector<120x8xi32>
    %c4_i32 = arith.constant 4 : i32
    %479 = vector.broadcast %c4_i32 : i32 to vector<120x8xi32>
    %480 = arith.addi %478, %479 : vector<120x8xi32>
    %481 = arith.cmpi eq, %4, %480 : vector<120x8xi32>
    %482 = arith.extui %481 : vector<120x8xi1> to vector<120x8xi32>
    %483 = arith.sitofp %482 : vector<120x8xi32> to vector<120x8xf32>
    %cst_268 = arith.constant dense<0.000000e+00> : vector<32x8xf32>
    %484 = tpu.matmul %421, %483, %cst_268 {dimension_numbers = #tpu.dot_dimension_numbers<[1], [0], [0], [1], [0, 0, 1, 1], [], []>} : vector<32x120xf32>, vector<120x8xf32>, vector<32x8xf32> -> vector<32x8xf32>
    %c4_269 = arith.constant 4 : index
    %c0_270 = arith.constant 0 : index
    %c0_271 = arith.constant 0 : index
    %485 = vector.load %arg9[%c4_269, %c0_270, %c0_271] : memref<15x32x32xf32, #tpu.memory_space<vmem>>, vector<1x32x32xf32>
    %486 = vector.shape_cast %485 : vector<1x32x32xf32> to vector<32x32xf32>
    %cst_272 = arith.constant dense<0.000000e+00> : vector<32x8xf32>
    %487 = tpu.matmul %486, %484, %cst_272 {dimension_numbers = #tpu.dot_dimension_numbers<[1], [0], [0], [1], [0, 0, 1, 1], [], []>} : vector<32x32xf32>, vector<32x8xf32>, vector<32x8xf32> -> vector<32x8xf32>
    %488 = arith.addf %476, %487 : vector<32x8xf32>
    %c15_i32_273 = arith.constant 15 : i32
    %489 = vector.broadcast %c15_i32_273 : i32 to vector<120x8xi32>
    %490 = arith.muli %5, %489 : vector<120x8xi32>
    %c5_i32 = arith.constant 5 : i32
    %491 = vector.broadcast %c5_i32 : i32 to vector<120x8xi32>
    %492 = arith.addi %490, %491 : vector<120x8xi32>
    %493 = arith.cmpi eq, %4, %492 : vector<120x8xi32>
    %494 = arith.extui %493 : vector<120x8xi1> to vector<120x8xi32>
    %495 = arith.sitofp %494 : vector<120x8xi32> to vector<120x8xf32>
    %cst_274 = arith.constant dense<0.000000e+00> : vector<32x8xf32>
    %496 = tpu.matmul %421, %495, %cst_274 {dimension_numbers = #tpu.dot_dimension_numbers<[1], [0], [0], [1], [0, 0, 1, 1], [], []>} : vector<32x120xf32>, vector<120x8xf32>, vector<32x8xf32> -> vector<32x8xf32>
    %c5_275 = arith.constant 5 : index
    %c0_276 = arith.constant 0 : index
    %c0_277 = arith.constant 0 : index
    %497 = vector.load %arg9[%c5_275, %c0_276, %c0_277] : memref<15x32x32xf32, #tpu.memory_space<vmem>>, vector<1x32x32xf32>
    %498 = vector.shape_cast %497 : vector<1x32x32xf32> to vector<32x32xf32>
    %cst_278 = arith.constant dense<0.000000e+00> : vector<32x8xf32>
    %499 = tpu.matmul %498, %496, %cst_278 {dimension_numbers = #tpu.dot_dimension_numbers<[1], [0], [0], [1], [0, 0, 1, 1], [], []>} : vector<32x32xf32>, vector<32x8xf32>, vector<32x8xf32> -> vector<32x8xf32>
    %500 = arith.addf %488, %499 : vector<32x8xf32>
    %c15_i32_279 = arith.constant 15 : i32
    %501 = vector.broadcast %c15_i32_279 : i32 to vector<120x8xi32>
    %502 = arith.muli %5, %501 : vector<120x8xi32>
    %c6_i32_280 = arith.constant 6 : i32
    %503 = vector.broadcast %c6_i32_280 : i32 to vector<120x8xi32>
    %504 = arith.addi %502, %503 : vector<120x8xi32>
    %505 = arith.cmpi eq, %4, %504 : vector<120x8xi32>
    %506 = arith.extui %505 : vector<120x8xi1> to vector<120x8xi32>
    %507 = arith.sitofp %506 : vector<120x8xi32> to vector<120x8xf32>
    %cst_281 = arith.constant dense<0.000000e+00> : vector<32x8xf32>
    %508 = tpu.matmul %421, %507, %cst_281 {dimension_numbers = #tpu.dot_dimension_numbers<[1], [0], [0], [1], [0, 0, 1, 1], [], []>} : vector<32x120xf32>, vector<120x8xf32>, vector<32x8xf32> -> vector<32x8xf32>
    %c6_282 = arith.constant 6 : index
    %c0_283 = arith.constant 0 : index
    %c0_284 = arith.constant 0 : index
    %509 = vector.load %arg9[%c6_282, %c0_283, %c0_284] : memref<15x32x32xf32, #tpu.memory_space<vmem>>, vector<1x32x32xf32>
    %510 = vector.shape_cast %509 : vector<1x32x32xf32> to vector<32x32xf32>
    %cst_285 = arith.constant dense<0.000000e+00> : vector<32x8xf32>
    %511 = tpu.matmul %510, %508, %cst_285 {dimension_numbers = #tpu.dot_dimension_numbers<[1], [0], [0], [1], [0, 0, 1, 1], [], []>} : vector<32x32xf32>, vector<32x8xf32>, vector<32x8xf32> -> vector<32x8xf32>
    %512 = arith.addf %500, %511 : vector<32x8xf32>
    %c15_i32_286 = arith.constant 15 : i32
    %513 = vector.broadcast %c15_i32_286 : i32 to vector<120x8xi32>
    %514 = arith.muli %5, %513 : vector<120x8xi32>
    %c7_i32 = arith.constant 7 : i32
    %515 = vector.broadcast %c7_i32 : i32 to vector<120x8xi32>
    %516 = arith.addi %514, %515 : vector<120x8xi32>
    %517 = arith.cmpi eq, %4, %516 : vector<120x8xi32>
    %518 = arith.extui %517 : vector<120x8xi1> to vector<120x8xi32>
    %519 = arith.sitofp %518 : vector<120x8xi32> to vector<120x8xf32>
    %cst_287 = arith.constant dense<0.000000e+00> : vector<32x8xf32>
    %520 = tpu.matmul %421, %519, %cst_287 {dimension_numbers = #tpu.dot_dimension_numbers<[1], [0], [0], [1], [0, 0, 1, 1], [], []>} : vector<32x120xf32>, vector<120x8xf32>, vector<32x8xf32> -> vector<32x8xf32>
    %c7 = arith.constant 7 : index
    %c0_288 = arith.constant 0 : index
    %c0_289 = arith.constant 0 : index
    %521 = vector.load %arg9[%c7, %c0_288, %c0_289] : memref<15x32x32xf32, #tpu.memory_space<vmem>>, vector<1x32x32xf32>
    %522 = vector.shape_cast %521 : vector<1x32x32xf32> to vector<32x32xf32>
    %cst_290 = arith.constant dense<0.000000e+00> : vector<32x8xf32>
    %523 = tpu.matmul %522, %520, %cst_290 {dimension_numbers = #tpu.dot_dimension_numbers<[1], [0], [0], [1], [0, 0, 1, 1], [], []>} : vector<32x32xf32>, vector<32x8xf32>, vector<32x8xf32> -> vector<32x8xf32>
    %524 = arith.addf %512, %523 : vector<32x8xf32>
    %c15_i32_291 = arith.constant 15 : i32
    %525 = vector.broadcast %c15_i32_291 : i32 to vector<120x8xi32>
    %526 = arith.muli %5, %525 : vector<120x8xi32>
    %c8_i32 = arith.constant 8 : i32
    %527 = vector.broadcast %c8_i32 : i32 to vector<120x8xi32>
    %528 = arith.addi %526, %527 : vector<120x8xi32>
    %529 = arith.cmpi eq, %4, %528 : vector<120x8xi32>
    %530 = arith.extui %529 : vector<120x8xi1> to vector<120x8xi32>
    %531 = arith.sitofp %530 : vector<120x8xi32> to vector<120x8xf32>
    %cst_292 = arith.constant dense<0.000000e+00> : vector<32x8xf32>
    %532 = tpu.matmul %421, %531, %cst_292 {dimension_numbers = #tpu.dot_dimension_numbers<[1], [0], [0], [1], [0, 0, 1, 1], [], []>} : vector<32x120xf32>, vector<120x8xf32>, vector<32x8xf32> -> vector<32x8xf32>
    %c8 = arith.constant 8 : index
    %c0_293 = arith.constant 0 : index
    %c0_294 = arith.constant 0 : index
    %533 = vector.load %arg9[%c8, %c0_293, %c0_294] : memref<15x32x32xf32, #tpu.memory_space<vmem>>, vector<1x32x32xf32>
    %534 = vector.shape_cast %533 : vector<1x32x32xf32> to vector<32x32xf32>
    %cst_295 = arith.constant dense<0.000000e+00> : vector<32x8xf32>
    %535 = tpu.matmul %534, %532, %cst_295 {dimension_numbers = #tpu.dot_dimension_numbers<[1], [0], [0], [1], [0, 0, 1, 1], [], []>} : vector<32x32xf32>, vector<32x8xf32>, vector<32x8xf32> -> vector<32x8xf32>
    %536 = arith.addf %524, %535 : vector<32x8xf32>
    %c15_i32_296 = arith.constant 15 : i32
    %537 = vector.broadcast %c15_i32_296 : i32 to vector<120x8xi32>
    %538 = arith.muli %5, %537 : vector<120x8xi32>
    %c9_i32 = arith.constant 9 : i32
    %539 = vector.broadcast %c9_i32 : i32 to vector<120x8xi32>
    %540 = arith.addi %538, %539 : vector<120x8xi32>
    %541 = arith.cmpi eq, %4, %540 : vector<120x8xi32>
    %542 = arith.extui %541 : vector<120x8xi1> to vector<120x8xi32>
    %543 = arith.sitofp %542 : vector<120x8xi32> to vector<120x8xf32>
    %cst_297 = arith.constant dense<0.000000e+00> : vector<32x8xf32>
    %544 = tpu.matmul %421, %543, %cst_297 {dimension_numbers = #tpu.dot_dimension_numbers<[1], [0], [0], [1], [0, 0, 1, 1], [], []>} : vector<32x120xf32>, vector<120x8xf32>, vector<32x8xf32> -> vector<32x8xf32>
    %c9 = arith.constant 9 : index
    %c0_298 = arith.constant 0 : index
    %c0_299 = arith.constant 0 : index
    %545 = vector.load %arg9[%c9, %c0_298, %c0_299] : memref<15x32x32xf32, #tpu.memory_space<vmem>>, vector<1x32x32xf32>
    %546 = vector.shape_cast %545 : vector<1x32x32xf32> to vector<32x32xf32>
    %cst_300 = arith.constant dense<0.000000e+00> : vector<32x8xf32>
    %547 = tpu.matmul %546, %544, %cst_300 {dimension_numbers = #tpu.dot_dimension_numbers<[1], [0], [0], [1], [0, 0, 1, 1], [], []>} : vector<32x32xf32>, vector<32x8xf32>, vector<32x8xf32> -> vector<32x8xf32>
    %548 = arith.addf %536, %547 : vector<32x8xf32>
    %c15_i32_301 = arith.constant 15 : i32
    %549 = vector.broadcast %c15_i32_301 : i32 to vector<120x8xi32>
    %550 = arith.muli %5, %549 : vector<120x8xi32>
    %c10_i32 = arith.constant 10 : i32
    %551 = vector.broadcast %c10_i32 : i32 to vector<120x8xi32>
    %552 = arith.addi %550, %551 : vector<120x8xi32>
    %553 = arith.cmpi eq, %4, %552 : vector<120x8xi32>
    %554 = arith.extui %553 : vector<120x8xi1> to vector<120x8xi32>
    %555 = arith.sitofp %554 : vector<120x8xi32> to vector<120x8xf32>
    %cst_302 = arith.constant dense<0.000000e+00> : vector<32x8xf32>
    %556 = tpu.matmul %421, %555, %cst_302 {dimension_numbers = #tpu.dot_dimension_numbers<[1], [0], [0], [1], [0, 0, 1, 1], [], []>} : vector<32x120xf32>, vector<120x8xf32>, vector<32x8xf32> -> vector<32x8xf32>
    %c10 = arith.constant 10 : index
    %c0_303 = arith.constant 0 : index
    %c0_304 = arith.constant 0 : index
    %557 = vector.load %arg9[%c10, %c0_303, %c0_304] : memref<15x32x32xf32, #tpu.memory_space<vmem>>, vector<1x32x32xf32>
    %558 = vector.shape_cast %557 : vector<1x32x32xf32> to vector<32x32xf32>
    %cst_305 = arith.constant dense<0.000000e+00> : vector<32x8xf32>
    %559 = tpu.matmul %558, %556, %cst_305 {dimension_numbers = #tpu.dot_dimension_numbers<[1], [0], [0], [1], [0, 0, 1, 1], [], []>} : vector<32x32xf32>, vector<32x8xf32>, vector<32x8xf32> -> vector<32x8xf32>
    %560 = arith.addf %548, %559 : vector<32x8xf32>
    %c15_i32_306 = arith.constant 15 : i32
    %561 = vector.broadcast %c15_i32_306 : i32 to vector<120x8xi32>
    %562 = arith.muli %5, %561 : vector<120x8xi32>
    %c11_i32 = arith.constant 11 : i32
    %563 = vector.broadcast %c11_i32 : i32 to vector<120x8xi32>
    %564 = arith.addi %562, %563 : vector<120x8xi32>
    %565 = arith.cmpi eq, %4, %564 : vector<120x8xi32>
    %566 = arith.extui %565 : vector<120x8xi1> to vector<120x8xi32>
    %567 = arith.sitofp %566 : vector<120x8xi32> to vector<120x8xf32>
    %cst_307 = arith.constant dense<0.000000e+00> : vector<32x8xf32>
    %568 = tpu.matmul %421, %567, %cst_307 {dimension_numbers = #tpu.dot_dimension_numbers<[1], [0], [0], [1], [0, 0, 1, 1], [], []>} : vector<32x120xf32>, vector<120x8xf32>, vector<32x8xf32> -> vector<32x8xf32>
    %c11 = arith.constant 11 : index
    %c0_308 = arith.constant 0 : index
    %c0_309 = arith.constant 0 : index
    %569 = vector.load %arg9[%c11, %c0_308, %c0_309] : memref<15x32x32xf32, #tpu.memory_space<vmem>>, vector<1x32x32xf32>
    %570 = vector.shape_cast %569 : vector<1x32x32xf32> to vector<32x32xf32>
    %cst_310 = arith.constant dense<0.000000e+00> : vector<32x8xf32>
    %571 = tpu.matmul %570, %568, %cst_310 {dimension_numbers = #tpu.dot_dimension_numbers<[1], [0], [0], [1], [0, 0, 1, 1], [], []>} : vector<32x32xf32>, vector<32x8xf32>, vector<32x8xf32> -> vector<32x8xf32>
    %572 = arith.addf %560, %571 : vector<32x8xf32>
    %c15_i32_311 = arith.constant 15 : i32
    %573 = vector.broadcast %c15_i32_311 : i32 to vector<120x8xi32>
    %574 = arith.muli %5, %573 : vector<120x8xi32>
    %c12_i32 = arith.constant 12 : i32
    %575 = vector.broadcast %c12_i32 : i32 to vector<120x8xi32>
    %576 = arith.addi %574, %575 : vector<120x8xi32>
    %577 = arith.cmpi eq, %4, %576 : vector<120x8xi32>
    %578 = arith.extui %577 : vector<120x8xi1> to vector<120x8xi32>
    %579 = arith.sitofp %578 : vector<120x8xi32> to vector<120x8xf32>
    %cst_312 = arith.constant dense<0.000000e+00> : vector<32x8xf32>
    %580 = tpu.matmul %421, %579, %cst_312 {dimension_numbers = #tpu.dot_dimension_numbers<[1], [0], [0], [1], [0, 0, 1, 1], [], []>} : vector<32x120xf32>, vector<120x8xf32>, vector<32x8xf32> -> vector<32x8xf32>
    %c12 = arith.constant 12 : index
    %c0_313 = arith.constant 0 : index
    %c0_314 = arith.constant 0 : index
    %581 = vector.load %arg9[%c12, %c0_313, %c0_314] : memref<15x32x32xf32, #tpu.memory_space<vmem>>, vector<1x32x32xf32>
    %582 = vector.shape_cast %581 : vector<1x32x32xf32> to vector<32x32xf32>
    %cst_315 = arith.constant dense<0.000000e+00> : vector<32x8xf32>
    %583 = tpu.matmul %582, %580, %cst_315 {dimension_numbers = #tpu.dot_dimension_numbers<[1], [0], [0], [1], [0, 0, 1, 1], [], []>} : vector<32x32xf32>, vector<32x8xf32>, vector<32x8xf32> -> vector<32x8xf32>
    %584 = arith.addf %572, %583 : vector<32x8xf32>
    %c15_i32_316 = arith.constant 15 : i32
    %585 = vector.broadcast %c15_i32_316 : i32 to vector<120x8xi32>
    %586 = arith.muli %5, %585 : vector<120x8xi32>
    %c13_i32 = arith.constant 13 : i32
    %587 = vector.broadcast %c13_i32 : i32 to vector<120x8xi32>
    %588 = arith.addi %586, %587 : vector<120x8xi32>
    %589 = arith.cmpi eq, %4, %588 : vector<120x8xi32>
    %590 = arith.extui %589 : vector<120x8xi1> to vector<120x8xi32>
    %591 = arith.sitofp %590 : vector<120x8xi32> to vector<120x8xf32>
    %cst_317 = arith.constant dense<0.000000e+00> : vector<32x8xf32>
    %592 = tpu.matmul %421, %591, %cst_317 {dimension_numbers = #tpu.dot_dimension_numbers<[1], [0], [0], [1], [0, 0, 1, 1], [], []>} : vector<32x120xf32>, vector<120x8xf32>, vector<32x8xf32> -> vector<32x8xf32>
    %c13 = arith.constant 13 : index
    %c0_318 = arith.constant 0 : index
    %c0_319 = arith.constant 0 : index
    %593 = vector.load %arg9[%c13, %c0_318, %c0_319] : memref<15x32x32xf32, #tpu.memory_space<vmem>>, vector<1x32x32xf32>
    %594 = vector.shape_cast %593 : vector<1x32x32xf32> to vector<32x32xf32>
    %cst_320 = arith.constant dense<0.000000e+00> : vector<32x8xf32>
    %595 = tpu.matmul %594, %592, %cst_320 {dimension_numbers = #tpu.dot_dimension_numbers<[1], [0], [0], [1], [0, 0, 1, 1], [], []>} : vector<32x32xf32>, vector<32x8xf32>, vector<32x8xf32> -> vector<32x8xf32>
    %596 = arith.addf %584, %595 : vector<32x8xf32>
    %c15_i32_321 = arith.constant 15 : i32
    %597 = vector.broadcast %c15_i32_321 : i32 to vector<120x8xi32>
    %598 = arith.muli %5, %597 : vector<120x8xi32>
    %c14_i32 = arith.constant 14 : i32
    %599 = vector.broadcast %c14_i32 : i32 to vector<120x8xi32>
    %600 = arith.addi %598, %599 : vector<120x8xi32>
    %601 = arith.cmpi eq, %4, %600 : vector<120x8xi32>
    %602 = arith.extui %601 : vector<120x8xi1> to vector<120x8xi32>
    %603 = arith.sitofp %602 : vector<120x8xi32> to vector<120x8xf32>
    %cst_322 = arith.constant dense<0.000000e+00> : vector<32x8xf32>
    %604 = tpu.matmul %421, %603, %cst_322 {dimension_numbers = #tpu.dot_dimension_numbers<[1], [0], [0], [1], [0, 0, 1, 1], [], []>} : vector<32x120xf32>, vector<120x8xf32>, vector<32x8xf32> -> vector<32x8xf32>
    %c14 = arith.constant 14 : index
    %c0_323 = arith.constant 0 : index
    %c0_324 = arith.constant 0 : index
    %605 = vector.load %arg9[%c14, %c0_323, %c0_324] : memref<15x32x32xf32, #tpu.memory_space<vmem>>, vector<1x32x32xf32>
    %606 = vector.shape_cast %605 : vector<1x32x32xf32> to vector<32x32xf32>
    %cst_325 = arith.constant dense<0.000000e+00> : vector<32x8xf32>
    %607 = tpu.matmul %606, %604, %cst_325 {dimension_numbers = #tpu.dot_dimension_numbers<[1], [0], [0], [1], [0, 0, 1, 1], [], []>} : vector<32x32xf32>, vector<32x8xf32>, vector<32x8xf32> -> vector<32x8xf32>
    %608 = arith.addf %596, %607 : vector<32x8xf32>
    %c0_326 = arith.constant 0 : index
    %c0_327 = arith.constant 0 : index
    %609 = vector.load %arg11[%c0_326, %c0_327] : memref<32x1xf32, #tpu.memory_space<vmem>>, vector<32x1xf32>
    %610 = vector.broadcast %609 : vector<32x1xf32> to vector<32x8xf32>
    %611 = arith.addf %608, %610 : vector<32x8xf32>
    %cst_328 = arith.constant 0.000000e+00 : f32
    %612 = vector.broadcast %cst_328 : f32 to vector<32x8xf32>
    %613 = arith.maximumf %611, %612 : vector<32x8xf32>
    %c0_329 = arith.constant 0 : index
    %c0_330 = arith.constant 0 : index
    %614 = vector.load %arg12[%c0_329, %c0_330] : memref<1x32xf32, #tpu.memory_space<vmem>>, vector<1x32xf32>
    %cst_331 = arith.constant dense<0.000000e+00> : vector<1x8xf32>
    %615 = tpu.matmul %614, %613, %cst_331 {dimension_numbers = #tpu.dot_dimension_numbers<[1], [0], [0], [1], [0, 0, 1, 1], [], []>} : vector<1x32xf32>, vector<32x8xf32>, vector<1x8xf32> -> vector<1x8xf32>
    %616 = vector.broadcast %3 : vector<1x1xf32> to vector<1x8xf32>
    %617 = arith.addf %615, %616 : vector<1x8xf32>
    %c0_332 = arith.constant 0 : index
    %c0_333 = arith.constant 0 : index
    %618 = vector.load %arg14[%c0_332, %c0_333] : memref<1x8xf32, #tpu.memory_space<vmem>>, vector<1x8xf32>
    tpu.vector_store %arg14[%c0_332, %c0_333], %617 {strides = array<i32>} : memref<1x8xf32, #tpu.memory_space<vmem>>, vector<1x8xf32>,
    return
  }
  func.func @transform_0(%arg0: i32) -> (i32, i32, i32) {
    %c0_i32 = arith.constant 0 : i32
    %c0_i32_0 = arith.constant 0 : i32
    %c0_i32_1 = arith.constant 0 : i32
    %c0_i32_2 = arith.constant 0 : i32
    return %c0_i32, %c0_i32_0, %c0_i32_1 : i32, i32, i32
  }
  func.func @transform_1(%arg0: i32) -> (i32, i32, i32) {
    %c0_i32 = arith.constant 0 : i32
    %c0_i32_0 = arith.constant 0 : i32
    %c0_i32_1 = arith.constant 0 : i32
    %c0_i32_2 = arith.constant 0 : i32
    return %c0_i32, %c0_i32_0, %c0_i32_1 : i32, i32, i32
  }
  func.func @transform_2(%arg0: i32) -> (i32, i32, i32) {
    %c0_i32 = arith.constant 0 : i32
    %c0_i32_0 = arith.constant 0 : i32
    %c0_i32_1 = arith.constant 0 : i32
    %c0_i32_2 = arith.constant 0 : i32
    return %c0_i32, %c0_i32_0, %c0_i32_1 : i32, i32, i32
  }
  func.func @transform_3(%arg0: i32) -> (i32, i32, i32) {
    %c0_i32 = arith.constant 0 : i32
    %c0_i32_0 = arith.constant 0 : i32
    %c0_i32_1 = arith.constant 0 : i32
    %c0_i32_2 = arith.constant 0 : i32
    return %c0_i32, %c0_i32_0, %c0_i32_1 : i32, i32, i32
  }
  func.func @transform_4(%arg0: i32) -> (i32, i32, i32) {
    %c0_i32 = arith.constant 0 : i32
    %c0_i32_0 = arith.constant 0 : i32
    %c0_i32_1 = arith.constant 0 : i32
    %c0_i32_2 = arith.constant 0 : i32
    return %c0_i32, %c0_i32_0, %c0_i32_1 : i32, i32, i32
  }
  func.func @transform_5(%arg0: i32) -> (i32, i32) {
    %c0_i32 = arith.constant 0 : i32
    %c0_i32_0 = arith.constant 0 : i32
    %c0_i32_1 = arith.constant 0 : i32
    return %c0_i32, %c0_i32_0 : i32, i32
  }
  func.func @transform_6(%arg0: i32) -> (i32, i32, i32) {
    %c0_i32 = arith.constant 0 : i32
    %c0_i32_0 = arith.constant 0 : i32
    %c0_i32_1 = arith.constant 0 : i32
    %c0_i32_2 = arith.constant 0 : i32
    return %c0_i32, %c0_i32_0, %c0_i32_1 : i32, i32, i32
  }
  func.func @transform_7(%arg0: i32) -> (i32, i32) {
    %c0_i32 = arith.constant 0 : i32
    %c0_i32_0 = arith.constant 0 : i32
    %c0_i32_1 = arith.constant 0 : i32
    return %c0_i32, %c0_i32_0 : i32, i32
  }
  func.func @transform_8(%arg0: i32) -> (i32, i32, i32) {
    %c0_i32 = arith.constant 0 : i32
    %c0_i32_0 = arith.constant 0 : i32
    %c0_i32_1 = arith.constant 0 : i32
    %c0_i32_2 = arith.constant 0 : i32
    return %c0_i32, %c0_i32_0, %c0_i32_1 : i32, i32, i32
  }
  func.func @transform_9(%arg0: i32) -> (i32, i32) {
    %c0_i32 = arith.constant 0 : i32
    %c0_i32_0 = arith.constant 0 : i32
    %c0_i32_1 = arith.constant 0 : i32
    return %c0_i32, %c0_i32_0 : i32, i32
  }
  func.func @transform_10(%arg0: i32) -> (i32, i32) {
    %c0_i32 = arith.constant 0 : i32
    %c0_i32_0 = arith.constant 0 : i32
    %c0_i32_1 = arith.constant 0 : i32
    return %c0_i32, %c0_i32_0 : i32, i32
  }
  func.func @transform_11(%arg0: i32) -> (i32, i32) {
    %c0_i32 = arith.constant 0 : i32
    %c0_i32_0 = arith.constant 0 : i32
    %c0_i32_1 = arith.constant 0 : i32
    return %c0_i32, %c0_i32_0 : i32, i32
  }
  func.func @transform_12(%arg0: i32) -> (i32, i32) {
    %c0_i32 = arith.constant 0 : i32
    %c0_i32_0 = arith.constant 0 : i32
    %c0_i32_1 = arith.constant 0 : i32
    return %c0_i32, %c0_i32_0 : i32, i32
  }
  func.func @transform_13(%arg0: i32) -> (i32, i32) {
    %c0_i32 = arith.constant 0 : i32
    %c0_i32_0 = arith.constant 0 : i32
    %c0_i32_1 = arith.constant 0 : i32
    return %c0_i32, %c0_i32_0 : i32, i32
  }
}

</mosaic_0001>

<llo_original>
// kernel: tile.9
$region0: #{tile.9}
  %s0 = inlined_call_operand.vmem [shape: f32[7,32,8,15], index: 0, kind: input, shape index: {}]
  %s1 = inlined_call_operand.vmem [shape: f32[7,32,120], index: 1, kind: output, shape index: {}]
  %v2 = vld [vmem:[%s0] sm:$0xff]
  %vm3 = vcmask 261120
  %4 = vst.msk [vmem:[%s1] sm:$0xff] %vm3, %v2
  %s5 = scalar_lea.vmem %s0, 8
  %v6 = vld [vmem:[%s5] sm:$0x7f]
  %vm7 = vcmask 261120
  %s8 = scalar_lea.vmem %s1, 8
  %9 = vst.msk [vmem:[%s8] sm:$0x7f] %vm7, %v6
  %s10 = scalar_lea.vmem %s0, 16
  %v11 = vld [vmem:[%s10] sm:$0xff]
  %vm12 = vcmask 261120
  %s13 = scalar_lea.vmem %s1, 15
  %14 = vst.msk [vmem:[%s13] sm:$0xff] %vm12, %v11
  %s15 = scalar_lea.vmem %s0, 24
  %v16 = vld [vmem:[%s15] sm:$0x7f]
  %vm17 = vcmask 261120
  %s18 = scalar_lea.vmem %s1, 23
  %19 = vst.msk [vmem:[%s18] sm:$0x7f] %vm17, %v16
  %s20 = scalar_lea.vmem %s0, 32
  %v21 = vld [vmem:[%s20] sm:$0xff]
  %vm22 = vcmask 261120
  %s23 = scalar_lea.vmem %s1, 30
  %24 = vst.msk [vmem:[%s23] sm:$0xff] %vm22, %v21
  %s25 = scalar_lea.vmem %s0, 40
  %v26 = vld [vmem:[%s25] sm:$0x7f]
  %vm27 = vcmask 261120
  %s28 = scalar_lea.vmem %s1, 38
  %29 = vst.msk [vmem:[%s28] sm:$0x7f] %vm27, %v26
  %s30 = scalar_lea.vmem %s0, 48
  %v31 = vld [vmem:[%s30] sm:$0xff]
  %vm32 = vcmask 261120
  %s33 = scalar_lea.vmem %s1, 45
  %34 = vst.msk [vmem:[%s33] sm:$0xff] %vm32, %v31
  %s35 = scalar_lea.vmem %s0, 56
  %v36 = vld [vmem:[%s35] sm:$0x7f]
  %vm37 = vcmask 261120
  %s38 = scalar_lea.vmem %s1, 53
  %39 = vst.msk [vmem:[%s38] sm:$0x7f] %vm37, %v36
  %s40 = scalar_lea.vmem %s0, 64
  %v41 = vld [vmem:[%s40] sm:$0xff]
  %vm42 = vcmask 261120
  %s43 = scalar_lea.vmem %s1, 60
  %44 = vst.msk [vmem:[%s43] sm:$0xff] %vm42, %v41
  %s45 = scalar_lea.vmem %s0, 72
  %v46 = vld [vmem:[%s45] sm:$0x7f]
  %vm47 = vcmask 261120
  %s48 = scalar_lea.vmem %s1, 68
  %49 = vst.msk [vmem:[%s48] sm:$0x7f] %vm47, %v46
  %s50 = scalar_lea.vmem %s0, 80
  %v51 = vld [vmem:[%s50] sm:$0xff]
  %vm52 = vcmask 261120
  %s53 = scalar_lea.vmem %s1, 75
  %54 = vst.msk [vmem:[%s53] sm:$0xff] %vm52, %v51
  %s55 = scalar_lea.vmem %s0, 88
  %v56 = vld [vmem:[%s55] sm:$0x7f]
  %vm57 = vcmask 261120
  %s58 = scalar_lea.vmem %s1, 83
  %59 = vst.msk [vmem:[%s58] sm:$0x7f] %vm57, %v56
  %s60 = scalar_lea.vmem %s0, 96
  %v61 = vld [vmem:[%s60] sm:$0xff]
  %vm62 = vcmask 261120
  %s63 = scalar_lea.vmem %s1, 90
  %64 = vst.msk [vmem:[%s63] sm:$0xff] %vm62, %v61
  %s65 = scalar_lea.vmem %s0, 104
  %v66 = vld [vmem:[%s65] sm:$0x7f]
  %vm67 = vcmask 261120
  %s68 = scalar_lea.vmem %s1, 98
  %69 = vst.msk [vmem:[%s68] sm:$0x7f] %vm67, %v66
  %s70 = scalar_lea.vmem %s0, 112
  %v71 = vld [vmem:[%s70] sm:$0xff]
  %vm72 = vcmask 261120
  %s73 = scalar_lea.vmem %s1, 105
  %74 = vst.msk [vmem:[%s73] sm:$0xff] %vm72, %v71
  %s75 = scalar_lea.vmem %s0, 120
  %v76 = vld [vmem:[%s75] sm:$0x7f]
  %vm77 = vcmask 261120
  %s78 = scalar_lea.vmem %s1, 113
  %79 = vst.msk [vmem:[%s78] sm:$0x7f] %vm77, %v76
  %s80 = scalar_lea.vmem %s0, 128
  %v81 = vld [vmem:[%s80] sm:$0xff]
  %vm82 = vcmask 261120
  %s83 = scalar_lea.vmem %s1, 120
  %84 = vst.msk [vmem:[%s83] sm:$0xff] %vm82, %v81
  %s85 = scalar_lea.vmem %s0, 136
  %v86 = vld [vmem:[%s85] sm:$0x7f]
  %vm87 = vcmask 261120
  %s88 = scalar_lea.vmem %s1, 128
  %89 = vst.msk [vmem:[%s88] sm:$0x7f] %vm87, %v86
  %s90 = scalar_lea.vmem %s0, 144
  %v91 = vld [vmem:[%s90] sm:$0xff]
  %vm92 = vcmask 261120
  %s93 = scalar_lea.vmem %s1, 135
  %94 = vst.msk [vmem:[%s93] sm:$0xff] %vm92, %v91
  %s95 = scalar_lea.vmem %s0, 152
  %v96 = vld [vmem:[%s95] sm:$0x7f]
  %vm97 = vcmask 261120
  %s98 = scalar_lea.vmem %s1, 143
  %99 = vst.msk [vmem:[%s98] sm:$0x7f] %vm97, %v96
  %s100 = scalar_lea.vmem %s0, 160
  %v101 = vld [vmem:[%s100] sm:$0xff]
  %vm102 = vcmask 261120
  %s103 = scalar_lea.vmem %s1, 150
  %104 = vst.msk [vmem:[%s103] sm:$0xff] %vm102, %v101
  %s105 = scalar_lea.vmem %s0, 168
  %v106 = vld [vmem:[%s105] sm:$0x7f]
  %vm107 = vcmask 261120
  %s108 = scalar_lea.vmem %s1, 158
  %109 = vst.msk [vmem:[%s108] sm:$0x7f] %vm107, %v106
  %s110 = scalar_lea.vmem %s0, 176
  %v111 = vld [vmem:[%s110] sm:$0xff]
  %vm112 = vcmask 261120
  %s113 = scalar_lea.vmem %s1, 165
  %114 = vst.msk [vmem:[%s113] sm:$0xff] %vm112, %v111
  %s115 = scalar_lea.vmem %s0, 184
  %v116 = vld [vmem:[%s115] sm:$0x7f]
  %vm117 = vcmask 261120
  %s118 = scalar_lea.vmem %s1, 173
  %119 = vst.msk [vmem:[%s118] sm:$0x7f] %vm117, %v116
  %s120 = scalar_lea.vmem %s0, 192
  %v121 = vld [vmem:[%s120] sm:$0xff]
  %vm122 = vcmask 261120
  %s123 = scalar_lea.vmem %s1, 180
  %124 = vst.msk [vmem:[%s123] sm:$0xff] %vm122, %v121
  %s125 = scalar_lea.vmem %s0, 200
  %v126 = vld [vmem:[%s125] sm:$0x7f]
  %vm127 = vcmask 261120
  %s128 = scalar_lea.vmem %s1, 188
  %129 = vst.msk [vmem:[%s128] sm:$0x7f] %vm127, %v126
  %s130 = scalar_lea.vmem %s0, 208
  %v131 = vld [vmem:[%s130] sm:$0xff]
  %vm132 = vcmask 261120
  %s133 = scalar_lea.vmem %s1, 195
  %134 = vst.msk [vmem:[%s133] sm:$0xff] %vm132, %v131
  %s135 = scalar_lea.vmem %s0, 216
  %v136 = vld [vmem:[%s135] sm:$0x7f]
  %vm137 = vcmask 261120
  %s138 = scalar_lea.vmem %s1, 203
  %139 = vst.msk [vmem:[%s138] sm:$0x7f] %vm137, %v136
  %s140 = scalar_lea.vmem %s0, 224
  %v141 = vld [vmem:[%s140] sm:$0xff]
  %vm142 = vcmask 261120
  %s143 = scalar_lea.vmem %s1, 210
  %144 = vst.msk [vmem:[%s143] sm:$0xff] %vm142, %v141
  %s145 = scalar_lea.vmem %s0, 232
  %v146 = vld [vmem:[%s145] sm:$0x7f]
  %vm147 = vcmask 261120
  %s148 = scalar_lea.vmem %s1, 218
  %149 = vst.msk [vmem:[%s148] sm:$0x7f] %vm147, %v146
  %s150 = scalar_lea.vmem %s0, 240
  %v151 = vld [vmem:[%s150] sm:$0xff]
  %vm152 = vcmask 261120
  %s153 = scalar_lea.vmem %s1, 225
  %154 = vst.msk [vmem:[%s153] sm:$0xff] %vm152, %v151
  %s155 = scalar_lea.vmem %s0, 248
  %v156 = vld [vmem:[%s155] sm:$0x7f]
  %vm157 = vcmask 261120
  %s158 = scalar_lea.vmem %s1, 233
  %159 = vst.msk [vmem:[%s158] sm:$0x7f] %vm157, %v156
  %s160 = scalar_lea.vmem %s0, 256
  %v161 = vld [vmem:[%s160] sm:$0xff]
  %vm162 = vcmask 261120
  %s163 = scalar_lea.vmem %s1, 240
  %164 = vst.msk [vmem:[%s163] sm:$0xff] %vm162, %v161
  %s165 = scalar_lea.vmem %s0, 264
  %v166 = vld [vmem:[%s165] sm:$0x7f]
  %vm167 = vcmask 261120
  %s168 = scalar_lea.vmem %s1, 248
  %169 = vst.msk [vmem:[%s168] sm:$0x7f] %vm167, %v166
  %s170 = scalar_lea.vmem %s0, 272
  %v171 = vld [vmem:[%s170] sm:$0xff]
  %vm172 = vcmask 261120
  %s173 = scalar_lea.vmem %s1, 255
  %174 = vst.msk [vmem:[%s173] sm:$0xff] %vm172, %v171
  %s175 = scalar_lea.vmem %s0, 280
  %v176 = vld [vmem:[%s175] sm:$0x7f]
  %vm177 = vcmask 261120
  %s178 = scalar_lea.vmem %s1, 263
  %179 = vst.msk [vmem:[%s178] sm:$0x7f] %vm177, %v176
  %s180 = scalar_lea.vmem %s0, 288
  %v181 = vld [vmem:[%s180] sm:$0xff]
  %vm182 = vcmask 261120
  %s183 = scalar_lea.vmem %s1, 270
  %184 = vst.msk [vmem:[%s183] sm:$0xff] %vm182, %v181
  %s185 = scalar_lea.vmem %s0, 296
  %v186 = vld [vmem:[%s185] sm:$0x7f]
  %vm187 = vcmask 261120
  %s188 = scalar_lea.vmem %s1, 278
  %189 = vst.msk [vmem:[%s188] sm:$0x7f] %vm187, %v186
  %s190 = scalar_lea.vmem %s0, 304
  %v191 = vld [vmem:[%s190] sm:$0xff]
  %vm192 = vcmask 261120
  %s193 = scalar_lea.vmem %s1, 285
  %194 = vst.msk [vmem:[%s193] sm:$0xff] %vm192, %v191
  %s195 = scalar_lea.vmem %s0, 312
  %v196 = vld [vmem:[%s195] sm:$0x7f]
  %vm197 = vcmask 261120
  %s198 = scalar_lea.vmem %s1, 293
  %199 = vst.msk [vmem:[%s198] sm:$0x7f] %vm197, %v196
  %s200 = scalar_lea.vmem %s0, 320
  %v201 = vld [vmem:[%s200] sm:$0xff]
  %vm202 = vcmask 261120
  %s203 = scalar_lea.vmem %s1, 300
  %204 = vst.msk [vmem:[%s203] sm:$0xff] %vm202, %v201
  %s205 = scalar_lea.vmem %s0, 328
  %v206 = vld [vmem:[%s205] sm:$0x7f]
  %vm207 = vcmask 261120
  %s208 = scalar_lea.vmem %s1, 308
  %209 = vst.msk [vmem:[%s208] sm:$0x7f] %vm207, %v206
  %s210 = scalar_lea.vmem %s0, 336
  %v211 = vld [vmem:[%s210] sm:$0xff]
  %vm212 = vcmask 261120
  %s213 = scalar_lea.vmem %s1, 315
  %214 = vst.msk [vmem:[%s213] sm:$0xff] %vm212, %v211
  %s215 = scalar_lea.vmem %s0, 344
  %v216 = vld [vmem:[%s215] sm:$0x7f]
  %vm217 = vcmask 261120
  %s218 = scalar_lea.vmem %s1, 323
  %219 = vst.msk [vmem:[%s218] sm:$0x7f] %vm217, %v216
  %s220 = scalar_lea.vmem %s0, 352
  %v221 = vld [vmem:[%s220] sm:$0xff]
  %vm222 = vcmask 261120
  %s223 = scalar_lea.vmem %s1, 330
  %224 = vst.msk [vmem:[%s223] sm:$0xff] %vm222, %v221
  %s225 = scalar_lea.vmem %s0, 360
  %v226 = vld [vmem:[%s225] sm:$0x7f]
  %vm227 = vcmask 261120
  %s228 = scalar_lea.vmem %s1, 338
  %229 = vst.msk [vmem:[%s228] sm:$0x7f] %vm227, %v226
  %s230 = scalar_lea.vmem %s0, 368
  %v231 = vld [vmem:[%s230] sm:$0xff]
  %vm232 = vcmask 261120
  %s233 = scalar_lea.vmem %s1, 345
  %234 = vst.msk [vmem:[%s233] sm:$0xff] %vm232, %v231
  %s235 = scalar_lea.vmem %s0, 376
  %v236 = vld [vmem:[%s235] sm:$0x7f]
  %vm237 = vcmask 261120
  %s238 = scalar_lea.vmem %s1, 353
  %239 = vst.msk [vmem:[%s238] sm:$0x7f] %vm237, %v236
  %s240 = scalar_lea.vmem %s0, 384
  %v241 = vld [vmem:[%s240] sm:$0xff]
  %vm242 = vcmask 261120
  %s243 = scalar_lea.vmem %s1, 360
  %244 = vst.msk [vmem:[%s243] sm:$0xff] %vm242, %v241
  %s245 = scalar_lea.vmem %s0, 392
  %v246 = vld [vmem:[%s245] sm:$0x7f]
  %vm247 = vcmask 261120
  %s248 = scalar_lea.vmem %s1, 368
  %249 = vst.msk [vmem:[%s248] sm:$0x7f] %vm247, %v246
  %s250 = scalar_lea.vmem %s0, 400
  %v251 = vld [vmem:[%s250] sm:$0xff]
  %vm252 = vcmask 261120
  %s253 = scalar_lea.vmem %s1, 375
  %254 = vst.msk [vmem:[%s253] sm:$0xff] %vm252, %v251
  %s255 = scalar_lea.vmem %s0, 408
  %v256 = vld [vmem:[%s255] sm:$0x7f]
  %vm257 = vcmask 261120
  %s258 = scalar_lea.vmem %s1, 383
  %259 = vst.msk [vmem:[%s258] sm:$0x7f] %vm257, %v256
  %s260 = scalar_lea.vmem %s0, 416
  %v261 = vld [vmem:[%s260] sm:$0xff]
  %vm262 = vcmask 261120
  %s263 = scalar_lea.vmem %s1, 390
  %264 = vst.msk [vmem:[%s263] sm:$0xff] %vm262, %v261
  %s265 = scalar_lea.vmem %s0, 424
  %v266 = vld [vmem:[%s265] sm:$0x7f]
  %vm267 = vcmask 261120
  %s268 = scalar_lea.vmem %s1, 398
  %269 = vst.msk [vmem:[%s268] sm:$0x7f] %vm267, %v266
  %s270 = scalar_lea.vmem %s0, 432
  %v271 = vld [vmem:[%s270] sm:$0xff]
  %vm272 = vcmask 261120
  %s273 = scalar_lea.vmem %s1, 405
  %274 = vst.msk [vmem:[%s273] sm:$0xff] %vm272, %v271
  %s275 = scalar_lea.vmem %s0, 440
  %v276 = vld [vmem:[%s275] sm:$0x7f]
  %vm277 = vcmask 261120
  %s278 = scalar_lea.vmem %s1, 413
  %279 = vst.msk [vmem:[%s278] sm:$0x7f] %vm277, %v276
  %s280 = scalar_lea.vmem %s0, 448
  %v281 = vld [vmem:[%s280] sm:$0xff]
  %vm282 = vcmask 261120
  %s283 = scalar_lea.vmem %s1, 420
  %284 = vst.msk [vmem:[%s283] sm:$0xff] %vm282, %v281
  %s285 = scalar_lea.vmem %s0, 456
  %v286 = vld [vmem:[%s285] sm:$0x7f]
  %vm287 = vcmask 261120
  %s288 = scalar_lea.vmem %s1, 428
  %289 = vst.msk [vmem:[%s288] sm:$0x7f] %vm287, %v286
  %s290 = scalar_lea.vmem %s0, 464
  %v291 = vld [vmem:[%s290] sm:$0xff]
  %vm292 = vcmask 261120
  %s293 = scalar_lea.vmem %s1, 435
  %294 = vst.msk [vmem:[%s293] sm:$0xff] %vm292, %v291
  %s295 = scalar_lea.vmem %s0, 472
  %v296 = vld [vmem:[%s295] sm:$0x7f]
  %vm297 = vcmask 261120
  %s298 = scalar_lea.vmem %s1, 443
  %299 = vst.msk [vmem:[%s298] sm:$0x7f] %vm297, %v296
  %s300 = scalar_lea.vmem %s0, 480
  %v301 = vld [vmem:[%s300] sm:$0xff]
  %vm302 = vcmask 261120
  %s303 = scalar_lea.vmem %s1, 450
  %304 = vst.msk [vmem:[%s303] sm:$0xff] %vm302, %v301
  %s305 = scalar_lea.vmem %s0, 488
  %v306 = vld [vmem:[%s305] sm:$0x7f]
  %vm307 = vcmask 261120
  %s308 = scalar_lea.vmem %s1, 458
  %309 = vst.msk [vmem:[%s308] sm:$0x7f] %vm307, %v306
  %s310 = scalar_lea.vmem %s0, 496
  %v311 = vld [vmem:[%s310] sm:$0xff]
  %vm312 = vcmask 261120
  %s313 = scalar_lea.vmem %s1, 465
  %314 = vst.msk [vmem:[%s313] sm:$0xff] %vm312, %v311
  %s315 = scalar_lea.vmem %s0, 504
  %v316 = vld [vmem:[%s315] sm:$0x7f]
  %vm317 = vcmask 261120
  %s318 = scalar_lea.vmem %s1, 473
  %319 = vst.msk [vmem:[%s318] sm:$0x7f] %vm317, %v316
  %s320 = scalar_lea.vmem %s0, 512
  %v321 = vld [vmem:[%s320] sm:$0xff]
  %vm322 = vcmask 261120
  %s323 = scalar_lea.vmem %s1, 480
  %324 = vst.msk [vmem:[%s323] sm:$0xff] %vm322, %v321
  %s325 = scalar_lea.vmem %s0, 520
  %v326 = vld [vmem:[%s325] sm:$0x7f]
  %vm327 = vcmask 261120
  %s328 = scalar_lea.vmem %s1, 488
  %329 = vst.msk [vmem:[%s328] sm:$0x7f] %vm327, %v326
  %s330 = scalar_lea.vmem %s0, 528
  %v331 = vld [vmem:[%s330] sm:$0xff]
  %vm332 = vcmask 261120
  %s333 = scalar_lea.vmem %s1, 495
  %334 = vst.msk [vmem:[%s333] sm:$0xff] %vm332, %v331
  %s335 = scalar_lea.vmem %s0, 536
  %v336 = vld [vmem:[%s335] sm:$0x7f]
  %vm337 = vcmask 261120
  %s338 = scalar_lea.vmem %s1, 503
  %339 = vst.msk [vmem:[%s338] sm:$0x7f] %vm337, %v336
  %s340 = scalar_lea.vmem %s0, 544
  %v341 = vld [vmem:[%s340] sm:$0xff]
  %vm342 = vcmask 261120
  %s343 = scalar_lea.vmem %s1, 510
  %344 = vst.msk [vmem:[%s343] sm:$0xff] %vm342, %v341
  %s345 = scalar_lea.vmem %s0, 552
  %v346 = vld [vmem:[%s345] sm:$0x7f]
  %vm347 = vcmask 261120
  %s348 = scalar_lea.vmem %s1, 518
  %349 = vst.msk [vmem:[%s348] sm:$0x7f] %vm347, %v346
  %s350 = scalar_lea.vmem %s0, 560
  %v351 = vld [vmem:[%s350] sm:$0xff]
  %vm352 = vcmask 261120
  %s353 = scalar_lea.vmem %s1, 525
  %354 = vst.msk [vmem:[%s353] sm:$0xff] %vm352, %v351
  %s355 = scalar_lea.vmem %s0, 568
  %v356 = vld [vmem:[%s355] sm:$0x7f]
  %vm357 = vcmask 261120
  %s358 = scalar_lea.vmem %s1, 533
  %359 = vst.msk [vmem:[%s358] sm:$0x7f] %vm357, %v356
  %s360 = scalar_lea.vmem %s0, 576
  %v361 = vld [vmem:[%s360] sm:$0xff]
  %vm362 = vcmask 261120
  %s363 = scalar_lea.vmem %s1, 540
  %364 = vst.msk [vmem:[%s363] sm:$0xff] %vm362, %v361
  %s365 = scalar_lea.vmem %s0, 584
  %v366 = vld [vmem:[%s365] sm:$0x7f]
  %vm367 = vcmask 261120
  %s368 = scalar_lea.vmem %s1, 548
  %369 = vst.msk [vmem:[%s368] sm:$0x7f] %vm367, %v366
  %s370 = scalar_lea.vmem %s0, 592
  %v371 = vld [vmem:[%s370] sm:$0xff]
  %vm372 = vcmask 261120
  %s373 = scalar_lea.vmem %s1, 555
  %374 = vst.msk [vmem:[%s373] sm:$0xff] %vm372, %v371
  %s375 = scalar_lea.vmem %s0, 600
  %v376 = vld [vmem:[%s375] sm:$0x7f]
  %vm377 = vcmask 261120
  %s378 = scalar_lea.vmem %s1, 563
  %379 = vst.msk [vmem:[%s378] sm:$0x7f] %vm377, %v376
  %s380 = scalar_lea.vmem %s0, 608
  %v381 = vld [vmem:[%s380] sm:$0xff]
  %vm382 = vcmask 261120
  %s383 = scalar_lea.vmem %s1, 570
  %384 = vst.msk [vmem:[%s383] sm:$0xff] %vm382, %v381
  %s385 = scalar_lea.vmem %s0, 616
  %v386 = vld [vmem:[%s385] sm:$0x7f]
  %vm387 = vcmask 261120
  %s388 = scalar_lea.vmem %s1, 578
  %389 = vst.msk [vmem:[%s388] sm:$0x7f] %vm387, %v386
  %s390 = scalar_lea.vmem %s0, 624
  %v391 = vld [vmem:[%s390] sm:$0xff]
  %vm392 = vcmask 261120
  %s393 = scalar_lea.vmem %s1, 585
  %394 = vst.msk [vmem:[%s393] sm:$0xff] %vm392, %v391
  %s395 = scalar_lea.vmem %s0, 632
  %v396 = vld [vmem:[%s395] sm:$0x7f]
  %vm397 = vcmask 261120
  %s398 = scalar_lea.vmem %s1, 593
  %399 = vst.msk [vmem:[%s398] sm:$0x7f] %vm397, %v396
  %s400 = scalar_lea.vmem %s0, 640
  %v401 = vld [vmem:[%s400] sm:$0xff]
  %vm402 = vcmask 261120
  %s403 = scalar_lea.vmem %s1, 600
  %404 = vst.msk [vmem:[%s403] sm:$0xff] %vm402, %v401
  %s405 = scalar_lea.vmem %s0, 648
  %v406 = vld [vmem:[%s405] sm:$0x7f]
  %vm407 = vcmask 261120
  %s408 = scalar_lea.vmem %s1, 608
  %409 = vst.msk [vmem:[%s408] sm:$0x7f] %vm407, %v406
  %s410 = scalar_lea.vmem %s0, 656
  %v411 = vld [vmem:[%s410] sm:$0xff]
  %vm412 = vcmask 261120
  %s413 = scalar_lea.vmem %s1, 615
  %414 = vst.msk [vmem:[%s413] sm:$0xff] %vm412, %v411
  %s415 = scalar_lea.vmem %s0, 664
  %v416 = vld [vmem:[%s415] sm:$0x7f]
  %vm417 = vcmask 261120
  %s418 = scalar_lea.vmem %s1, 623
  %419 = vst.msk [vmem:[%s418] sm:$0x7f] %vm417, %v416
  %s420 = scalar_lea.vmem %s0, 672
  %v421 = vld [vmem:[%s420] sm:$0xff]
  %vm422 = vcmask 261120
  %s423 = scalar_lea.vmem %s1, 630
  %424 = vst.msk [vmem:[%s423] sm:$0xff] %vm422, %v421
  %s425 = scalar_lea.vmem %s0, 680
  %v426 = vld [vmem:[%s425] sm:$0x7f]
  %vm427 = vcmask 261120
  %s428 = scalar_lea.vmem %s1, 638
  %429 = vst.msk [vmem:[%s428] sm:$0x7f] %vm427, %v426
  %s430 = scalar_lea.vmem %s0, 688
  %v431 = vld [vmem:[%s430] sm:$0xff]
  %vm432 = vcmask 261120
  %s433 = scalar_lea.vmem %s1, 645
  %434 = vst.msk [vmem:[%s433] sm:$0xff] %vm432, %v431
  %s435 = scalar_lea.vmem %s0, 696
  %v436 = vld [vmem:[%s435] sm:$0x7f]
  %vm437 = vcmask 261120
  %s438 = scalar_lea.vmem %s1, 653
  %439 = vst.msk [vmem:[%s438] sm:$0x7f] %vm437, %v436
  %s440 = scalar_lea.vmem %s0, 704
  %v441 = vld [vmem:[%s440] sm:$0xff]
  %vm442 = vcmask 261120
  %s443 = scalar_lea.vmem %s1, 660
  %444 = vst.msk [vmem:[%s443] sm:$0xff] %vm442, %v441
  %s445 = scalar_lea.vmem %s0, 712
  %v446 = vld [vmem:[%s445] sm:$0x7f]
  %vm447 = vcmask 261120
  %s448 = scalar_lea.vmem %s1, 668
  %449 = vst.msk [vmem:[%s448] sm:$0x7f] %vm447, %v446
  %s450 = scalar_lea.vmem %s0, 720
  %v451 = vld [vmem:[%s450] sm:$0xff]
  %vm452 = vcmask 261120
  %s453 = scalar_lea.vmem %s1, 675
  %454 = vst.msk [vmem:[%s453] sm:$0xff] %vm452, %v451
  %s455 = scalar_lea.vmem %s0, 728
  %v456 = vld [vmem:[%s455] sm:$0x7f]
  %vm457 = vcmask 261120
  %s458 = scalar_lea.vmem %s1, 683
  %459 = vst.msk [vmem:[%s458] sm:$0x7f] %vm457, %v456
  %s460 = scalar_lea.vmem %s0, 736
  %v461 = vld [vmem:[%s460] sm:$0xff]
  %vm462 = vcmask 261120
  %s463 = scalar_lea.vmem %s1, 690
  %464 = vst.msk [vmem:[%s463] sm:$0xff] %vm462, %v461
  %s465 = scalar_lea.vmem %s0, 744
  %v466 = vld [vmem:[%s465] sm:$0x7f]
  %vm467 = vcmask 261120
  %s468 = scalar_lea.vmem %s1, 698
  %469 = vst.msk [vmem:[%s468] sm:$0x7f] %vm467, %v466
  %s470 = scalar_lea.vmem %s0, 752
  %v471 = vld [vmem:[%s470] sm:$0xff]
  %vm472 = vcmask 261120
  %s473 = scalar_lea.vmem %s1, 705
  %474 = vst.msk [vmem:[%s473] sm:$0xff] %vm472, %v471
  %s475 = scalar_lea.vmem %s0, 760
  %v476 = vld [vmem:[%s475] sm:$0x7f]
  %vm477 = vcmask 261120
  %s478 = scalar_lea.vmem %s1, 713
  %479 = vst.msk [vmem:[%s478] sm:$0x7f] %vm477, %v476
  %s480 = scalar_lea.vmem %s0, 768
  %v481 = vld [vmem:[%s480] sm:$0xff]
  %vm482 = vcmask 261120
  %s483 = scalar_lea.vmem %s1, 720
  %484 = vst.msk [vmem:[%s483] sm:$0xff] %vm482, %v481
  %s485 = scalar_lea.vmem %s0, 776
  %v486 = vld [vmem:[%s485] sm:$0x7f]
  %vm487 = vcmask 261120
  %s488 = scalar_lea.vmem %s1, 728
  %489 = vst.msk [vmem:[%s488] sm:$0x7f] %vm487, %v486
  %s490 = scalar_lea.vmem %s0, 784
  %v491 = vld [vmem:[%s490] sm:$0xff]
  %vm492 = vcmask 261120
  %s493 = scalar_lea.vmem %s1, 735
  %494 = vst.msk [vmem:[%s493] sm:$0xff] %vm492, %v491
  %s495 = scalar_lea.vmem %s0, 792
  %v496 = vld [vmem:[%s495] sm:$0x7f]
  %vm497 = vcmask 261120
  %s498 = scalar_lea.vmem %s1, 743
  %499 = vst.msk [vmem:[%s498] sm:$0x7f] %vm497, %v496
  %s500 = scalar_lea.vmem %s0, 800
  %v501 = vld [vmem:[%s500] sm:$0xff]
  %vm502 = vcmask 261120
  %s503 = scalar_lea.vmem %s1, 750
  %504 = vst.msk [vmem:[%s503] sm:$0xff] %vm502, %v501
  %s505 = scalar_lea.vmem %s0, 808
  %v506 = vld [vmem:[%s505] sm:$0x7f]
  %vm507 = vcmask 261120
  %s508 = scalar_lea.vmem %s1, 758
  %509 = vst.msk [vmem:[%s508] sm:$0x7f] %vm507, %v506
  %s510 = scalar_lea.vmem %s0, 816
  %v511 = vld [vmem:[%s510] sm:$0xff]
  %vm512 = vcmask 261120
  %s513 = scalar_lea.vmem %s1, 765
  %514 = vst.msk [vmem:[%s513] sm:$0xff] %vm512, %v511
  %s515 = scalar_lea.vmem %s0, 824
  %v516 = vld [vmem:[%s515] sm:$0x7f]
  %vm517 = vcmask 261120
  %s518 = scalar_lea.vmem %s1, 773
  %519 = vst.msk [vmem:[%s518] sm:$0x7f] %vm517, %v516
  %s520 = scalar_lea.vmem %s0, 832
  %v521 = vld [vmem:[%s520] sm:$0xff]
  %vm522 = vcmask 261120
  %s523 = scalar_lea.vmem %s1, 780
  %524 = vst.msk [vmem:[%s523] sm:$0xff] %vm522, %v521
  %s525 = scalar_lea.vmem %s0, 840
  %v526 = vld [vmem:[%s525] sm:$0x7f]
  %vm527 = vcmask 261120
  %s528 = scalar_lea.vmem %s1, 788
  %529 = vst.msk [vmem:[%s528] sm:$0x7f] %vm527, %v526
  %s530 = scalar_lea.vmem %s0, 848
  %v531 = vld [vmem:[%s530] sm:$0xff]
  %vm532 = vcmask 261120
  %s533 = scalar_lea.vmem %s1, 795
  %534 = vst.msk [vmem:[%s533] sm:$0xff] %vm532, %v531
  %s535 = scalar_lea.vmem %s0, 856
  %v536 = vld [vmem:[%s535] sm:$0x7f]
  %vm537 = vcmask 261120
  %s538 = scalar_lea.vmem %s1, 803
  %539 = vst.msk [vmem:[%s538] sm:$0x7f] %vm537, %v536
  %s540 = scalar_lea.vmem %s0, 864
  %v541 = vld [vmem:[%s540] sm:$0xff]
  %vm542 = vcmask 261120
  %s543 = scalar_lea.vmem %s1, 810
  %544 = vst.msk [vmem:[%s543] sm:$0xff] %vm542, %v541
  %s545 = scalar_lea.vmem %s0, 872
  %v546 = vld [vmem:[%s545] sm:$0x7f]
  %vm547 = vcmask 261120
  %s548 = scalar_lea.vmem %s1, 818
  %549 = vst.msk [vmem:[%s548] sm:$0x7f] %vm547, %v546
  %s550 = scalar_lea.vmem %s0, 880
  %v551 = vld [vmem:[%s550] sm:$0xff]
  %vm552 = vcmask 261120
  %s553 = scalar_lea.vmem %s1, 825
  %554 = vst.msk [vmem:[%s553] sm:$0xff] %vm552, %v551
  %s555 = scalar_lea.vmem %s0, 888
  %v556 = vld [vmem:[%s555] sm:$0x7f]
  %vm557 = vcmask 261120
  %s558 = scalar_lea.vmem %s1, 833
  %559 = vst.msk [vmem:[%s558] sm:$0x7f] %vm557, %v556

// kernel: three_deep_net_forward.1
$region0: #{three_deep_net_forward.1}
  #allocation0 [shape = 'u32[]', space=smem, size = 0x4, offset = 0x4, fixed_abs, tag = 'smem constant byte address 0x4 - core index']
  #allocation1 [shape = 'u32[72,128]{1,0:T(1,128)}', space=vmem, size = 0x9000, scoped, tag = 'internal scratch']
  %s0 = inlined_call_operand.vmem [shape: f32[4,7,120], index: 0, kind: input, shape index: {}]
  %s1 = inlined_call_operand.vmem [shape: f32[2,32,7], index: 1, kind: input, shape index: {}]
  %s2 = inlined_call_operand.vmem [shape: f32[2,32,1], index: 2, kind: input, shape index: {}]
  %s3 = inlined_call_operand.vmem [shape: f32[2,1,32], index: 3, kind: input, shape index: {}]
  %s4 = inlined_call_operand.vmem [shape: f32[4,128,7], index: 4, kind: input, shape index: {}]
  %s5 = inlined_call_operand.vmem [shape: f32[128,1], index: 5, kind: input, shape index: {}]
  %s6 = inlined_call_operand.vmem [shape: f32[7,32,120], index: 6, kind: input, shape index: {}]
  %s7 = inlined_call_operand.vmem [shape: f32[32,1], index: 7, kind: input, shape index: {}]
  %s8 = inlined_call_operand.vmem [shape: f32[15,32,32], index: 8, kind: input, shape index: {}]
  %s9 = inlined_call_operand.vmem [shape: f32[32,32], index: 9, kind: input, shape index: {}]
  %s10 = inlined_call_operand.vmem [shape: f32[32,1], index: 10, kind: input, shape index: {}]
  %s11 = inlined_call_operand.vmem [shape: f32[1,32], index: 11, kind: input, shape index: {}]
  %s12 = inlined_call_operand.vmem [shape: f32[1,8], index: 12, kind: input, shape index: {}]
  %s13 = inlined_call_operand.hbm [shape: f32[1,8], index: 13, kind: output, shape index: {}]
  %s14 = sld [smem:[#allocation0]]
  $region62: #{three_deep_net_forward.1} parent=0
    _
  %s16 = ssub.s32 1, %s14
  %s17 = scalar_select 0, %s16, %s14
  $region1: #{three_deep_net_forward.1} parent=0
    #allocation2 [shape = 'u8[512]{0}', space=vmem, size = 0x400, scoped, tag = 'output window, operand 0, single buffered']
    #allocation3 [shape = 's32[1]{0}', space=sflag, size = 0x4, scoped, tag = 'scoped memory for three_deep_net_forward.1']
    %18 = vsyncpa [#allocation3], 0
    // Predicated region
    $region2: #{three_deep_net_forward.1} parent=1 // pred_check
      _
    $region3: #{three_deep_net_forward.1} parent=1 // pred_check_branch
      %20 = sbr.rel (0) target = $region5
    $region4: #{three_deep_net_forward.1} parent=1 // pred_region
      _
    $region5: #{three_deep_net_forward.1} parent=1 // pred_fallthru
      _
    // Predicated region
    $region6: #{three_deep_net_forward.1} parent=1 // pred_check
      _
    $region7: #{three_deep_net_forward.1} parent=1 // pred_check_branch
      %22 = sbr.rel (0) target = $region9
    $region8: #{three_deep_net_forward.1} parent=1 // pred_region
      _
    $region9: #{three_deep_net_forward.1} parent=1 // pred_fallthru
      _
    // Predicated region
    $region10: #{three_deep_net_forward.1} parent=1 // pred_check
      _
    $region11: #{three_deep_net_forward.1} parent=1 // pred_check_branch
      %24 = sbr.rel (0) target = $region13
    $region12: #{three_deep_net_forward.1} parent=1 // pred_region
      _
    $region13: #{three_deep_net_forward.1} parent=1 // pred_fallthru
      _
    // Predicated region
    $region14: #{three_deep_net_forward.1} parent=1 // pred_check
      _
    $region15: #{three_deep_net_forward.1} parent=1 // pred_check_branch
      %26 = sbr.rel (0) target = $region17
    $region16: #{three_deep_net_forward.1} parent=1 // pred_region
      _
    $region17: #{three_deep_net_forward.1} parent=1 // pred_fallthru
      _
    // Predicated region
    $region18: #{three_deep_net_forward.1} parent=1 // pred_check
      _
    $region19: #{three_deep_net_forward.1} parent=1 // pred_check_branch
      %28 = sbr.rel (0) target = $region21
    $region20: #{three_deep_net_forward.1} parent=1 // pred_region
      _
    $region21: #{three_deep_net_forward.1} parent=1 // pred_fallthru
      _
    // Predicated region
    $region22: #{three_deep_net_forward.1} parent=1 // pred_check
      _
    $region23: #{three_deep_net_forward.1} parent=1 // pred_check_branch
      %30 = sbr.rel (0) target = $region25
    $region24: #{three_deep_net_forward.1} parent=1 // pred_region
      _
    $region25: #{three_deep_net_forward.1} parent=1 // pred_fallthru
      _
    // Predicated region
    $region26: #{three_deep_net_forward.1} parent=1 // pred_check
      _
    $region27: #{three_deep_net_forward.1} parent=1 // pred_check_branch
      %32 = sbr.rel (0) target = $region29
    $region28: #{three_deep_net_forward.1} parent=1 // pred_region
      _
    $region29: #{three_deep_net_forward.1} parent=1 // pred_fallthru
      _
    // Predicated region
    $region30: #{three_deep_net_forward.1} parent=1 // pred_check
      _
    $region31: #{three_deep_net_forward.1} parent=1 // pred_check_branch
      %34 = sbr.rel (0) target = $region33
    $region32: #{three_deep_net_forward.1} parent=1 // pred_region
      _
    $region33: #{three_deep_net_forward.1} parent=1 // pred_fallthru
      _
    // Predicated region
    $region34: #{three_deep_net_forward.1} parent=1 // pred_check
      _
    $region35: #{three_deep_net_forward.1} parent=1 // pred_check_branch
      %36 = sbr.rel (0) target = $region37
    $region36: #{three_deep_net_forward.1} parent=1 // pred_region
      _
    $region37: #{three_deep_net_forward.1} parent=1 // pred_fallthru
      _
    // Predicated region
    $region38: #{three_deep_net_forward.1} parent=1 // pred_check
      _
    $region39: #{three_deep_net_forward.1} parent=1 // pred_check_branch
      %38 = sbr.rel (0) target = $region41
    $region40: #{three_deep_net_forward.1} parent=1 // pred_region
      _
    $region41: #{three_deep_net_forward.1} parent=1 // pred_fallthru
      _
    // Predicated region
    $region42: #{three_deep_net_forward.1} parent=1 // pred_check
      _
    $region43: #{three_deep_net_forward.1} parent=1 // pred_check_branch
      %40 = sbr.rel (0) target = $region45
    $region44: #{three_deep_net_forward.1} parent=1 // pred_region
      _
    $region45: #{three_deep_net_forward.1} parent=1 // pred_fallthru
      _
    // Predicated region
    $region46: #{three_deep_net_forward.1} parent=1 // pred_check
      _
    $region47: #{three_deep_net_forward.1} parent=1 // pred_check_branch
      %42 = sbr.rel (0) target = $region49
    $region48: #{three_deep_net_forward.1} parent=1 // pred_region
      _
    $region49: #{three_deep_net_forward.1} parent=1 // pred_fallthru
      _
    // Predicated region
    $region50: #{three_deep_net_forward.1} parent=1 // pred_check
      _
    $region51: #{three_deep_net_forward.1} parent=1 // pred_check_branch
      %44 = sbr.rel (0) target = $region53
    $region52: #{three_deep_net_forward.1} parent=1 // pred_region
      _
    $region53: #{three_deep_net_forward.1} parent=1 // pred_fallthru
      _
    %v45 = vld [vmem:[%s12] sm:$0x1]
    %v46 = vlaneseq
    %v47 = vshrl.u32 %v46, 7
    %v48 = vadd.s32 %v47, 8
    %v49 = vadd.s32 %v47, 16
    %v50 = vadd.s32 %v47, 24
    %v51 = vadd.s32 %v47, 32
    %v52 = vadd.s32 %v47, 40
    %v53 = vadd.s32 %v47, 48
    %v54 = vadd.s32 %v47, 56
    %v55 = vadd.s32 %v47, 64
    %v56 = vadd.s32 %v47, 72
    %v57 = vadd.s32 %v47, 80
    %v58 = vadd.s32 %v47, 88
    %v59 = vadd.s32 %v47, 96
    %v60 = vadd.s32 %v47, 104
    %v61 = vadd.s32 %v47, 112
    %v62 = vlaneseq
    %v63 = vand.u32 %v62, 127
    %v64 = vmul.u32 %v63, 15
    %vm65 = vcmp.ge.s32.totalorder %v47, %v64
    %vm66 = vcmp.ge.s32.totalorder %v48, %v64
    %vm67 = vcmp.ge.s32.totalorder %v49, %v64
    %vm68 = vcmp.ge.s32.totalorder %v50, %v64
    %vm69 = vcmp.ge.s32.totalorder %v51, %v64
    %vm70 = vcmp.ge.s32.totalorder %v52, %v64
    %vm71 = vcmp.ge.s32.totalorder %v53, %v64
    %vm72 = vcmp.ge.s32.totalorder %v54, %v64
    %vm73 = vcmp.ge.s32.totalorder %v55, %v64
    %vm74 = vcmp.ge.s32.totalorder %v56, %v64
    %vm75 = vcmp.ge.s32.totalorder %v57, %v64
    %vm76 = vcmp.ge.s32.totalorder %v58, %v64
    %vm77 = vcmp.ge.s32.totalorder %v59, %v64
    %vm78 = vcmp.ge.s32.totalorder %v60, %v64
    %vm79 = vcmp.ge.s32.totalorder %v61, %v64
    %v80 = vadd.s32 %v64, 15
    %vm81 = vcmp.lt.s32.totalorder %v47, %v80
    %vm82 = vcmp.lt.s32.totalorder %v48, %v80
    %vm83 = vcmp.lt.s32.totalorder %v49, %v80
    %vm84 = vcmp.lt.s32.totalorder %v50, %v80
    %vm85 = vcmp.lt.s32.totalorder %v51, %v80
    %vm86 = vcmp.lt.s32.totalorder %v52, %v80
    %vm87 = vcmp.lt.s32.totalorder %v53, %v80
    %vm88 = vcmp.lt.s32.totalorder %v54, %v80
    %vm89 = vcmp.lt.s32.totalorder %v55, %v80
    %vm90 = vcmp.lt.s32.totalorder %v56, %v80
    %vm91 = vcmp.lt.s32.totalorder %v57, %v80
    %vm92 = vcmp.lt.s32.totalorder %v58, %v80
    %vm93 = vcmp.lt.s32.totalorder %v59, %v80
    %vm94 = vcmp.lt.s32.totalorder %v60, %v80
    %vm95 = vcmp.lt.s32.totalorder %v61, %v80
    %vm96 = vmand %vm65, %vm81
    %vm97 = vmand %vm66, %vm82
    %vm98 = vmand %vm67, %vm83
    %vm99 = vmand %vm68, %vm84
    %vm100 = vmand %vm69, %vm85
    %vm101 = vmand %vm70, %vm86
    %vm102 = vmand %vm71, %vm87
    %vm103 = vmand %vm72, %vm88
    %vm104 = vmand %vm73, %vm89
    %vm105 = vmand %vm74, %vm90
    %vm106 = vmand %vm75, %vm91
    %vm107 = vmand %vm76, %vm92
    %vm108 = vmand %vm77, %vm93
    %vm109 = vmand %vm78, %vm94
    %vm110 = vmand %vm79, %vm95
    %v111 = vsel %vm96, 1, 0
    %v112 = vsel %vm97, 1, 0
    %v113 = vsel %vm98, 1, 0
    %v114 = vsel %vm99, 1, 0
    %v115 = vsel %vm100, 1, 0
    %v116 = vsel %vm101, 1, 0
    %v117 = vsel %vm102, 1, 0
    %v118 = vsel %vm103, 1, 0
    %v119 = vsel %vm104, 1, 0
    %v120 = vsel %vm105, 1, 0
    %v121 = vsel %vm106, 1, 0
    %v122 = vsel %vm107, 1, 0
    %v123 = vsel %vm108, 1, 0
    %v124 = vsel %vm109, 1, 0
    %v125 = vsel %vm110, 1, 0
    %v126 = vcvt.s32.f32 %v111
    %v127 = vcvt.s32.f32 %v112
    %v128 = vcvt.s32.f32 %v113
    %v129 = vcvt.s32.f32 %v114
    %v130 = vcvt.s32.f32 %v115
    %v131 = vcvt.s32.f32 %v116
    %v132 = vcvt.s32.f32 %v117
    %v133 = vcvt.s32.f32 %v118
    %v134 = vcvt.s32.f32 %v119
    %v135 = vcvt.s32.f32 %v120
    %v136 = vcvt.s32.f32 %v121
    %v137 = vcvt.s32.f32 %v122
    %v138 = vcvt.s32.f32 %v123
    %v139 = vcvt.s32.f32 %v124
    %v140 = vcvt.s32.f32 %v125
    %v141 = vld [vmem:[%s0] sm:$0x7f]
    %v142 = vld [vmem:[%s1] sm:$0xff]
    %v143 = vld [vmem:[%s1 + $0x8] sm:$0xff]
    %v144 = vld [vmem:[%s1 + $0x10] sm:$0xff]
    %v145 = vld [vmem:[%s1 + $0x18] sm:$0xff]
    %v146 = vld [vmem:[%s2] sm:$0xff]
    %v147 = vld [vmem:[%s2 + $0x8] sm:$0xff]
    %v148 = vld [vmem:[%s2 + $0x10] sm:$0xff]
    %v149 = vld [vmem:[%s2 + $0x18] sm:$0xff]
    %151 = vset.pattern.permute.xlu0 0
    %152 = vperm.xlu0 %151, %v146
    %v153 = vpop.permute.xlu0 %152
    %156 = vset.pattern.permute.xlu0 0
    %157 = vperm.xlu0 %156, %v147
    %v158 = vpop.permute.xlu0 %157
    %161 = vset.pattern.permute.xlu0 0
    %162 = vperm.xlu0 %161, %v148
    %v163 = vpop.permute.xlu0 %162
    %166 = vset.pattern.permute.xlu0 0
    %167 = vperm.xlu0 %166, %v149
    %v168 = vpop.permute.xlu0 %167
    %vm170 = vcmask 56320
    %v172 = vsel %vm170, %v142, 0
    %v175 = vsel %vm170, %v143, 0
    %v178 = vsel %vm170, %v144, 0
    %v181 = vsel %vm170, %v145, 0
    %vm183 = vcmask 1046528
    %v185 = vsel %vm183, %v141, 0
    %187 = vmatpush.msra.mxu0 0.0
    %188 = vmatpush.msra.mxu0 0.0
    %189 = vmatpush.msra.mxu0 0.0
    %190 = vmatpush.msra.mxu0 0.0
    %191 = vmatpush.msra.mxu0 0.0
    %192 = vmatpush.msra.mxu0 0.0
    %193 = vmatpush.msra.mxu0 0.0
    %194 = vmatpush.msra.mxu0 0.0
    %195 = vmatpush.msra.mxu0 0.0
    %196 = vmatpush.msra.mxu0 0.0
    %197 = vmatpush.msra.mxu0 0.0
    %198 = vmatpush.msra.mxu0 0.0
    %199 = vmatpush.msra.mxu0 0.0
    %200 = vmatpush.msra.mxu0 0.0
    %201 = vmatpush.msra.mxu0 0.0
    %202 = vmatpush.msra.mxu0 %v185
    %203 = vmatmul.f32.gmra.mxu0 %v172
    %v204 = vpop.f32.mrf.mxu0
    %v205 = vadd.f32 %v153, %v204
    %206 = vmatmul.f32.gmra.mxu0 %v175
    %v207 = vpop.f32.mrf.mxu0
    %v208 = vadd.f32 %v158, %v207
    %209 = vmatmul.f32.gmra.mxu0 %v178
    %v210 = vpop.f32.mrf.mxu0
    %v211 = vadd.f32 %v163, %v210
    %212 = vmatmul.f32.gmra.mxu0 %v181
    %v213 = vpop.f32.mrf.mxu0
    %v214 = vadd.f32 %v168, %v213
    %215 = vdwg.mxu0
    %v216 = vmax.f32 %v205, 0.0
    %v217 = vmax.f32 %v208, 0.0
    %v218 = vmax.f32 %v211, 0.0
    %v219 = vmax.f32 %v214, 0.0
    %s220 = scalar_lea.vmem %s1, 32
    %v221 = vld [vmem:[%s220] sm:$0xff]
    %v222 = vld [vmem:[%s220 + $0x8] sm:$0xff]
    %v223 = vld [vmem:[%s220 + $0x10] sm:$0xff]
    %v224 = vld [vmem:[%s220 + $0x18] sm:$0xff]
    %s225 = scalar_lea.vmem %s2, 32
    %v226 = vld [vmem:[%s225] sm:$0xff]
    %v227 = vld [vmem:[%s225 + $0x8] sm:$0xff]
    %v228 = vld [vmem:[%s225 + $0x10] sm:$0xff]
    %v229 = vld [vmem:[%s225 + $0x18] sm:$0xff]
    %231 = vset.pattern.permute.xlu0 0
    %232 = vperm.xlu0 %231, %v226
    %v233 = vpop.permute.xlu0 %232
    %236 = vset.pattern.permute.xlu0 0
    %237 = vperm.xlu0 %236, %v227
    %v238 = vpop.permute.xlu0 %237
    %241 = vset.pattern.permute.xlu0 0
    %242 = vperm.xlu0 %241, %v228
    %v243 = vpop.permute.xlu0 %242
    %246 = vset.pattern.permute.xlu0 0
    %247 = vperm.xlu0 %246, %v229
    %v248 = vpop.permute.xlu0 %247
    %v251 = vsel %vm170, %v221, 0
    %v254 = vsel %vm170, %v222, 0
    %v257 = vsel %vm170, %v223, 0
    %v260 = vsel %vm170, %v224, 0
    %262 = vmatpush.msra.mxu0 0.0
    %263 = vmatpush.msra.mxu0 0.0
    %264 = vmatpush.msra.mxu0 0.0
    %265 = vmatpush.msra.mxu0 0.0
    %266 = vmatpush.msra.mxu0 0.0
    %267 = vmatpush.msra.mxu0 0.0
    %268 = vmatpush.msra.mxu0 0.0
    %269 = vmatpush.msra.mxu0 0.0
    %270 = vmatpush.msra.mxu0 0.0
    %271 = vmatpush.msra.mxu0 0.0
    %272 = vmatpush.msra.mxu0 0.0
    %273 = vmatpush.msra.mxu0 0.0
    %274 = vmatpush.msra.mxu0 0.0
    %275 = vmatpush.msra.mxu0 0.0
    %276 = vmatpush.msra.mxu0 0.0
    %277 = vmatpush.msra.mxu0 %v185
    %278 = vmatmul.f32.gmra.mxu0 %v251
    %v279 = vpop.f32.mrf.mxu0
    %v280 = vadd.f32 %v233, %v279
    %281 = vmatmul.f32.gmra.mxu0 %v254
    %v282 = vpop.f32.mrf.mxu0
    %v283 = vadd.f32 %v238, %v282
    %284 = vmatmul.f32.gmra.mxu0 %v257
    %v285 = vpop.f32.mrf.mxu0
    %v286 = vadd.f32 %v243, %v285
    %287 = vmatmul.f32.gmra.mxu0 %v260
    %v288 = vpop.f32.mrf.mxu0
    %v289 = vadd.f32 %v248, %v288
    %290 = vdwg.mxu0
    %v291 = vmax.f32 %v280, 0.0
    %v292 = vmax.f32 %v283, 0.0
    %v293 = vmax.f32 %v286, 0.0
    %v294 = vmax.f32 %v289, 0.0
    %v295 = vld [vmem:[%s3] sm:$0x1]
    %297 = vset.pattern.permute.xlu0 0
    %298 = vperm.xlu0 %297, %v45
    %v299 = vpop.permute.xlu0 %298
    %v301 = vperm.slane %v299, 0
    %vm302 = vcmask 261120
    %v304 = vsel %vm302, %v295, 0
    %306 = vmatpush.msra.mxu0 0.0
    %307 = vmatpush.msra.mxu0 0.0
    %308 = vmatpush.msra.mxu0 0.0
    %309 = vmatpush.msra.mxu0 0.0
    %310 = vmatpush.msra.mxu0 0.0
    %311 = vmatpush.msra.mxu0 0.0
    %312 = vmatpush.msra.mxu0 0.0
    %313 = vmatpush.msra.mxu0 0.0
    %314 = vmatpush.msra.mxu0 0.0
    %315 = vmatpush.msra.mxu0 0.0
    %316 = vmatpush.msra.mxu0 0.0
    %317 = vmatpush.msra.mxu0 0.0
    %318 = vmatpush.msra.mxu0 %v219
    %319 = vmatpush.msra.mxu0 %v218
    %320 = vmatpush.msra.mxu0 %v217
    %321 = vmatpush.msra.mxu0 %v216
    %322 = vmatmul.f32.gmra.mxu0 %v304
    %v323 = vpop.f32.mrf.mxu0
    %v324 = vadd.f32 %v301, %v323
    %325 = vdwg.mxu0
    %s326 = scalar_lea.vmem %s3, 1
    %v327 = vld [vmem:[%s326] sm:$0x1]
    %328 = vset.pattern.permute.xlu0 1
    %329 = vperm.xlu0 %328, %v45
    %v330 = vpop.permute.xlu0 %329
    %v332 = vperm.slane %v330, 0
    %v334 = vsel %vm302, %v327, 0
    %336 = vmatpush.msra.mxu0 0.0
    %337 = vmatpush.msra.mxu0 0.0
    %338 = vmatpush.msra.mxu0 0.0
    %339 = vmatpush.msra.mxu0 0.0
    %340 = vmatpush.msra.mxu0 0.0
    %341 = vmatpush.msra.mxu0 0.0
    %342 = vmatpush.msra.mxu0 0.0
    %343 = vmatpush.msra.mxu0 0.0
    %344 = vmatpush.msra.mxu0 0.0
    %345 = vmatpush.msra.mxu0 0.0
    %346 = vmatpush.msra.mxu0 0.0
    %347 = vmatpush.msra.mxu0 0.0
    %348 = vmatpush.msra.mxu0 %v294
    %349 = vmatpush.msra.mxu0 %v293
    %350 = vmatpush.msra.mxu0 %v292
    %351 = vmatpush.msra.mxu0 %v291
    %352 = vmatmul.f32.gmra.mxu0 %v334
    %v353 = vpop.f32.mrf.mxu0
    %v354 = vadd.f32 %v332, %v353
    %355 = vdwg.mxu0
    %v356 = vmul.f32 %v324, 0.5
    %v357 = vtanh.pop %v356
    %v358 = vadd.f32 %v357, 1.0
    %v359 = vmul.f32 %v358, 0.5
    %v360 = vmul.f32 %v354, 0.5
    %v361 = vtanh.pop %v360
    %v362 = vadd.f32 %v361, 1.0
    %v363 = vmul.f32 %v362, 0.5
    %vm364 = vcmp.lt.s32.totalorder %v47, 6
    %v365 = vperm.slane %v359, 0
    %v366 = vperm.slane %v363, 0
    %v367 = vsel %vm364, %v365, %v366
    %v368 = vmul.f32 %v141, %v367
    %v369 = vld [vmem:[%s4] sm:$0xff]
    %v370 = vld [vmem:[%s4 + $0x8] sm:$0xff]
    %v371 = vld [vmem:[%s4 + $0x10] sm:$0xff]
    %v372 = vld [vmem:[%s4 + $0x18] sm:$0xff]
    %v373 = vld [vmem:[%s4 + $0x20] sm:$0xff]
    %v374 = vld [vmem:[%s4 + $0x28] sm:$0xff]
    %v375 = vld [vmem:[%s4 + $0x30] sm:$0xff]
    %v376 = vld [vmem:[%s4 + $0x38] sm:$0xff]
    %v377 = vld [vmem:[%s4 + $0x40] sm:$0xff]
    %v378 = vld [vmem:[%s4 + $0x48] sm:$0xff]
    %v379 = vld [vmem:[%s4 + $0x50] sm:$0xff]
    %v380 = vld [vmem:[%s4 + $0x58] sm:$0xff]
    %v381 = vld [vmem:[%s4 + $0x60] sm:$0xff]
    %v382 = vld [vmem:[%s4 + $0x68] sm:$0xff]
    %v383 = vld [vmem:[%s4 + $0x70] sm:$0xff]
    %v384 = vld [vmem:[%s4 + $0x78] sm:$0xff]
    %v385 = vld [vmem:[%s6] sm:$0xff]
    %v386 = vld [vmem:[%s6 + $0x8] sm:$0xff]
    %v387 = vld [vmem:[%s6 + $0x10] sm:$0xff]
    %v388 = vld [vmem:[%s6 + $0x18] sm:$0xff]
    %v389 = vperm.slane %v368, 0
    %v390 = vmul.f32 %v385, %v389
    %v391 = vmul.f32 %v386, %v389
    %v392 = vmul.f32 %v387, %v389
    %v393 = vmul.f32 %v388, %v389
    %s394 = scalar_lea.vmem %s6, 32
    %v395 = vld [vmem:[%s394] sm:$0xff]
    %v396 = vld [vmem:[%s394 + $0x8] sm:$0xff]
    %v397 = vld [vmem:[%s394 + $0x10] sm:$0xff]
    %v398 = vld [vmem:[%s394 + $0x18] sm:$0xff]
    %v399 = vperm.slane %v368, 1
    %v400 = vmul.f32 %v395, %v399
    %v401 = vmul.f32 %v396, %v399
    %v402 = vmul.f32 %v397, %v399
    %v403 = vmul.f32 %v398, %v399
    %v404 = vadd.f32 %v390, %v400
    %v405 = vadd.f32 %v391, %v401
    %v406 = vadd.f32 %v392, %v402
    %v407 = vadd.f32 %v393, %v403
    %s408 = scalar_lea.vmem %s6, 64
    %v409 = vld [vmem:[%s408] sm:$0xff]
    %v410 = vld [vmem:[%s408 + $0x8] sm:$0xff]
    %v411 = vld [vmem:[%s408 + $0x10] sm:$0xff]
    %v412 = vld [vmem:[%s408 + $0x18] sm:$0xff]
    %v413 = vperm.slane %v368, 2
    %v414 = vmul.f32 %v409, %v413
    %v415 = vmul.f32 %v410, %v413
    %v416 = vmul.f32 %v411, %v413
    %v417 = vmul.f32 %v412, %v413
    %v418 = vadd.f32 %v404, %v414
    %v419 = vadd.f32 %v405, %v415
    %v420 = vadd.f32 %v406, %v416
    %v421 = vadd.f32 %v407, %v417
    %s422 = scalar_lea.vmem %s6, 96
    %v423 = vld [vmem:[%s422] sm:$0xff]
    %v424 = vld [vmem:[%s422 + $0x8] sm:$0xff]
    %v425 = vld [vmem:[%s422 + $0x10] sm:$0xff]
    %v426 = vld [vmem:[%s422 + $0x18] sm:$0xff]
    %v427 = vperm.slane %v368, 3
    %v428 = vmul.f32 %v423, %v427
    %v429 = vmul.f32 %v424, %v427
    %v430 = vmul.f32 %v425, %v427
    %v431 = vmul.f32 %v426, %v427
    %v432 = vadd.f32 %v418, %v428
    %v433 = vadd.f32 %v419, %v429
    %v434 = vadd.f32 %v420, %v430
    %v435 = vadd.f32 %v421, %v431
    %s436 = scalar_lea.vmem %s6, 128
    %v437 = vld [vmem:[%s436] sm:$0xff]
    %v438 = vld [vmem:[%s436 + $0x8] sm:$0xff]
    %v439 = vld [vmem:[%s436 + $0x10] sm:$0xff]
    %v440 = vld [vmem:[%s436 + $0x18] sm:$0xff]
    %v441 = vperm.slane %v368, 4
    %v442 = vmul.f32 %v437, %v441
    %v443 = vmul.f32 %v438, %v441
    %v444 = vmul.f32 %v439, %v441
    %v445 = vmul.f32 %v440, %v441
    %v446 = vadd.f32 %v432, %v442
    %v447 = vadd.f32 %v433, %v443
    %v448 = vadd.f32 %v434, %v444
    %v449 = vadd.f32 %v435, %v445
    %s450 = scalar_lea.vmem %s6, 160
    %v451 = vld [vmem:[%s450] sm:$0xff]
    %v452 = vld [vmem:[%s450 + $0x8] sm:$0xff]
    %v453 = vld [vmem:[%s450 + $0x10] sm:$0xff]
    %v454 = vld [vmem:[%s450 + $0x18] sm:$0xff]
    %v455 = vperm.slane %v368, 5
    %v456 = vmul.f32 %v451, %v455
    %v457 = vmul.f32 %v452, %v455
    %v458 = vmul.f32 %v453, %v455
    %v459 = vmul.f32 %v454, %v455
    %v460 = vadd.f32 %v446, %v456
    %v461 = vadd.f32 %v447, %v457
    %v462 = vadd.f32 %v448, %v458
    %v463 = vadd.f32 %v449, %v459
    %s464 = scalar_lea.vmem %s6, 192
    %v465 = vld [vmem:[%s464] sm:$0xff]
    %v466 = vld [vmem:[%s464 + $0x8] sm:$0xff]
    %v467 = vld [vmem:[%s464 + $0x10] sm:$0xff]
    %v468 = vld [vmem:[%s464 + $0x18] sm:$0xff]
    %v469 = vperm.slane %v368, 6
    %v470 = vmul.f32 %v465, %v469
    %v471 = vmul.f32 %v466, %v469
    %v472 = vmul.f32 %v467, %v469
    %v473 = vmul.f32 %v468, %v469
    %v474 = vadd.f32 %v460, %v470
    %v475 = vadd.f32 %v461, %v471
    %v476 = vadd.f32 %v462, %v472
    %v477 = vadd.f32 %v463, %v473
    %vm478 = vcmask 982016
    %v480 = vsel %vm478, %v474, 0
    %v483 = vsel %vm478, %v475, 0
    %v486 = vsel %vm478, %v476, 0
    %v489 = vsel %vm478, %v477, 0
    %491 = vmatpush.msra.mxu0 0.0
    %492 = vmatpush.msra.mxu0 %v140
    %493 = vmatpush.msra.mxu0 %v139
    %494 = vmatpush.msra.mxu0 %v138
    %495 = vmatpush.msra.mxu0 %v137
    %496 = vmatpush.msra.mxu0 %v136
    %497 = vmatpush.msra.mxu0 %v135
    %498 = vmatpush.msra.mxu0 %v134
    %499 = vmatpush.msra.mxu0 %v133
    %500 = vmatpush.msra.mxu0 %v132
    %501 = vmatpush.msra.mxu0 %v131
    %502 = vmatpush.msra.mxu0 %v130
    %503 = vmatpush.msra.mxu0 %v129
    %504 = vmatpush.msra.mxu0 %v128
    %505 = vmatpush.msra.mxu0 %v127
    %506 = vmatpush.msra.mxu0 %v126
    %507 = vmatmul.f32.gmra.mxu0 %v480
    %v508 = vpop.f32.mrf.mxu0
    %v509 = vadd.f32 0.0, %v508
    %510 = vmatmul.f32.gmra.mxu0 %v483
    %v511 = vpop.f32.mrf.mxu0
    %v512 = vadd.f32 0.0, %v511
    %513 = vmatmul.f32.gmra.mxu0 %v486
    %v514 = vpop.f32.mrf.mxu0
    %v515 = vadd.f32 0.0, %v514
    %516 = vmatmul.f32.gmra.mxu0 %v489
    %v517 = vpop.f32.mrf.mxu0
    %v518 = vadd.f32 0.0, %v517
    %519 = vdwg.mxu0
    %s520 = scalar_lea.vmem %s0, 8
    %v521 = vld [vmem:[%s520] sm:$0x7f]
    %v523 = vsel %vm183, %v521, 0
    %525 = vmatpush.msra.mxu0 0.0
    %526 = vmatpush.msra.mxu0 0.0
    %527 = vmatpush.msra.mxu0 0.0
    %528 = vmatpush.msra.mxu0 0.0
    %529 = vmatpush.msra.mxu0 0.0
    %530 = vmatpush.msra.mxu0 0.0
    %531 = vmatpush.msra.mxu0 0.0
    %532 = vmatpush.msra.mxu0 0.0
    %533 = vmatpush.msra.mxu0 0.0
    %534 = vmatpush.msra.mxu0 0.0
    %535 = vmatpush.msra.mxu0 0.0
    %536 = vmatpush.msra.mxu0 0.0
    %537 = vmatpush.msra.mxu0 0.0
    %538 = vmatpush.msra.mxu0 0.0
    %539 = vmatpush.msra.mxu0 0.0
    %540 = vmatpush.msra.mxu0 %v523
    %541 = vmatmul.f32.gmra.mxu0 %v172
    %v542 = vpop.f32.mrf.mxu0
    %v543 = vadd.f32 %v153, %v542
    %544 = vmatmul.f32.gmra.mxu0 %v175
    %v545 = vpop.f32.mrf.mxu0
    %v546 = vadd.f32 %v158, %v545
    %547 = vmatmul.f32.gmra.mxu0 %v178
    %v548 = vpop.f32.mrf.mxu0
    %v549 = vadd.f32 %v163, %v548
    %550 = vmatmul.f32.gmra.mxu0 %v181
    %v551 = vpop.f32.mrf.mxu0
    %v552 = vadd.f32 %v168, %v551
    %553 = vdwg.mxu0
    %v554 = vmax.f32 %v543, 0.0
    %v555 = vmax.f32 %v546, 0.0
    %v556 = vmax.f32 %v549, 0.0
    %v557 = vmax.f32 %v552, 0.0
    %558 = vmatpush.msra.mxu0 0.0
    %559 = vmatpush.msra.mxu0 0.0
    %560 = vmatpush.msra.mxu0 0.0
    %561 = vmatpush.msra.mxu0 0.0
    %562 = vmatpush.msra.mxu0 0.0
    %563 = vmatpush.msra.mxu0 0.0
    %564 = vmatpush.msra.mxu0 0.0
    %565 = vmatpush.msra.mxu0 0.0
    %566 = vmatpush.msra.mxu0 0.0
    %567 = vmatpush.msra.mxu0 0.0
    %568 = vmatpush.msra.mxu0 0.0
    %569 = vmatpush.msra.mxu0 0.0
    %570 = vmatpush.msra.mxu0 0.0
    %571 = vmatpush.msra.mxu0 0.0
    %572 = vmatpush.msra.mxu0 0.0
    %573 = vmatpush.msra.mxu0 %v523
    %574 = vmatmul.f32.gmra.mxu0 %v251
    %v575 = vpop.f32.mrf.mxu0
    %v576 = vadd.f32 %v233, %v575
    %577 = vmatmul.f32.gmra.mxu0 %v254
    %v578 = vpop.f32.mrf.mxu0
    %v579 = vadd.f32 %v238, %v578
    %580 = vmatmul.f32.gmra.mxu0 %v257
    %v581 = vpop.f32.mrf.mxu0
    %v582 = vadd.f32 %v243, %v581
    %583 = vmatmul.f32.gmra.mxu0 %v260
    %v584 = vpop.f32.mrf.mxu0
    %v585 = vadd.f32 %v248, %v584
    %586 = vdwg.mxu0
    %v587 = vmax.f32 %v576, 0.0
    %v588 = vmax.f32 %v579, 0.0
    %v589 = vmax.f32 %v582, 0.0
    %v590 = vmax.f32 %v585, 0.0
    %591 = vmatpush.msra.mxu0 0.0
    %592 = vmatpush.msra.mxu0 0.0
    %593 = vmatpush.msra.mxu0 0.0
    %594 = vmatpush.msra.mxu0 0.0
    %595 = vmatpush.msra.mxu0 0.0
    %596 = vmatpush.msra.mxu0 0.0
    %597 = vmatpush.msra.mxu0 0.0
    %598 = vmatpush.msra.mxu0 0.0
    %599 = vmatpush.msra.mxu0 0.0
    %600 = vmatpush.msra.mxu0 0.0
    %601 = vmatpush.msra.mxu0 0.0
    %602 = vmatpush.msra.mxu0 0.0
    %603 = vmatpush.msra.mxu0 %v557
    %604 = vmatpush.msra.mxu0 %v556
    %605 = vmatpush.msra.mxu0 %v555
    %606 = vmatpush.msra.mxu0 %v554
    %607 = vmatmul.f32.gmra.mxu0 %v304
    %v608 = vpop.f32.mrf.mxu0
    %v609 = vadd.f32 %v301, %v608
    %610 = vdwg.mxu0
    %611 = vmatpush.msra.mxu0 0.0
    %612 = vmatpush.msra.mxu0 0.0
    %613 = vmatpush.msra.mxu0 0.0
    %614 = vmatpush.msra.mxu0 0.0
    %615 = vmatpush.msra.mxu0 0.0
    %616 = vmatpush.msra.mxu0 0.0
    %617 = vmatpush.msra.mxu0 0.0
    %618 = vmatpush.msra.mxu0 0.0
    %619 = vmatpush.msra.mxu0 0.0
    %620 = vmatpush.msra.mxu0 0.0
    %621 = vmatpush.msra.mxu0 0.0
    %622 = vmatpush.msra.mxu0 0.0
    %623 = vmatpush.msra.mxu0 %v590
    %624 = vmatpush.msra.mxu0 %v589
    %625 = vmatpush.msra.mxu0 %v588
    %626 = vmatpush.msra.mxu0 %v587
    %627 = vmatmul.f32.gmra.mxu0 %v334
    %v628 = vpop.f32.mrf.mxu0
    %v629 = vadd.f32 %v332, %v628
    %630 = vdwg.mxu0
    %v631 = vmul.f32 %v609, 0.5
    %v632 = vtanh.pop %v631
    %v633 = vadd.f32 %v632, 1.0
    %v634 = vmul.f32 %v633, 0.5
    %v635 = vmul.f32 %v629, 0.5
    %v636 = vtanh.pop %v635
    %v637 = vadd.f32 %v636, 1.0
    %v638 = vmul.f32 %v637, 0.5
    %v639 = vperm.slane %v634, 0
    %v640 = vperm.slane %v638, 0
    %v641 = vsel %vm364, %v639, %v640
    %v642 = vmul.f32 %v521, %v641
    %s643 = scalar_lea.vmem %s4, 128
    %v644 = vld [vmem:[%s643] sm:$0xff]
    %v645 = vld [vmem:[%s643 + $0x8] sm:$0xff]
    %v646 = vld [vmem:[%s643 + $0x10] sm:$0xff]
    %v647 = vld [vmem:[%s643 + $0x18] sm:$0xff]
    %v648 = vld [vmem:[%s643 + $0x20] sm:$0xff]
    %v649 = vld [vmem:[%s643 + $0x28] sm:$0xff]
    %v650 = vld [vmem:[%s643 + $0x30] sm:$0xff]
    %v651 = vld [vmem:[%s643 + $0x38] sm:$0xff]
    %v652 = vld [vmem:[%s643 + $0x40] sm:$0xff]
    %v653 = vld [vmem:[%s643 + $0x48] sm:$0xff]
    %v654 = vld [vmem:[%s643 + $0x50] sm:$0xff]
    %v655 = vld [vmem:[%s643 + $0x58] sm:$0xff]
    %v656 = vld [vmem:[%s643 + $0x60] sm:$0xff]
    %v657 = vld [vmem:[%s643 + $0x68] sm:$0xff]
    %v658 = vld [vmem:[%s643 + $0x70] sm:$0xff]
    %v659 = vld [vmem:[%s643 + $0x78] sm:$0xff]
    %v661 = vsel %vm170, %v644, 0
    %v664 = vsel %vm170, %v645, 0
    %v667 = vsel %vm170, %v646, 0
    %v670 = vsel %vm170, %v647, 0
    %v673 = vsel %vm170, %v648, 0
    %v676 = vsel %vm170, %v649, 0
    %v679 = vsel %vm170, %v650, 0
    %v682 = vsel %vm170, %v651, 0
    %v685 = vsel %vm170, %v652, 0
    %v688 = vsel %vm170, %v653, 0
    %v691 = vsel %vm170, %v654, 0
    %v694 = vsel %vm170, %v655, 0
    %v697 = vsel %vm170, %v656, 0
    %v700 = vsel %vm170, %v657, 0
    %v703 = vsel %vm170, %v658, 0
    %v706 = vsel %vm170, %v659, 0
    %v709 = vsel %vm183, %v642, 0
    %711 = vmatpush.msra.mxu0 0.0
    %712 = vmatpush.msra.mxu0 0.0
    %713 = vmatpush.msra.mxu0 0.0
    %714 = vmatpush.msra.mxu0 0.0
    %715 = vmatpush.msra.mxu0 0.0
    %716 = vmatpush.msra.mxu0 0.0
    %717 = vmatpush.msra.mxu0 0.0
    %718 = vmatpush.msra.mxu0 0.0
    %719 = vmatpush.msra.mxu0 0.0
    %720 = vmatpush.msra.mxu0 0.0
    %721 = vmatpush.msra.mxu0 0.0
    %722 = vmatpush.msra.mxu0 0.0
    %723 = vmatpush.msra.mxu0 0.0
    %724 = vmatpush.msra.mxu0 0.0
    %725 = vmatpush.msra.mxu0 0.0
    %726 = vmatpush.msra.mxu0 %v709
    %727 = vmatmul.f32.gmra.mxu0 %v661
    %v728 = vpop.f32.mrf.mxu0
    %v729 = vadd.f32 0.0, %v728
    %730 = vmatmul.f32.gmra.mxu0 %v664
    %v731 = vpop.f32.mrf.mxu0
    %v732 = vadd.f32 0.0, %v731
    %733 = vmatmul.f32.gmra.mxu0 %v667
    %v734 = vpop.f32.mrf.mxu0
    %v735 = vadd.f32 0.0, %v734
    %736 = vmatmul.f32.gmra.mxu0 %v670
    %v737 = vpop.f32.mrf.mxu0
    %v738 = vadd.f32 0.0, %v737
    %739 = vmatmul.f32.gmra.mxu0 %v673
    %v740 = vpop.f32.mrf.mxu0
    %v741 = vadd.f32 0.0, %v740
    %742 = vmatmul.f32.gmra.mxu0 %v676
    %v743 = vpop.f32.mrf.mxu0
    %v744 = vadd.f32 0.0, %v743
    %745 = vmatmul.f32.gmra.mxu0 %v679
    %v746 = vpop.f32.mrf.mxu0
    %v747 = vadd.f32 0.0, %v746
    %748 = vmatmul.f32.gmra.mxu0 %v682
    %v749 = vpop.f32.mrf.mxu0
    %v750 = vadd.f32 0.0, %v749
    %751 = vmatmul.f32.gmra.mxu0 %v685
    %v752 = vpop.f32.mrf.mxu0
    %v753 = vadd.f32 0.0, %v752
    %754 = vmatmul.f32.gmra.mxu0 %v688
    %v755 = vpop.f32.mrf.mxu0
    %v756 = vadd.f32 0.0, %v755
    %757 = vmatmul.f32.gmra.mxu0 %v691
    %v758 = vpop.f32.mrf.mxu0
    %v759 = vadd.f32 0.0, %v758
    %760 = vmatmul.f32.gmra.mxu0 %v694
    %v761 = vpop.f32.mrf.mxu0
    %v762 = vadd.f32 0.0, %v761
    %763 = vmatmul.f32.gmra.mxu0 %v697
    %v764 = vpop.f32.mrf.mxu0
    %v765 = vadd.f32 0.0, %v764
    %766 = vmatmul.f32.gmra.mxu0 %v700
    %v767 = vpop.f32.mrf.mxu0
    %v768 = vadd.f32 0.0, %v767
    %769 = vmatmul.f32.gmra.mxu0 %v703
    %v770 = vpop.f32.mrf.mxu0
    %v771 = vadd.f32 0.0, %v770
    %772 = vmatmul.f32.gmra.mxu0 %v706
    %v773 = vpop.f32.mrf.mxu0
    %v774 = vadd.f32 0.0, %v773
    %775 = vdwg.mxu0
    %v777 = vsel %vm170, %v369, 0
    %v780 = vsel %vm170, %v370, 0
    %v783 = vsel %vm170, %v371, 0
    %v786 = vsel %vm170, %v372, 0
    %v789 = vsel %vm170, %v373, 0
    %v792 = vsel %vm170, %v374, 0
    %v795 = vsel %vm170, %v375, 0
    %v798 = vsel %vm170, %v376, 0
    %v801 = vsel %vm170, %v377, 0
    %v804 = vsel %vm170, %v378, 0
    %v807 = vsel %vm170, %v379, 0
    %v810 = vsel %vm170, %v380, 0
    %v813 = vsel %vm170, %v381, 0
    %v816 = vsel %vm170, %v382, 0
    %v819 = vsel %vm170, %v383, 0
    %v822 = vsel %vm170, %v384, 0
    %v825 = vsel %vm183, %v368, 0
    %827 = vmatpush.msra.mxu0 0.0
    %828 = vmatpush.msra.mxu0 0.0
    %829 = vmatpush.msra.mxu0 0.0
    %830 = vmatpush.msra.mxu0 0.0
    %831 = vmatpush.msra.mxu0 0.0
    %832 = vmatpush.msra.mxu0 0.0
    %833 = vmatpush.msra.mxu0 0.0
    %834 = vmatpush.msra.mxu0 0.0
    %835 = vmatpush.msra.mxu0 0.0
    %836 = vmatpush.msra.mxu0 0.0
    %837 = vmatpush.msra.mxu0 0.0
    %838 = vmatpush.msra.mxu0 0.0
    %839 = vmatpush.msra.mxu0 0.0
    %840 = vmatpush.msra.mxu0 0.0
    %841 = vmatpush.msra.mxu0 0.0
    %842 = vmatpush.msra.mxu0 %v825
    %843 = vmatmul.f32.gmra.mxu0 %v777
    %v844 = vpop.f32.mrf.mxu0
    %v845 = vadd.f32 %v729, %v844
    %846 = vmatmul.f32.gmra.mxu0 %v780
    %v847 = vpop.f32.mrf.mxu0
    %v848 = vadd.f32 %v732, %v847
    %849 = vmatmul.f32.gmra.mxu0 %v783
    %v850 = vpop.f32.mrf.mxu0
    %v851 = vadd.f32 %v735, %v850
    %852 = vmatmul.f32.gmra.mxu0 %v786
    %v853 = vpop.f32.mrf.mxu0
    %v854 = vadd.f32 %v738, %v853
    %855 = vmatmul.f32.gmra.mxu0 %v789
    %v856 = vpop.f32.mrf.mxu0
    %v857 = vadd.f32 %v741, %v856
    %858 = vmatmul.f32.gmra.mxu0 %v792
    %v859 = vpop.f32.mrf.mxu0
    %v860 = vadd.f32 %v744, %v859
    %861 = vmatmul.f32.gmra.mxu0 %v795
    %v862 = vpop.f32.mrf.mxu0
    %v863 = vadd.f32 %v747, %v862
    %864 = vmatmul.f32.gmra.mxu0 %v798
    %v865 = vpop.f32.mrf.mxu0
    %v866 = vadd.f32 %v750, %v865
    %867 = vmatmul.f32.gmra.mxu0 %v801
    %v868 = vpop.f32.mrf.mxu0
    %v869 = vadd.f32 %v753, %v868
    %870 = vmatmul.f32.gmra.mxu0 %v804
    %v871 = vpop.f32.mrf.mxu0
    %v872 = vadd.f32 %v756, %v871
    %873 = vmatmul.f32.gmra.mxu0 %v807
    %v874 = vpop.f32.mrf.mxu0
    %v875 = vadd.f32 %v759, %v874
    %876 = vmatmul.f32.gmra.mxu0 %v810
    %v877 = vpop.f32.mrf.mxu0
    %v878 = vadd.f32 %v762, %v877
    %879 = vmatmul.f32.gmra.mxu0 %v813
    %v880 = vpop.f32.mrf.mxu0
    %v881 = vadd.f32 %v765, %v880
    %882 = vmatmul.f32.gmra.mxu0 %v816
    %v883 = vpop.f32.mrf.mxu0
    %v884 = vadd.f32 %v768, %v883
    %885 = vmatmul.f32.gmra.mxu0 %v819
    %v886 = vpop.f32.mrf.mxu0
    %v887 = vadd.f32 %v771, %v886
    %888 = vmatmul.f32.gmra.mxu0 %v822
    %v889 = vpop.f32.mrf.mxu0
    %v890 = vadd.f32 %v774, %v889
    %891 = vdwg.mxu0
    %v892 = vperm.slane %v642, 0
    %v893 = vmul.f32 %v385, %v892
    %v894 = vmul.f32 %v386, %v892
    %v895 = vmul.f32 %v387, %v892
    %v896 = vmul.f32 %v388, %v892
    %v897 = vperm.slane %v642, 1
    %v898 = vmul.f32 %v395, %v897
    %v899 = vmul.f32 %v396, %v897
    %v900 = vmul.f32 %v397, %v897
    %v901 = vmul.f32 %v398, %v897
    %v902 = vadd.f32 %v893, %v898
    %v903 = vadd.f32 %v894, %v899
    %v904 = vadd.f32 %v895, %v900
    %v905 = vadd.f32 %v896, %v901
    %v906 = vperm.slane %v642, 2
    %v907 = vmul.f32 %v409, %v906
    %v908 = vmul.f32 %v410, %v906
    %v909 = vmul.f32 %v411, %v906
    %v910 = vmul.f32 %v412, %v906
    %v911 = vadd.f32 %v902, %v907
    %v912 = vadd.f32 %v903, %v908
    %v913 = vadd.f32 %v904, %v909
    %v914 = vadd.f32 %v905, %v910
    %v915 = vperm.slane %v642, 3
    %v916 = vmul.f32 %v423, %v915
    %v917 = vmul.f32 %v424, %v915
    %v918 = vmul.f32 %v425, %v915
    %v919 = vmul.f32 %v426, %v915
    %v920 = vadd.f32 %v911, %v916
    %v921 = vadd.f32 %v912, %v917
    %v922 = vadd.f32 %v913, %v918
    %v923 = vadd.f32 %v914, %v919
    %v924 = vperm.slane %v642, 4
    %v925 = vmul.f32 %v437, %v924
    %v926 = vmul.f32 %v438, %v924
    %v927 = vmul.f32 %v439, %v924
    %v928 = vmul.f32 %v440, %v924
    %v929 = vadd.f32 %v920, %v925
    %v930 = vadd.f32 %v921, %v926
    %v931 = vadd.f32 %v922, %v927
    %v932 = vadd.f32 %v923, %v928
    %v933 = vperm.slane %v642, 5
    %v934 = vmul.f32 %v451, %v933
    %v935 = vmul.f32 %v452, %v933
    %v936 = vmul.f32 %v453, %v933
    %v937 = vmul.f32 %v454, %v933
    %v938 = vadd.f32 %v929, %v934
    %v939 = vadd.f32 %v930, %v935
    %v940 = vadd.f32 %v931, %v936
    %v941 = vadd.f32 %v932, %v937
    %v942 = vperm.slane %v642, 6
    %v943 = vmul.f32 %v465, %v942
    %v944 = vmul.f32 %v466, %v942
    %v945 = vmul.f32 %v467, %v942
    %v946 = vmul.f32 %v468, %v942
    %v947 = vadd.f32 %v938, %v943
    %v948 = vadd.f32 %v939, %v944
    %v949 = vadd.f32 %v940, %v945
    %v950 = vadd.f32 %v941, %v946
    %v952 = vsel %vm478, %v947, 0
    %v955 = vsel %vm478, %v948, 0
    %v958 = vsel %vm478, %v949, 0
    %v961 = vsel %vm478, %v950, 0
    %963 = vmatpush.msra.mxu0 0.0
    %964 = vmatpush.msra.mxu0 %v140
    %965 = vmatpush.msra.mxu0 %v139
    %966 = vmatpush.msra.mxu0 %v138
    %967 = vmatpush.msra.mxu0 %v137
    %968 = vmatpush.msra.mxu0 %v136
    %969 = vmatpush.msra.mxu0 %v135
    %970 = vmatpush.msra.mxu0 %v134
    %971 = vmatpush.msra.mxu0 %v133
    %972 = vmatpush.msra.mxu0 %v132
    %973 = vmatpush.msra.mxu0 %v131
    %974 = vmatpush.msra.mxu0 %v130
    %975 = vmatpush.msra.mxu0 %v129
    %976 = vmatpush.msra.mxu0 %v128
    %977 = vmatpush.msra.mxu0 %v127
    %978 = vmatpush.msra.mxu0 %v126
    %979 = vmatmul.f32.gmra.mxu0 %v952
    %v980 = vpop.f32.mrf.mxu0
    %v981 = vadd.f32 0.0, %v980
    %982 = vmatmul.f32.gmra.mxu0 %v955
    %v983 = vpop.f32.mrf.mxu0
    %v984 = vadd.f32 0.0, %v983
    %985 = vmatmul.f32.gmra.mxu0 %v958
    %v986 = vpop.f32.mrf.mxu0
    %v987 = vadd.f32 0.0, %v986
    %988 = vmatmul.f32.gmra.mxu0 %v961
    %v989 = vpop.f32.mrf.mxu0
    %v990 = vadd.f32 0.0, %v989
    %991 = vdwg.mxu0
    %v992 = vmax.f32 %v509, %v981
    %v993 = vmax.f32 %v512, %v984
    %v994 = vmax.f32 %v515, %v987
    %v995 = vmax.f32 %v518, %v990
    %s996 = scalar_lea.vmem %s0, 16
    %v997 = vld [vmem:[%s996] sm:$0x7f]
    %v999 = vsel %vm183, %v997, 0
    %1001 = vmatpush.msra.mxu0 0.0
    %1002 = vmatpush.msra.mxu0 0.0
    %1003 = vmatpush.msra.mxu0 0.0
    %1004 = vmatpush.msra.mxu0 0.0
    %1005 = vmatpush.msra.mxu0 0.0
    %1006 = vmatpush.msra.mxu0 0.0
    %1007 = vmatpush.msra.mxu0 0.0
    %1008 = vmatpush.msra.mxu0 0.0
    %1009 = vmatpush.msra.mxu0 0.0
    %1010 = vmatpush.msra.mxu0 0.0
    %1011 = vmatpush.msra.mxu0 0.0
    %1012 = vmatpush.msra.mxu0 0.0
    %1013 = vmatpush.msra.mxu0 0.0
    %1014 = vmatpush.msra.mxu0 0.0
    %1015 = vmatpush.msra.mxu0 0.0
    %1016 = vmatpush.msra.mxu0 %v999
    %1017 = vmatmul.f32.gmra.mxu0 %v172
    %v1018 = vpop.f32.mrf.mxu0
    %v1019 = vadd.f32 %v153, %v1018
    %1020 = vmatmul.f32.gmra.mxu0 %v175
    %v1021 = vpop.f32.mrf.mxu0
    %v1022 = vadd.f32 %v158, %v1021
    %1023 = vmatmul.f32.gmra.mxu0 %v178
    %v1024 = vpop.f32.mrf.mxu0
    %v1025 = vadd.f32 %v163, %v1024
    %1026 = vmatmul.f32.gmra.mxu0 %v181
    %v1027 = vpop.f32.mrf.mxu0
    %v1028 = vadd.f32 %v168, %v1027
    %1029 = vdwg.mxu0
    %v1030 = vmax.f32 %v1019, 0.0
    %v1031 = vmax.f32 %v1022, 0.0
    %v1032 = vmax.f32 %v1025, 0.0
    %v1033 = vmax.f32 %v1028, 0.0
    %1034 = vmatpush.msra.mxu0 0.0
    %1035 = vmatpush.msra.mxu0 0.0
    %1036 = vmatpush.msra.mxu0 0.0
    %1037 = vmatpush.msra.mxu0 0.0
    %1038 = vmatpush.msra.mxu0 0.0
    %1039 = vmatpush.msra.mxu0 0.0
    %1040 = vmatpush.msra.mxu0 0.0
    %1041 = vmatpush.msra.mxu0 0.0
    %1042 = vmatpush.msra.mxu0 0.0
    %1043 = vmatpush.msra.mxu0 0.0
    %1044 = vmatpush.msra.mxu0 0.0
    %1045 = vmatpush.msra.mxu0 0.0
    %1046 = vmatpush.msra.mxu0 0.0
    %1047 = vmatpush.msra.mxu0 0.0
    %1048 = vmatpush.msra.mxu0 0.0
    %1049 = vmatpush.msra.mxu0 %v999
    %1050 = vmatmul.f32.gmra.mxu0 %v251
    %v1051 = vpop.f32.mrf.mxu0
    %v1052 = vadd.f32 %v233, %v1051
    %1053 = vmatmul.f32.gmra.mxu0 %v254
    %v1054 = vpop.f32.mrf.mxu0
    %v1055 = vadd.f32 %v238, %v1054
    %1056 = vmatmul.f32.gmra.mxu0 %v257
    %v1057 = vpop.f32.mrf.mxu0
    %v1058 = vadd.f32 %v243, %v1057
    %1059 = vmatmul.f32.gmra.mxu0 %v260
    %v1060 = vpop.f32.mrf.mxu0
    %v1061 = vadd.f32 %v248, %v1060
    %1062 = vdwg.mxu0
    %v1063 = vmax.f32 %v1052, 0.0
    %v1064 = vmax.f32 %v1055, 0.0
    %v1065 = vmax.f32 %v1058, 0.0
    %v1066 = vmax.f32 %v1061, 0.0
    %1067 = vmatpush.msra.mxu0 0.0
    %1068 = vmatpush.msra.mxu0 0.0
    %1069 = vmatpush.msra.mxu0 0.0
    %1070 = vmatpush.msra.mxu0 0.0
    %1071 = vmatpush.msra.mxu0 0.0
    %1072 = vmatpush.msra.mxu0 0.0
    %1073 = vmatpush.msra.mxu0 0.0
    %1074 = vmatpush.msra.mxu0 0.0
    %1075 = vmatpush.msra.mxu0 0.0
    %1076 = vmatpush.msra.mxu0 0.0
    %1077 = vmatpush.msra.mxu0 0.0
    %1078 = vmatpush.msra.mxu0 0.0
    %1079 = vmatpush.msra.mxu0 %v1033
    %1080 = vmatpush.msra.mxu0 %v1032
    %1081 = vmatpush.msra.mxu0 %v1031
    %1082 = vmatpush.msra.mxu0 %v1030
    %1083 = vmatmul.f32.gmra.mxu0 %v304
    %v1084 = vpop.f32.mrf.mxu0
    %v1085 = vadd.f32 %v301, %v1084
    %1086 = vdwg.mxu0
    %1087 = vmatpush.msra.mxu0 0.0
    %1088 = vmatpush.msra.mxu0 0.0
    %1089 = vmatpush.msra.mxu0 0.0
    %1090 = vmatpush.msra.mxu0 0.0
    %1091 = vmatpush.msra.mxu0 0.0
    %1092 = vmatpush.msra.mxu0 0.0
    %1093 = vmatpush.msra.mxu0 0.0
    %1094 = vmatpush.msra.mxu0 0.0
    %1095 = vmatpush.msra.mxu0 0.0
    %1096 = vmatpush.msra.mxu0 0.0
    %1097 = vmatpush.msra.mxu0 0.0
    %1098 = vmatpush.msra.mxu0 0.0
    %1099 = vmatpush.msra.mxu0 %v1066
    %1100 = vmatpush.msra.mxu0 %v1065
    %1101 = vmatpush.msra.mxu0 %v1064
    %1102 = vmatpush.msra.mxu0 %v1063
    %1103 = vmatmul.f32.gmra.mxu0 %v334
    %v1104 = vpop.f32.mrf.mxu0
    %v1105 = vadd.f32 %v332, %v1104
    %1106 = vdwg.mxu0
    %v1107 = vmul.f32 %v1085, 0.5
    %v1108 = vtanh.pop %v1107
    %v1109 = vadd.f32 %v1108, 1.0
    %v1110 = vmul.f32 %v1109, 0.5
    %v1111 = vmul.f32 %v1105, 0.5
    %v1112 = vtanh.pop %v1111
    %v1113 = vadd.f32 %v1112, 1.0
    %v1114 = vmul.f32 %v1113, 0.5
    %v1115 = vperm.slane %v1110, 0
    %v1116 = vperm.slane %v1114, 0
    %v1117 = vsel %vm364, %v1115, %v1116
    %v1118 = vmul.f32 %v997, %v1117
    %s1119 = scalar_lea.vmem %s4, 256
    %v1120 = vld [vmem:[%s1119] sm:$0xff]
    %v1121 = vld [vmem:[%s1119 + $0x8] sm:$0xff]
    %v1122 = vld [vmem:[%s1119 + $0x10] sm:$0xff]
    %v1123 = vld [vmem:[%s1119 + $0x18] sm:$0xff]
    %v1124 = vld [vmem:[%s1119 + $0x20] sm:$0xff]
    %v1125 = vld [vmem:[%s1119 + $0x28] sm:$0xff]
    %v1126 = vld [vmem:[%s1119 + $0x30] sm:$0xff]
    %v1127 = vld [vmem:[%s1119 + $0x38] sm:$0xff]
    %v1128 = vld [vmem:[%s1119 + $0x40] sm:$0xff]
    %v1129 = vld [vmem:[%s1119 + $0x48] sm:$0xff]
    %v1130 = vld [vmem:[%s1119 + $0x50] sm:$0xff]
    %v1131 = vld [vmem:[%s1119 + $0x58] sm:$0xff]
    %v1132 = vld [vmem:[%s1119 + $0x60] sm:$0xff]
    %v1133 = vld [vmem:[%s1119 + $0x68] sm:$0xff]
    %v1134 = vld [vmem:[%s1119 + $0x70] sm:$0xff]
    %v1135 = vld [vmem:[%s1119 + $0x78] sm:$0xff]
    %v1137 = vsel %vm170, %v1120, 0
    %v1140 = vsel %vm170, %v1121, 0
    %v1143 = vsel %vm170, %v1122, 0
    %v1146 = vsel %vm170, %v1123, 0
    %v1149 = vsel %vm170, %v1124, 0
    %v1152 = vsel %vm170, %v1125, 0
    %v1155 = vsel %vm170, %v1126, 0
    %v1158 = vsel %vm170, %v1127, 0
    %v1161 = vsel %vm170, %v1128, 0
    %v1164 = vsel %vm170, %v1129, 0
    %v1167 = vsel %vm170, %v1130, 0
    %v1170 = vsel %vm170, %v1131, 0
    %v1173 = vsel %vm170, %v1132, 0
    %v1176 = vsel %vm170, %v1133, 0
    %v1179 = vsel %vm170, %v1134, 0
    %v1182 = vsel %vm170, %v1135, 0
    %v1185 = vsel %vm183, %v1118, 0
    %1187 = vmatpush.msra.mxu0 0.0
    %1188 = vmatpush.msra.mxu0 0.0
    %1189 = vmatpush.msra.mxu0 0.0
    %1190 = vmatpush.msra.mxu0 0.0
    %1191 = vmatpush.msra.mxu0 0.0
    %1192 = vmatpush.msra.mxu0 0.0
    %1193 = vmatpush.msra.mxu0 0.0
    %1194 = vmatpush.msra.mxu0 0.0
    %1195 = vmatpush.msra.mxu0 0.0
    %1196 = vmatpush.msra.mxu0 0.0
    %1197 = vmatpush.msra.mxu0 0.0
    %1198 = vmatpush.msra.mxu0 0.0
    %1199 = vmatpush.msra.mxu0 0.0
    %1200 = vmatpush.msra.mxu0 0.0
    %1201 = vmatpush.msra.mxu0 0.0
    %1202 = vmatpush.msra.mxu0 %v1185
    %1203 = vmatmul.f32.gmra.mxu0 %v1137
    %v1204 = vpop.f32.mrf.mxu0
    %v1205 = vadd.f32 0.0, %v1204
    %1206 = vmatmul.f32.gmra.mxu0 %v1140
    %v1207 = vpop.f32.mrf.mxu0
    %v1208 = vadd.f32 0.0, %v1207
    %1209 = vmatmul.f32.gmra.mxu0 %v1143
    %v1210 = vpop.f32.mrf.mxu0
    %v1211 = vadd.f32 0.0, %v1210
    %1212 = vmatmul.f32.gmra.mxu0 %v1146
    %v1213 = vpop.f32.mrf.mxu0
    %v1214 = vadd.f32 0.0, %v1213
    %1215 = vmatmul.f32.gmra.mxu0 %v1149
    %v1216 = vpop.f32.mrf.mxu0
    %v1217 = vadd.f32 0.0, %v1216
    %1218 = vmatmul.f32.gmra.mxu0 %v1152
    %v1219 = vpop.f32.mrf.mxu0
    %v1220 = vadd.f32 0.0, %v1219
    %1221 = vmatmul.f32.gmra.mxu0 %v1155
    %v1222 = vpop.f32.mrf.mxu0
    %v1223 = vadd.f32 0.0, %v1222
    %1224 = vmatmul.f32.gmra.mxu0 %v1158
    %v1225 = vpop.f32.mrf.mxu0
    %v1226 = vadd.f32 0.0, %v1225
    %1227 = vmatmul.f32.gmra.mxu0 %v1161
    %v1228 = vpop.f32.mrf.mxu0
    %v1229 = vadd.f32 0.0, %v1228
    %1230 = vmatmul.f32.gmra.mxu0 %v1164
    %v1231 = vpop.f32.mrf.mxu0
    %v1232 = vadd.f32 0.0, %v1231
    %1233 = vmatmul.f32.gmra.mxu0 %v1167
    %v1234 = vpop.f32.mrf.mxu0
    %v1235 = vadd.f32 0.0, %v1234
    %1236 = vmatmul.f32.gmra.mxu0 %v1170
    %v1237 = vpop.f32.mrf.mxu0
    %v1238 = vadd.f32 0.0, %v1237
    %1239 = vmatmul.f32.gmra.mxu0 %v1173
    %v1240 = vpop.f32.mrf.mxu0
    %v1241 = vadd.f32 0.0, %v1240
    %1242 = vmatmul.f32.gmra.mxu0 %v1176
    %v1243 = vpop.f32.mrf.mxu0
    %v1244 = vadd.f32 0.0, %v1243
    %1245 = vmatmul.f32.gmra.mxu0 %v1179
    %v1246 = vpop.f32.mrf.mxu0
    %v1247 = vadd.f32 0.0, %v1246
    %1248 = vmatmul.f32.gmra.mxu0 %v1182
    %v1249 = vpop.f32.mrf.mxu0
    %v1250 = vadd.f32 0.0, %v1249
    %1251 = vdwg.mxu0
    %v1252 = vadd.f32 %v845, %v1205
    %v1253 = vadd.f32 %v848, %v1208
    %v1254 = vadd.f32 %v851, %v1211
    %v1255 = vadd.f32 %v854, %v1214
    %v1256 = vadd.f32 %v857, %v1217
    %v1257 = vadd.f32 %v860, %v1220
    %v1258 = vadd.f32 %v863, %v1223
    %v1259 = vadd.f32 %v866, %v1226
    %v1260 = vadd.f32 %v869, %v1229
    %v1261 = vadd.f32 %v872, %v1232
    %v1262 = vadd.f32 %v875, %v1235
    %v1263 = vadd.f32 %v878, %v1238
    %v1264 = vadd.f32 %v881, %v1241
    %v1265 = vadd.f32 %v884, %v1244
    %v1266 = vadd.f32 %v887, %v1247
    %v1267 = vadd.f32 %v890, %v1250
    %v1268 = vperm.slane %v1118, 0
    %v1269 = vmul.f32 %v385, %v1268
    %v1270 = vmul.f32 %v386, %v1268
    %v1271 = vmul.f32 %v387, %v1268
    %v1272 = vmul.f32 %v388, %v1268
    %v1273 = vperm.slane %v1118, 1
    %v1274 = vmul.f32 %v395, %v1273
    %v1275 = vmul.f32 %v396, %v1273
    %v1276 = vmul.f32 %v397, %v1273
    %v1277 = vmul.f32 %v398, %v1273
    %v1278 = vadd.f32 %v1269, %v1274
    %v1279 = vadd.f32 %v1270, %v1275
    %v1280 = vadd.f32 %v1271, %v1276
    %v1281 = vadd.f32 %v1272, %v1277
    %v1282 = vperm.slane %v1118, 2
    %v1283 = vmul.f32 %v409, %v1282
    %v1284 = vmul.f32 %v410, %v1282
    %v1285 = vmul.f32 %v411, %v1282
    %v1286 = vmul.f32 %v412, %v1282
    %v1287 = vadd.f32 %v1278, %v1283
    %v1288 = vadd.f32 %v1279, %v1284
    %v1289 = vadd.f32 %v1280, %v1285
    %v1290 = vadd.f32 %v1281, %v1286
    %v1291 = vperm.slane %v1118, 3
    %v1292 = vmul.f32 %v423, %v1291
    %v1293 = vmul.f32 %v424, %v1291
    %v1294 = vmul.f32 %v425, %v1291
    %v1295 = vmul.f32 %v426, %v1291
    %v1296 = vadd.f32 %v1287, %v1292
    %v1297 = vadd.f32 %v1288, %v1293
    %v1298 = vadd.f32 %v1289, %v1294
    %v1299 = vadd.f32 %v1290, %v1295
    %v1300 = vperm.slane %v1118, 4
    %v1301 = vmul.f32 %v437, %v1300
    %v1302 = vmul.f32 %v438, %v1300
    %v1303 = vmul.f32 %v439, %v1300
    %v1304 = vmul.f32 %v440, %v1300
    %v1305 = vadd.f32 %v1296, %v1301
    %v1306 = vadd.f32 %v1297, %v1302
    %v1307 = vadd.f32 %v1298, %v1303
    %v1308 = vadd.f32 %v1299, %v1304
    %v1309 = vperm.slane %v1118, 5
    %v1310 = vmul.f32 %v451, %v1309
    %v1311 = vmul.f32 %v452, %v1309
    %v1312 = vmul.f32 %v453, %v1309
    %v1313 = vmul.f32 %v454, %v1309
    %v1314 = vadd.f32 %v1305, %v1310
    %v1315 = vadd.f32 %v1306, %v1311
    %v1316 = vadd.f32 %v1307, %v1312
    %v1317 = vadd.f32 %v1308, %v1313
    %v1318 = vperm.slane %v1118, 6
    %v1319 = vmul.f32 %v465, %v1318
    %v1320 = vmul.f32 %v466, %v1318
    %v1321 = vmul.f32 %v467, %v1318
    %v1322 = vmul.f32 %v468, %v1318
    %v1323 = vadd.f32 %v1314, %v1319
    %v1324 = vadd.f32 %v1315, %v1320
    %v1325 = vadd.f32 %v1316, %v1321
    %v1326 = vadd.f32 %v1317, %v1322
    %v1328 = vsel %vm478, %v1323, 0
    %v1331 = vsel %vm478, %v1324, 0
    %v1334 = vsel %vm478, %v1325, 0
    %v1337 = vsel %vm478, %v1326, 0
    %1339 = vmatpush.msra.mxu0 0.0
    %1340 = vmatpush.msra.mxu0 %v140
    %1341 = vmatpush.msra.mxu0 %v139
    %1342 = vmatpush.msra.mxu0 %v138
    %1343 = vmatpush.msra.mxu0 %v137
    %1344 = vmatpush.msra.mxu0 %v136
    %1345 = vmatpush.msra.mxu0 %v135
    %1346 = vmatpush.msra.mxu0 %v134
    %1347 = vmatpush.msra.mxu0 %v133
    %1348 = vmatpush.msra.mxu0 %v132
    %1349 = vmatpush.msra.mxu0 %v131
    %1350 = vmatpush.msra.mxu0 %v130
    %1351 = vmatpush.msra.mxu0 %v129
    %1352 = vmatpush.msra.mxu0 %v128
    %1353 = vmatpush.msra.mxu0 %v127
    %1354 = vmatpush.msra.mxu0 %v126
    %1355 = vmatmul.f32.gmra.mxu0 %v1328
    %v1356 = vpop.f32.mrf.mxu0
    %v1357 = vadd.f32 0.0, %v1356
    %1358 = vmatmul.f32.gmra.mxu0 %v1331
    %v1359 = vpop.f32.mrf.mxu0
    %v1360 = vadd.f32 0.0, %v1359
    %1361 = vmatmul.f32.gmra.mxu0 %v1334
    %v1362 = vpop.f32.mrf.mxu0
    %v1363 = vadd.f32 0.0, %v1362
    %1364 = vmatmul.f32.gmra.mxu0 %v1337
    %v1365 = vpop.f32.mrf.mxu0
    %v1366 = vadd.f32 0.0, %v1365
    %1367 = vdwg.mxu0
    %v1368 = vmax.f32 %v992, %v1357
    %v1369 = vmax.f32 %v993, %v1360
    %v1370 = vmax.f32 %v994, %v1363
    %v1371 = vmax.f32 %v995, %v1366
    %s1372 = scalar_lea.vmem %s0, 24
    %v1373 = vld [vmem:[%s1372] sm:$0x7f]
    %v1375 = vsel %vm183, %v1373, 0
    %1377 = vmatpush.msra.mxu0 0.0
    %1378 = vmatpush.msra.mxu0 0.0
    %1379 = vmatpush.msra.mxu0 0.0
    %1380 = vmatpush.msra.mxu0 0.0
    %1381 = vmatpush.msra.mxu0 0.0
    %1382 = vmatpush.msra.mxu0 0.0
    %1383 = vmatpush.msra.mxu0 0.0
    %1384 = vmatpush.msra.mxu0 0.0
    %1385 = vmatpush.msra.mxu0 0.0
    %1386 = vmatpush.msra.mxu0 0.0
    %1387 = vmatpush.msra.mxu0 0.0
    %1388 = vmatpush.msra.mxu0 0.0
    %1389 = vmatpush.msra.mxu0 0.0
    %1390 = vmatpush.msra.mxu0 0.0
    %1391 = vmatpush.msra.mxu0 0.0
    %1392 = vmatpush.msra.mxu0 %v1375
    %1393 = vmatmul.f32.gmra.mxu0 %v172
    %v1394 = vpop.f32.mrf.mxu0
    %v1395 = vadd.f32 %v153, %v1394
    %1396 = vmatmul.f32.gmra.mxu0 %v175
    %v1397 = vpop.f32.mrf.mxu0
    %v1398 = vadd.f32 %v158, %v1397
    %1399 = vmatmul.f32.gmra.mxu0 %v178
    %v1400 = vpop.f32.mrf.mxu0
    %v1401 = vadd.f32 %v163, %v1400
    %1402 = vmatmul.f32.gmra.mxu0 %v181
    %v1403 = vpop.f32.mrf.mxu0
    %v1404 = vadd.f32 %v168, %v1403
    %1405 = vdwg.mxu0
    %v1406 = vmax.f32 %v1395, 0.0
    %v1407 = vmax.f32 %v1398, 0.0
    %v1408 = vmax.f32 %v1401, 0.0
    %v1409 = vmax.f32 %v1404, 0.0
    %1410 = vmatpush.msra.mxu0 0.0
    %1411 = vmatpush.msra.mxu0 0.0
    %1412 = vmatpush.msra.mxu0 0.0
    %1413 = vmatpush.msra.mxu0 0.0
    %1414 = vmatpush.msra.mxu0 0.0
    %1415 = vmatpush.msra.mxu0 0.0
    %1416 = vmatpush.msra.mxu0 0.0
    %1417 = vmatpush.msra.mxu0 0.0
    %1418 = vmatpush.msra.mxu0 0.0
    %1419 = vmatpush.msra.mxu0 0.0
    %1420 = vmatpush.msra.mxu0 0.0
    %1421 = vmatpush.msra.mxu0 0.0
    %1422 = vmatpush.msra.mxu0 0.0
    %1423 = vmatpush.msra.mxu0 0.0
    %1424 = vmatpush.msra.mxu0 0.0
    %1425 = vmatpush.msra.mxu0 %v1375
    %1426 = vmatmul.f32.gmra.mxu0 %v251
    %v1427 = vpop.f32.mrf.mxu0
    %v1428 = vadd.f32 %v233, %v1427
    %1429 = vmatmul.f32.gmra.mxu0 %v254
    %v1430 = vpop.f32.mrf.mxu0
    %v1431 = vadd.f32 %v238, %v1430
    %1432 = vmatmul.f32.gmra.mxu0 %v257
    %v1433 = vpop.f32.mrf.mxu0
    %v1434 = vadd.f32 %v243, %v1433
    %1435 = vmatmul.f32.gmra.mxu0 %v260
    %v1436 = vpop.f32.mrf.mxu0
    %v1437 = vadd.f32 %v248, %v1436
    %1438 = vdwg.mxu0
    %v1439 = vmax.f32 %v1428, 0.0
    %v1440 = vmax.f32 %v1431, 0.0
    %v1441 = vmax.f32 %v1434, 0.0
    %v1442 = vmax.f32 %v1437, 0.0
    %1443 = vmatpush.msra.mxu0 0.0
    %1444 = vmatpush.msra.mxu0 0.0
    %1445 = vmatpush.msra.mxu0 0.0
    %1446 = vmatpush.msra.mxu0 0.0
    %1447 = vmatpush.msra.mxu0 0.0
    %1448 = vmatpush.msra.mxu0 0.0
    %1449 = vmatpush.msra.mxu0 0.0
    %1450 = vmatpush.msra.mxu0 0.0
    %1451 = vmatpush.msra.mxu0 0.0
    %1452 = vmatpush.msra.mxu0 0.0
    %1453 = vmatpush.msra.mxu0 0.0
    %1454 = vmatpush.msra.mxu0 0.0
    %1455 = vmatpush.msra.mxu0 %v1409
    %1456 = vmatpush.msra.mxu0 %v1408
    %1457 = vmatpush.msra.mxu0 %v1407
    %1458 = vmatpush.msra.mxu0 %v1406
    %1459 = vmatmul.f32.gmra.mxu0 %v304
    %v1460 = vpop.f32.mrf.mxu0
    %v1461 = vadd.f32 %v301, %v1460
    %1462 = vdwg.mxu0
    %1463 = vmatpush.msra.mxu0 0.0
    %1464 = vmatpush.msra.mxu0 0.0
    %1465 = vmatpush.msra.mxu0 0.0
    %1466 = vmatpush.msra.mxu0 0.0
    %1467 = vmatpush.msra.mxu0 0.0
    %1468 = vmatpush.msra.mxu0 0.0
    %1469 = vmatpush.msra.mxu0 0.0
    %1470 = vmatpush.msra.mxu0 0.0
    %1471 = vmatpush.msra.mxu0 0.0
    %1472 = vmatpush.msra.mxu0 0.0
    %1473 = vmatpush.msra.mxu0 0.0
    %1474 = vmatpush.msra.mxu0 0.0
    %1475 = vmatpush.msra.mxu0 %v1442
    %1476 = vmatpush.msra.mxu0 %v1441
    %1477 = vmatpush.msra.mxu0 %v1440
    %1478 = vmatpush.msra.mxu0 %v1439
    %1479 = vmatmul.f32.gmra.mxu0 %v334
    %v1480 = vpop.f32.mrf.mxu0
    %v1481 = vadd.f32 %v332, %v1480
    %1482 = vdwg.mxu0
    %v1483 = vmul.f32 %v1461, 0.5
    %v1484 = vtanh.pop %v1483
    %v1485 = vadd.f32 %v1484, 1.0
    %v1486 = vmul.f32 %v1485, 0.5
    %v1487 = vmul.f32 %v1481, 0.5
    %v1488 = vtanh.pop %v1487
    %v1489 = vadd.f32 %v1488, 1.0
    %v1490 = vmul.f32 %v1489, 0.5
    %v1491 = vperm.slane %v1486, 0
    %v1492 = vperm.slane %v1490, 0
    %v1493 = vsel %vm364, %v1491, %v1492
    %v1494 = vmul.f32 %v1373, %v1493
    %s1495 = scalar_lea.vmem %s4, 384
    %v1496 = vld [vmem:[%s1495] sm:$0xff]
    %v1497 = vld [vmem:[%s1495 + $0x8] sm:$0xff]
    %v1498 = vld [vmem:[%s1495 + $0x10] sm:$0xff]
    %v1499 = vld [vmem:[%s1495 + $0x18] sm:$0xff]
    %v1500 = vld [vmem:[%s1495 + $0x20] sm:$0xff]
    %v1501 = vld [vmem:[%s1495 + $0x28] sm:$0xff]
    %v1502 = vld [vmem:[%s1495 + $0x30] sm:$0xff]
    %v1503 = vld [vmem:[%s1495 + $0x38] sm:$0xff]
    %v1504 = vld [vmem:[%s1495 + $0x40] sm:$0xff]
    %v1505 = vld [vmem:[%s1495 + $0x48] sm:$0xff]
    %v1506 = vld [vmem:[%s1495 + $0x50] sm:$0xff]
    %v1507 = vld [vmem:[%s1495 + $0x58] sm:$0xff]
    %v1508 = vld [vmem:[%s1495 + $0x60] sm:$0xff]
    %v1509 = vld [vmem:[%s1495 + $0x68] sm:$0xff]
    %v1510 = vld [vmem:[%s1495 + $0x70] sm:$0xff]
    %v1511 = vld [vmem:[%s1495 + $0x78] sm:$0xff]
    %v1513 = vsel %vm170, %v1496, 0
    %v1516 = vsel %vm170, %v1497, 0
    %v1519 = vsel %vm170, %v1498, 0
    %v1522 = vsel %vm170, %v1499, 0
    %v1525 = vsel %vm170, %v1500, 0
    %v1528 = vsel %vm170, %v1501, 0
    %v1531 = vsel %vm170, %v1502, 0
    %v1534 = vsel %vm170, %v1503, 0
    %v1537 = vsel %vm170, %v1504, 0
    %v1540 = vsel %vm170, %v1505, 0
    %v1543 = vsel %vm170, %v1506, 0
    %v1546 = vsel %vm170, %v1507, 0
    %v1549 = vsel %vm170, %v1508, 0
    %v1552 = vsel %vm170, %v1509, 0
    %v1555 = vsel %vm170, %v1510, 0
    %v1558 = vsel %vm170, %v1511, 0
    %v1561 = vsel %vm183, %v1494, 0
    %1563 = vmatpush.msra.mxu0 0.0
    %1564 = vmatpush.msra.mxu0 0.0
    %1565 = vmatpush.msra.mxu0 0.0
    %1566 = vmatpush.msra.mxu0 0.0
    %1567 = vmatpush.msra.mxu0 0.0
    %1568 = vmatpush.msra.mxu0 0.0
    %1569 = vmatpush.msra.mxu0 0.0
    %1570 = vmatpush.msra.mxu0 0.0
    %1571 = vmatpush.msra.mxu0 0.0
    %1572 = vmatpush.msra.mxu0 0.0
    %1573 = vmatpush.msra.mxu0 0.0
    %1574 = vmatpush.msra.mxu0 0.0
    %1575 = vmatpush.msra.mxu0 0.0
    %1576 = vmatpush.msra.mxu0 0.0
    %1577 = vmatpush.msra.mxu0 0.0
    %1578 = vmatpush.msra.mxu0 %v1561
    %1579 = vmatmul.f32.gmra.mxu0 %v1513
    %v1580 = vpop.f32.mrf.mxu0
    %v1581 = vadd.f32 0.0, %v1580
    %1582 = vmatmul.f32.gmra.mxu0 %v1516
    %v1583 = vpop.f32.mrf.mxu0
    %v1584 = vadd.f32 0.0, %v1583
    %1585 = vmatmul.f32.gmra.mxu0 %v1519
    %v1586 = vpop.f32.mrf.mxu0
    %v1587 = vadd.f32 0.0, %v1586
    %1588 = vmatmul.f32.gmra.mxu0 %v1522
    %v1589 = vpop.f32.mrf.mxu0
    %v1590 = vadd.f32 0.0, %v1589
    %1591 = vmatmul.f32.gmra.mxu0 %v1525
    %v1592 = vpop.f32.mrf.mxu0
    %v1593 = vadd.f32 0.0, %v1592
    %1594 = vmatmul.f32.gmra.mxu0 %v1528
    %v1595 = vpop.f32.mrf.mxu0
    %v1596 = vadd.f32 0.0, %v1595
    %1597 = vmatmul.f32.gmra.mxu0 %v1531
    %v1598 = vpop.f32.mrf.mxu0
    %v1599 = vadd.f32 0.0, %v1598
    %1600 = vmatmul.f32.gmra.mxu0 %v1534
    %v1601 = vpop.f32.mrf.mxu0
    %v1602 = vadd.f32 0.0, %v1601
    %1603 = vmatmul.f32.gmra.mxu0 %v1537
    %v1604 = vpop.f32.mrf.mxu0
    %v1605 = vadd.f32 0.0, %v1604
    %1606 = vmatmul.f32.gmra.mxu0 %v1540
    %v1607 = vpop.f32.mrf.mxu0
    %v1608 = vadd.f32 0.0, %v1607
    %1609 = vmatmul.f32.gmra.mxu0 %v1543
    %v1610 = vpop.f32.mrf.mxu0
    %v1611 = vadd.f32 0.0, %v1610
    %1612 = vmatmul.f32.gmra.mxu0 %v1546
    %v1613 = vpop.f32.mrf.mxu0
    %v1614 = vadd.f32 0.0, %v1613
    %1615 = vmatmul.f32.gmra.mxu0 %v1549
    %v1616 = vpop.f32.mrf.mxu0
    %v1617 = vadd.f32 0.0, %v1616
    %1618 = vmatmul.f32.gmra.mxu0 %v1552
    %v1619 = vpop.f32.mrf.mxu0
    %v1620 = vadd.f32 0.0, %v1619
    %1621 = vmatmul.f32.gmra.mxu0 %v1555
    %v1622 = vpop.f32.mrf.mxu0
    %v1623 = vadd.f32 0.0, %v1622
    %1624 = vmatmul.f32.gmra.mxu0 %v1558
    %v1625 = vpop.f32.mrf.mxu0
    %v1626 = vadd.f32 0.0, %v1625
    %1627 = vdwg.mxu0
    %v1628 = vadd.f32 %v1252, %v1581
    %v1629 = vadd.f32 %v1253, %v1584
    %v1630 = vadd.f32 %v1254, %v1587
    %v1631 = vadd.f32 %v1255, %v1590
    %v1632 = vadd.f32 %v1256, %v1593
    %v1633 = vadd.f32 %v1257, %v1596
    %v1634 = vadd.f32 %v1258, %v1599
    %v1635 = vadd.f32 %v1259, %v1602
    %v1636 = vadd.f32 %v1260, %v1605
    %v1637 = vadd.f32 %v1261, %v1608
    %v1638 = vadd.f32 %v1262, %v1611
    %v1639 = vadd.f32 %v1263, %v1614
    %v1640 = vadd.f32 %v1264, %v1617
    %v1641 = vadd.f32 %v1265, %v1620
    %v1642 = vadd.f32 %v1266, %v1623
    %v1643 = vadd.f32 %v1267, %v1626
    %v1644 = vperm.slane %v1494, 0
    %v1645 = vmul.f32 %v385, %v1644
    %v1646 = vmul.f32 %v386, %v1644
    %v1647 = vmul.f32 %v387, %v1644
    %v1648 = vmul.f32 %v388, %v1644
    %v1649 = vperm.slane %v1494, 1
    %v1650 = vmul.f32 %v395, %v1649
    %v1651 = vmul.f32 %v396, %v1649
    %v1652 = vmul.f32 %v397, %v1649
    %v1653 = vmul.f32 %v398, %v1649
    %v1654 = vadd.f32 %v1645, %v1650
    %v1655 = vadd.f32 %v1646, %v1651
    %v1656 = vadd.f32 %v1647, %v1652
    %v1657 = vadd.f32 %v1648, %v1653
    %v1658 = vperm.slane %v1494, 2
    %v1659 = vmul.f32 %v409, %v1658
    %v1660 = vmul.f32 %v410, %v1658
    %v1661 = vmul.f32 %v411, %v1658
    %v1662 = vmul.f32 %v412, %v1658
    %v1663 = vadd.f32 %v1654, %v1659
    %v1664 = vadd.f32 %v1655, %v1660
    %v1665 = vadd.f32 %v1656, %v1661
    %v1666 = vadd.f32 %v1657, %v1662
    %v1667 = vperm.slane %v1494, 3
    %v1668 = vmul.f32 %v423, %v1667
    %v1669 = vmul.f32 %v424, %v1667
    %v1670 = vmul.f32 %v425, %v1667
    %v1671 = vmul.f32 %v426, %v1667
    %v1672 = vadd.f32 %v1663, %v1668
    %v1673 = vadd.f32 %v1664, %v1669
    %v1674 = vadd.f32 %v1665, %v1670
    %v1675 = vadd.f32 %v1666, %v1671
    %v1676 = vperm.slane %v1494, 4
    %v1677 = vmul.f32 %v437, %v1676
    %v1678 = vmul.f32 %v438, %v1676
    %v1679 = vmul.f32 %v439, %v1676
    %v1680 = vmul.f32 %v440, %v1676
    %v1681 = vadd.f32 %v1672, %v1677
    %v1682 = vadd.f32 %v1673, %v1678
    %v1683 = vadd.f32 %v1674, %v1679
    %v1684 = vadd.f32 %v1675, %v1680
    %v1685 = vperm.slane %v1494, 5
    %v1686 = vmul.f32 %v451, %v1685
    %v1687 = vmul.f32 %v452, %v1685
    %v1688 = vmul.f32 %v453, %v1685
    %v1689 = vmul.f32 %v454, %v1685
    %v1690 = vadd.f32 %v1681, %v1686
    %v1691 = vadd.f32 %v1682, %v1687
    %v1692 = vadd.f32 %v1683, %v1688
    %v1693 = vadd.f32 %v1684, %v1689
    %v1694 = vperm.slane %v1494, 6
    %v1695 = vmul.f32 %v465, %v1694
    %v1696 = vmul.f32 %v466, %v1694
    %v1697 = vmul.f32 %v467, %v1694
    %v1698 = vmul.f32 %v468, %v1694
    %v1699 = vadd.f32 %v1690, %v1695
    %v1700 = vadd.f32 %v1691, %v1696
    %v1701 = vadd.f32 %v1692, %v1697
    %v1702 = vadd.f32 %v1693, %v1698
    %v1704 = vsel %vm478, %v1699, 0
    %v1707 = vsel %vm478, %v1700, 0
    %v1710 = vsel %vm478, %v1701, 0
    %v1713 = vsel %vm478, %v1702, 0
    %1715 = vmatpush.msra.mxu0 0.0
    %1716 = vmatpush.msra.mxu0 %v140
    %1717 = vmatpush.msra.mxu0 %v139
    %1718 = vmatpush.msra.mxu0 %v138
    %1719 = vmatpush.msra.mxu0 %v137
    %1720 = vmatpush.msra.mxu0 %v136
    %1721 = vmatpush.msra.mxu0 %v135
    %1722 = vmatpush.msra.mxu0 %v134
    %1723 = vmatpush.msra.mxu0 %v133
    %1724 = vmatpush.msra.mxu0 %v132
    %1725 = vmatpush.msra.mxu0 %v131
    %1726 = vmatpush.msra.mxu0 %v130
    %1727 = vmatpush.msra.mxu0 %v129
    %1728 = vmatpush.msra.mxu0 %v128
    %1729 = vmatpush.msra.mxu0 %v127
    %1730 = vmatpush.msra.mxu0 %v126
    %1731 = vmatmul.f32.gmra.mxu0 %v1704
    %v1732 = vpop.f32.mrf.mxu0
    %v1733 = vadd.f32 0.0, %v1732
    %1734 = vmatmul.f32.gmra.mxu0 %v1707
    %v1735 = vpop.f32.mrf.mxu0
    %v1736 = vadd.f32 0.0, %v1735
    %1737 = vmatmul.f32.gmra.mxu0 %v1710
    %v1738 = vpop.f32.mrf.mxu0
    %v1739 = vadd.f32 0.0, %v1738
    %1740 = vmatmul.f32.gmra.mxu0 %v1713
    %v1741 = vpop.f32.mrf.mxu0
    %v1742 = vadd.f32 0.0, %v1741
    %1743 = vdwg.mxu0
    %v1744 = vmax.f32 %v1368, %v1733
    %v1745 = vmax.f32 %v1369, %v1736
    %v1746 = vmax.f32 %v1370, %v1739
    %v1747 = vmax.f32 %v1371, %v1742
    %v1748 = vld [vmem:[%s5] sm:$0xff]
    %v1749 = vld [vmem:[%s5 + $0x8] sm:$0xff]
    %v1750 = vld [vmem:[%s5 + $0x10] sm:$0xff]
    %v1751 = vld [vmem:[%s5 + $0x18] sm:$0xff]
    %v1752 = vld [vmem:[%s5 + $0x20] sm:$0xff]
    %v1753 = vld [vmem:[%s5 + $0x28] sm:$0xff]
    %v1754 = vld [vmem:[%s5 + $0x30] sm:$0xff]
    %v1755 = vld [vmem:[%s5 + $0x38] sm:$0xff]
    %v1756 = vld [vmem:[%s5 + $0x40] sm:$0xff]
    %v1757 = vld [vmem:[%s5 + $0x48] sm:$0xff]
    %v1758 = vld [vmem:[%s5 + $0x50] sm:$0xff]
    %v1759 = vld [vmem:[%s5 + $0x58] sm:$0xff]
    %v1760 = vld [vmem:[%s5 + $0x60] sm:$0xff]
    %v1761 = vld [vmem:[%s5 + $0x68] sm:$0xff]
    %v1762 = vld [vmem:[%s5 + $0x70] sm:$0xff]
    %v1763 = vld [vmem:[%s5 + $0x78] sm:$0xff]
    %1765 = vset.pattern.permute.xlu0 0
    %1766 = vperm.xlu0 %1765, %v1748
    %v1767 = vpop.permute.xlu0 %1766
    %1770 = vset.pattern.permute.xlu0 0
    %1771 = vperm.xlu0 %1770, %v1749
    %v1772 = vpop.permute.xlu0 %1771
    %1775 = vset.pattern.permute.xlu0 0
    %1776 = vperm.xlu0 %1775, %v1750
    %v1777 = vpop.permute.xlu0 %1776
    %1780 = vset.pattern.permute.xlu0 0
    %1781 = vperm.xlu0 %1780, %v1751
    %v1782 = vpop.permute.xlu0 %1781
    %1785 = vset.pattern.permute.xlu0 0
    %1786 = vperm.xlu0 %1785, %v1752
    %v1787 = vpop.permute.xlu0 %1786
    %1790 = vset.pattern.permute.xlu0 0
    %1791 = vperm.xlu0 %1790, %v1753
    %v1792 = vpop.permute.xlu0 %1791
    %1795 = vset.pattern.permute.xlu0 0
    %1796 = vperm.xlu0 %1795, %v1754
    %v1797 = vpop.permute.xlu0 %1796
    %1800 = vset.pattern.permute.xlu0 0
    %1801 = vperm.xlu0 %1800, %v1755
    %v1802 = vpop.permute.xlu0 %1801
    %1805 = vset.pattern.permute.xlu0 0
    %1806 = vperm.xlu0 %1805, %v1756
    %v1807 = vpop.permute.xlu0 %1806
    %1810 = vset.pattern.permute.xlu0 0
    %1811 = vperm.xlu0 %1810, %v1757
    %v1812 = vpop.permute.xlu0 %1811
    %1815 = vset.pattern.permute.xlu0 0
    %1816 = vperm.xlu0 %1815, %v1758
    %v1817 = vpop.permute.xlu0 %1816
    %1820 = vset.pattern.permute.xlu0 0
    %1821 = vperm.xlu0 %1820, %v1759
    %v1822 = vpop.permute.xlu0 %1821
    %1825 = vset.pattern.permute.xlu0 0
    %1826 = vperm.xlu0 %1825, %v1760
    %v1827 = vpop.permute.xlu0 %1826
    %1830 = vset.pattern.permute.xlu0 0
    %1831 = vperm.xlu0 %1830, %v1761
    %v1832 = vpop.permute.xlu0 %1831
    %1835 = vset.pattern.permute.xlu0 0
    %1836 = vperm.xlu0 %1835, %v1762
    %v1837 = vpop.permute.xlu0 %1836
    %1840 = vset.pattern.permute.xlu0 0
    %1841 = vperm.xlu0 %1840, %v1763
    %v1842 = vpop.permute.xlu0 %1841
    %v1844 = vadd.f32 %v1628, %v1767
    %v1845 = vadd.f32 %v1629, %v1772
    %v1846 = vadd.f32 %v1630, %v1777
    %v1847 = vadd.f32 %v1631, %v1782
    %v1848 = vadd.f32 %v1632, %v1787
    %v1849 = vadd.f32 %v1633, %v1792
    %v1850 = vadd.f32 %v1634, %v1797
    %v1851 = vadd.f32 %v1635, %v1802
    %v1852 = vadd.f32 %v1636, %v1807
    %v1853 = vadd.f32 %v1637, %v1812
    %v1854 = vadd.f32 %v1638, %v1817
    %v1855 = vadd.f32 %v1639, %v1822
    %v1856 = vadd.f32 %v1640, %v1827
    %v1857 = vadd.f32 %v1641, %v1832
    %v1858 = vadd.f32 %v1642, %v1837
    %v1859 = vadd.f32 %v1643, %v1842
    %v1860 = vmax.f32 %v1844, %v1848
    %v1861 = vmax.f32 %v1845, %v1849
    %v1862 = vmax.f32 %v1846, %v1850
    %v1863 = vmax.f32 %v1847, %v1851
    %v1864 = vmax.f32 %v1852, %v1856
    %v1865 = vmax.f32 %v1853, %v1857
    %v1866 = vmax.f32 %v1854, %v1858
    %v1867 = vmax.f32 %v1855, %v1859
    %v1868 = vmax.f32 %v1860, %v1864
    %v1869 = vmax.f32 %v1861, %v1865
    %v1870 = vmax.f32 %v1862, %v1866
    %v1871 = vmax.f32 %v1863, %v1867
    %v1872 = vmax.f32 %v1868, 0.0
    %v1873 = vmax.f32 %v1869, 0.0
    %v1874 = vmax.f32 %v1870, 0.0
    %v1875 = vmax.f32 %v1871, 0.0
    %v1876 = vld [vmem:[%s7] sm:$0xff]
    %v1877 = vld [vmem:[%s7 + $0x8] sm:$0xff]
    %v1878 = vld [vmem:[%s7 + $0x10] sm:$0xff]
    %v1879 = vld [vmem:[%s7 + $0x18] sm:$0xff]
    %1881 = vset.pattern.permute.xlu0 0
    %1882 = vperm.xlu0 %1881, %v1876
    %v1883 = vpop.permute.xlu0 %1882
    %1886 = vset.pattern.permute.xlu0 0
    %1887 = vperm.xlu0 %1886, %v1877
    %v1888 = vpop.permute.xlu0 %1887
    %1891 = vset.pattern.permute.xlu0 0
    %1892 = vperm.xlu0 %1891, %v1878
    %v1893 = vpop.permute.xlu0 %1892
    %1896 = vset.pattern.permute.xlu0 0
    %1897 = vperm.xlu0 %1896, %v1879
    %v1898 = vpop.permute.xlu0 %1897
    %v1900 = vadd.f32 %v1744, %v1883
    %v1901 = vadd.f32 %v1745, %v1888
    %v1902 = vadd.f32 %v1746, %v1893
    %v1903 = vadd.f32 %v1747, %v1898
    %v1904 = vmax.f32 %v1900, 0.0
    %v1905 = vmax.f32 %v1901, 0.0
    %v1906 = vmax.f32 %v1902, 0.0
    %v1907 = vmax.f32 %v1903, 0.0
    %v1908 = vld [vmem:[%s9] sm:$0xff]
    %v1909 = vld [vmem:[%s9 + $0x8] sm:$0xff]
    %v1910 = vld [vmem:[%s9 + $0x10] sm:$0xff]
    %v1911 = vld [vmem:[%s9 + $0x18] sm:$0xff]
    %vm1912 = vcmp.eq.s32.totalorder %v47, %v64
    %vm1913 = vcmp.eq.s32.totalorder %v48, %v64
    %vm1914 = vcmp.eq.s32.totalorder %v49, %v64
    %vm1915 = vcmp.eq.s32.totalorder %v50, %v64
    %vm1916 = vcmp.eq.s32.totalorder %v51, %v64
    %vm1917 = vcmp.eq.s32.totalorder %v52, %v64
    %vm1918 = vcmp.eq.s32.totalorder %v53, %v64
    %vm1919 = vcmp.eq.s32.totalorder %v54, %v64
    %vm1920 = vcmp.eq.s32.totalorder %v55, %v64
    %vm1921 = vcmp.eq.s32.totalorder %v56, %v64
    %vm1922 = vcmp.eq.s32.totalorder %v57, %v64
    %vm1923 = vcmp.eq.s32.totalorder %v58, %v64
    %vm1924 = vcmp.eq.s32.totalorder %v59, %v64
    %vm1925 = vcmp.eq.s32.totalorder %v60, %v64
    %vm1926 = vcmp.eq.s32.totalorder %v61, %v64
    %v1927 = vsel %vm1912, 1, 0
    %v1928 = vsel %vm1913, 1, 0
    %v1929 = vsel %vm1914, 1, 0
    %v1930 = vsel %vm1915, 1, 0
    %v1931 = vsel %vm1916, 1, 0
    %v1932 = vsel %vm1917, 1, 0
    %v1933 = vsel %vm1918, 1, 0
    %v1934 = vsel %vm1919, 1, 0
    %v1935 = vsel %vm1920, 1, 0
    %v1936 = vsel %vm1921, 1, 0
    %v1937 = vsel %vm1922, 1, 0
    %v1938 = vsel %vm1923, 1, 0
    %v1939 = vsel %vm1924, 1, 0
    %v1940 = vsel %vm1925, 1, 0
    %v1941 = vsel %vm1926, 1, 0
    %v1942 = vcvt.s32.f32 %v1927
    %v1943 = vcvt.s32.f32 %v1928
    %v1944 = vcvt.s32.f32 %v1929
    %v1945 = vcvt.s32.f32 %v1930
    %v1946 = vcvt.s32.f32 %v1931
    %v1947 = vcvt.s32.f32 %v1932
    %v1948 = vcvt.s32.f32 %v1933
    %v1949 = vcvt.s32.f32 %v1934
    %v1950 = vcvt.s32.f32 %v1935
    %v1951 = vcvt.s32.f32 %v1936
    %v1952 = vcvt.s32.f32 %v1937
    %v1953 = vcvt.s32.f32 %v1938
    %v1954 = vcvt.s32.f32 %v1939
    %v1955 = vcvt.s32.f32 %v1940
    %v1956 = vcvt.s32.f32 %v1941
    %v1958 = vsel %vm478, %v1872, 0
    %v1961 = vsel %vm478, %v1873, 0
    %v1964 = vsel %vm478, %v1874, 0
    %v1967 = vsel %vm478, %v1875, 0
    %1969 = vmatpush.msra.mxu0 0.0
    %1970 = vmatpush.msra.mxu0 %v1956
    %1971 = vmatpush.msra.mxu0 %v1955
    %1972 = vmatpush.msra.mxu0 %v1954
    %1973 = vmatpush.msra.mxu0 %v1953
    %1974 = vmatpush.msra.mxu0 %v1952
    %1975 = vmatpush.msra.mxu0 %v1951
    %1976 = vmatpush.msra.mxu0 %v1950
    %1977 = vmatpush.msra.mxu0 %v1949
    %1978 = vmatpush.msra.mxu0 %v1948
    %1979 = vmatpush.msra.mxu0 %v1947
    %1980 = vmatpush.msra.mxu0 %v1946
    %1981 = vmatpush.msra.mxu0 %v1945
    %1982 = vmatpush.msra.mxu0 %v1944
    %1983 = vmatpush.msra.mxu0 %v1943
    %1984 = vmatpush.msra.mxu0 %v1942
    %1985 = vmatmul.f32.gmra.mxu0 %v1958
    %v1986 = vpop.f32.mrf.mxu0
    %v1987 = vadd.f32 0.0, %v1986
    %1988 = vmatmul.f32.gmra.mxu0 %v1961
    %v1989 = vpop.f32.mrf.mxu0
    %v1990 = vadd.f32 0.0, %v1989
    %1991 = vmatmul.f32.gmra.mxu0 %v1964
    %v1992 = vpop.f32.mrf.mxu0
    %v1993 = vadd.f32 0.0, %v1992
    %1994 = vmatmul.f32.gmra.mxu0 %v1967
    %v1995 = vpop.f32.mrf.mxu0
    %v1996 = vadd.f32 0.0, %v1995
    %1997 = vdwg.mxu0
    %v1998 = vld [vmem:[%s8] sm:$0xff]
    %v1999 = vld [vmem:[%s8 + $0x8] sm:$0xff]
    %v2000 = vld [vmem:[%s8 + $0x10] sm:$0xff]
    %v2001 = vld [vmem:[%s8 + $0x18] sm:$0xff]
    %v2003 = vsel %vm302, %v1998, 0
    %v2006 = vsel %vm302, %v1999, 0
    %v2009 = vsel %vm302, %v2000, 0
    %v2012 = vsel %vm302, %v2001, 0
    %2014 = vmatpush.msra.mxu0 0.0
    %2015 = vmatpush.msra.mxu0 0.0
    %2016 = vmatpush.msra.mxu0 0.0
    %2017 = vmatpush.msra.mxu0 0.0
    %2018 = vmatpush.msra.mxu0 0.0
    %2019 = vmatpush.msra.mxu0 0.0
    %2020 = vmatpush.msra.mxu0 0.0
    %2021 = vmatpush.msra.mxu0 0.0
    %2022 = vmatpush.msra.mxu0 0.0
    %2023 = vmatpush.msra.mxu0 0.0
    %2024 = vmatpush.msra.mxu0 0.0
    %2025 = vmatpush.msra.mxu0 0.0
    %2026 = vmatpush.msra.mxu0 %v1996
    %2027 = vmatpush.msra.mxu0 %v1993
    %2028 = vmatpush.msra.mxu0 %v1990
    %2029 = vmatpush.msra.mxu0 %v1987
    %2030 = vmatmul.f32.gmra.mxu0 %v2003
    %v2031 = vpop.f32.mrf.mxu0
    %v2032 = vadd.f32 0.0, %v2031
    %2033 = vmatmul.f32.gmra.mxu0 %v2006
    %v2034 = vpop.f32.mrf.mxu0
    %v2035 = vadd.f32 0.0, %v2034
    %2036 = vmatmul.f32.gmra.mxu0 %v2009
    %v2037 = vpop.f32.mrf.mxu0
    %v2038 = vadd.f32 0.0, %v2037
    %2039 = vmatmul.f32.gmra.mxu0 %v2012
    %v2040 = vpop.f32.mrf.mxu0
    %v2041 = vadd.f32 0.0, %v2040
    %2042 = vdwg.mxu0
    %v2044 = vsel %vm302, %v1908, 0
    %v2047 = vsel %vm302, %v1909, 0
    %v2050 = vsel %vm302, %v1910, 0
    %v2053 = vsel %vm302, %v1911, 0
    %2055 = vmatpush.msra.mxu0 0.0
    %2056 = vmatpush.msra.mxu0 0.0
    %2057 = vmatpush.msra.mxu0 0.0
    %2058 = vmatpush.msra.mxu0 0.0
    %2059 = vmatpush.msra.mxu0 0.0
    %2060 = vmatpush.msra.mxu0 0.0
    %2061 = vmatpush.msra.mxu0 0.0
    %2062 = vmatpush.msra.mxu0 0.0
    %2063 = vmatpush.msra.mxu0 0.0
    %2064 = vmatpush.msra.mxu0 0.0
    %2065 = vmatpush.msra.mxu0 0.0
    %2066 = vmatpush.msra.mxu0 0.0
    %2067 = vmatpush.msra.mxu0 %v1907
    %2068 = vmatpush.msra.mxu0 %v1906
    %2069 = vmatpush.msra.mxu0 %v1905
    %2070 = vmatpush.msra.mxu0 %v1904
    %2071 = vmatmul.f32.gmra.mxu0 %v2044
    %v2072 = vpop.f32.mrf.mxu0
    %v2073 = vadd.f32 %v2032, %v2072
    %2074 = vmatmul.f32.gmra.mxu0 %v2047
    %v2075 = vpop.f32.mrf.mxu0
    %v2076 = vadd.f32 %v2035, %v2075
    %2077 = vmatmul.f32.gmra.mxu0 %v2050
    %v2078 = vpop.f32.mrf.mxu0
    %v2079 = vadd.f32 %v2038, %v2078
    %2080 = vmatmul.f32.gmra.mxu0 %v2053
    %v2081 = vpop.f32.mrf.mxu0
    %v2082 = vadd.f32 %v2041, %v2081
    %2083 = vdwg.mxu0
    %v2084 = vadd.s32 %v64, 1
    %vm2085 = vcmp.eq.s32.totalorder %v47, %v2084
    %vm2086 = vcmp.eq.s32.totalorder %v48, %v2084
    %vm2087 = vcmp.eq.s32.totalorder %v49, %v2084
    %vm2088 = vcmp.eq.s32.totalorder %v50, %v2084
    %vm2089 = vcmp.eq.s32.totalorder %v51, %v2084
    %vm2090 = vcmp.eq.s32.totalorder %v52, %v2084
    %vm2091 = vcmp.eq.s32.totalorder %v53, %v2084
    %vm2092 = vcmp.eq.s32.totalorder %v54, %v2084
    %vm2093 = vcmp.eq.s32.totalorder %v55, %v2084
    %vm2094 = vcmp.eq.s32.totalorder %v56, %v2084
    %vm2095 = vcmp.eq.s32.totalorder %v57, %v2084
    %vm2096 = vcmp.eq.s32.totalorder %v58, %v2084
    %vm2097 = vcmp.eq.s32.totalorder %v59, %v2084
    %vm2098 = vcmp.eq.s32.totalorder %v60, %v2084
    %vm2099 = vcmp.eq.s32.totalorder %v61, %v2084
    %v2100 = vsel %vm2085, 1, 0
    %v2101 = vsel %vm2086, 1, 0
    %v2102 = vsel %vm2087, 1, 0
    %v2103 = vsel %vm2088, 1, 0
    %v2104 = vsel %vm2089, 1, 0
    %v2105 = vsel %vm2090, 1, 0
    %v2106 = vsel %vm2091, 1, 0
    %v2107 = vsel %vm2092, 1, 0
    %v2108 = vsel %vm2093, 1, 0
    %v2109 = vsel %vm2094, 1, 0
    %v2110 = vsel %vm2095, 1, 0
    %v2111 = vsel %vm2096, 1, 0
    %v2112 = vsel %vm2097, 1, 0
    %v2113 = vsel %vm2098, 1, 0
    %v2114 = vsel %vm2099, 1, 0
    %v2115 = vcvt.s32.f32 %v2100
    %v2116 = vcvt.s32.f32 %v2101
    %v2117 = vcvt.s32.f32 %v2102
    %v2118 = vcvt.s32.f32 %v2103
    %v2119 = vcvt.s32.f32 %v2104
    %v2120 = vcvt.s32.f32 %v2105
    %v2121 = vcvt.s32.f32 %v2106
    %v2122 = vcvt.s32.f32 %v2107
    %v2123 = vcvt.s32.f32 %v2108
    %v2124 = vcvt.s32.f32 %v2109
    %v2125 = vcvt.s32.f32 %v2110
    %v2126 = vcvt.s32.f32 %v2111
    %v2127 = vcvt.s32.f32 %v2112
    %v2128 = vcvt.s32.f32 %v2113
    %v2129 = vcvt.s32.f32 %v2114
    %2130 = vmatpush.msra.mxu0 0.0
    %2131 = vmatpush.msra.mxu0 %v2129
    %2132 = vmatpush.msra.mxu0 %v2128
    %2133 = vmatpush.msra.mxu0 %v2127
    %2134 = vmatpush.msra.mxu0 %v2126
    %2135 = vmatpush.msra.mxu0 %v2125
    %2136 = vmatpush.msra.mxu0 %v2124
    %2137 = vmatpush.msra.mxu0 %v2123
    %2138 = vmatpush.msra.mxu0 %v2122
    %2139 = vmatpush.msra.mxu0 %v2121
    %2140 = vmatpush.msra.mxu0 %v2120
    %2141 = vmatpush.msra.mxu0 %v2119
    %2142 = vmatpush.msra.mxu0 %v2118
    %2143 = vmatpush.msra.mxu0 %v2117
    %2144 = vmatpush.msra.mxu0 %v2116
    %2145 = vmatpush.msra.mxu0 %v2115
    %2146 = vmatmul.f32.gmra.mxu0 %v1958
    %v2147 = vpop.f32.mrf.mxu0
    %v2148 = vadd.f32 0.0, %v2147
    %2149 = vmatmul.f32.gmra.mxu0 %v1961
    %v2150 = vpop.f32.mrf.mxu0
    %v2151 = vadd.f32 0.0, %v2150
    %2152 = vmatmul.f32.gmra.mxu0 %v1964
    %v2153 = vpop.f32.mrf.mxu0
    %v2154 = vadd.f32 0.0, %v2153
    %2155 = vmatmul.f32.gmra.mxu0 %v1967
    %v2156 = vpop.f32.mrf.mxu0
    %v2157 = vadd.f32 0.0, %v2156
    %2158 = vdwg.mxu0
    %s2159 = scalar_lea.vmem %s8, 32
    %v2160 = vld [vmem:[%s2159] sm:$0xff]
    %v2161 = vld [vmem:[%s2159 + $0x8] sm:$0xff]
    %v2162 = vld [vmem:[%s2159 + $0x10] sm:$0xff]
    %v2163 = vld [vmem:[%s2159 + $0x18] sm:$0xff]
    %v2165 = vsel %vm302, %v2160, 0
    %v2168 = vsel %vm302, %v2161, 0
    %v2171 = vsel %vm302, %v2162, 0
    %v2174 = vsel %vm302, %v2163, 0
    %2176 = vmatpush.msra.mxu0 0.0
    %2177 = vmatpush.msra.mxu0 0.0
    %2178 = vmatpush.msra.mxu0 0.0
    %2179 = vmatpush.msra.mxu0 0.0
    %2180 = vmatpush.msra.mxu0 0.0
    %2181 = vmatpush.msra.mxu0 0.0
    %2182 = vmatpush.msra.mxu0 0.0
    %2183 = vmatpush.msra.mxu0 0.0
    %2184 = vmatpush.msra.mxu0 0.0
    %2185 = vmatpush.msra.mxu0 0.0
    %2186 = vmatpush.msra.mxu0 0.0
    %2187 = vmatpush.msra.mxu0 0.0
    %2188 = vmatpush.msra.mxu0 %v2157
    %2189 = vmatpush.msra.mxu0 %v2154
    %2190 = vmatpush.msra.mxu0 %v2151
    %2191 = vmatpush.msra.mxu0 %v2148
    %2192 = vmatmul.f32.gmra.mxu0 %v2165
    %v2193 = vpop.f32.mrf.mxu0
    %v2194 = vadd.f32 0.0, %v2193
    %2195 = vmatmul.f32.gmra.mxu0 %v2168
    %v2196 = vpop.f32.mrf.mxu0
    %v2197 = vadd.f32 0.0, %v2196
    %2198 = vmatmul.f32.gmra.mxu0 %v2171
    %v2199 = vpop.f32.mrf.mxu0
    %v2200 = vadd.f32 0.0, %v2199
    %2201 = vmatmul.f32.gmra.mxu0 %v2174
    %v2202 = vpop.f32.mrf.mxu0
    %v2203 = vadd.f32 0.0, %v2202
    %2204 = vdwg.mxu0
    %v2205 = vadd.f32 %v2073, %v2194
    %v2206 = vadd.f32 %v2076, %v2197
    %v2207 = vadd.f32 %v2079, %v2200
    %v2208 = vadd.f32 %v2082, %v2203
    %v2209 = vadd.s32 %v64, 2
    %vm2210 = vcmp.eq.s32.totalorder %v47, %v2209
    %vm2211 = vcmp.eq.s32.totalorder %v48, %v2209
    %vm2212 = vcmp.eq.s32.totalorder %v49, %v2209
    %vm2213 = vcmp.eq.s32.totalorder %v50, %v2209
    %vm2214 = vcmp.eq.s32.totalorder %v51, %v2209
    %vm2215 = vcmp.eq.s32.totalorder %v52, %v2209
    %vm2216 = vcmp.eq.s32.totalorder %v53, %v2209
    %vm2217 = vcmp.eq.s32.totalorder %v54, %v2209
    %vm2218 = vcmp.eq.s32.totalorder %v55, %v2209
    %vm2219 = vcmp.eq.s32.totalorder %v56, %v2209
    %vm2220 = vcmp.eq.s32.totalorder %v57, %v2209
    %vm2221 = vcmp.eq.s32.totalorder %v58, %v2209
    %vm2222 = vcmp.eq.s32.totalorder %v59, %v2209
    %vm2223 = vcmp.eq.s32.totalorder %v60, %v2209
    %vm2224 = vcmp.eq.s32.totalorder %v61, %v2209
    %v2225 = vsel %vm2210, 1, 0
    %v2226 = vsel %vm2211, 1, 0
    %v2227 = vsel %vm2212, 1, 0
    %v2228 = vsel %vm2213, 1, 0
    %v2229 = vsel %vm2214, 1, 0
    %v2230 = vsel %vm2215, 1, 0
    %v2231 = vsel %vm2216, 1, 0
    %v2232 = vsel %vm2217, 1, 0
    %v2233 = vsel %vm2218, 1, 0
    %v2234 = vsel %vm2219, 1, 0
    %v2235 = vsel %vm2220, 1, 0
    %v2236 = vsel %vm2221, 1, 0
    %v2237 = vsel %vm2222, 1, 0
    %v2238 = vsel %vm2223, 1, 0
    %v2239 = vsel %vm2224, 1, 0
    %v2240 = vcvt.s32.f32 %v2225
    %v2241 = vcvt.s32.f32 %v2226
    %v2242 = vcvt.s32.f32 %v2227
    %v2243 = vcvt.s32.f32 %v2228
    %v2244 = vcvt.s32.f32 %v2229
    %v2245 = vcvt.s32.f32 %v2230
    %v2246 = vcvt.s32.f32 %v2231
    %v2247 = vcvt.s32.f32 %v2232
    %v2248 = vcvt.s32.f32 %v2233
    %v2249 = vcvt.s32.f32 %v2234
    %v2250 = vcvt.s32.f32 %v2235
    %v2251 = vcvt.s32.f32 %v2236
    %v2252 = vcvt.s32.f32 %v2237
    %v2253 = vcvt.s32.f32 %v2238
    %v2254 = vcvt.s32.f32 %v2239
    %2255 = vmatpush.msra.mxu0 0.0
    %2256 = vmatpush.msra.mxu0 %v2254
    %2257 = vmatpush.msra.mxu0 %v2253
    %2258 = vmatpush.msra.mxu0 %v2252
    %2259 = vmatpush.msra.mxu0 %v2251
    %2260 = vmatpush.msra.mxu0 %v2250
    %2261 = vmatpush.msra.mxu0 %v2249
    %2262 = vmatpush.msra.mxu0 %v2248
    %2263 = vmatpush.msra.mxu0 %v2247
    %2264 = vmatpush.msra.mxu0 %v2246
    %2265 = vmatpush.msra.mxu0 %v2245
    %2266 = vmatpush.msra.mxu0 %v2244
    %2267 = vmatpush.msra.mxu0 %v2243
    %2268 = vmatpush.msra.mxu0 %v2242
    %2269 = vmatpush.msra.mxu0 %v2241
    %2270 = vmatpush.msra.mxu0 %v2240
    %2271 = vmatmul.f32.gmra.mxu0 %v1958
    %v2272 = vpop.f32.mrf.mxu0
    %v2273 = vadd.f32 0.0, %v2272
    %2274 = vmatmul.f32.gmra.mxu0 %v1961
    %v2275 = vpop.f32.mrf.mxu0
    %v2276 = vadd.f32 0.0, %v2275
    %2277 = vmatmul.f32.gmra.mxu0 %v1964
    %v2278 = vpop.f32.mrf.mxu0
    %v2279 = vadd.f32 0.0, %v2278
    %2280 = vmatmul.f32.gmra.mxu0 %v1967
    %v2281 = vpop.f32.mrf.mxu0
    %v2282 = vadd.f32 0.0, %v2281
    %2283 = vdwg.mxu0
    %s2284 = scalar_lea.vmem %s8, 64
    %v2285 = vld [vmem:[%s2284] sm:$0xff]
    %v2286 = vld [vmem:[%s2284 + $0x8] sm:$0xff]
    %v2287 = vld [vmem:[%s2284 + $0x10] sm:$0xff]
    %v2288 = vld [vmem:[%s2284 + $0x18] sm:$0xff]
    %v2290 = vsel %vm302, %v2285, 0
    %v2293 = vsel %vm302, %v2286, 0
    %v2296 = vsel %vm302, %v2287, 0
    %v2299 = vsel %vm302, %v2288, 0
    %2301 = vmatpush.msra.mxu0 0.0
    %2302 = vmatpush.msra.mxu0 0.0
    %2303 = vmatpush.msra.mxu0 0.0
    %2304 = vmatpush.msra.mxu0 0.0
    %2305 = vmatpush.msra.mxu0 0.0
    %2306 = vmatpush.msra.mxu0 0.0
    %2307 = vmatpush.msra.mxu0 0.0
    %2308 = vmatpush.msra.mxu0 0.0
    %2309 = vmatpush.msra.mxu0 0.0
    %2310 = vmatpush.msra.mxu0 0.0
    %2311 = vmatpush.msra.mxu0 0.0
    %2312 = vmatpush.msra.mxu0 0.0
    %2313 = vmatpush.msra.mxu0 %v2282
    %2314 = vmatpush.msra.mxu0 %v2279
    %2315 = vmatpush.msra.mxu0 %v2276
    %2316 = vmatpush.msra.mxu0 %v2273
    %2317 = vmatmul.f32.gmra.mxu0 %v2290
    %v2318 = vpop.f32.mrf.mxu0
    %v2319 = vadd.f32 0.0, %v2318
    %2320 = vmatmul.f32.gmra.mxu0 %v2293
    %v2321 = vpop.f32.mrf.mxu0
    %v2322 = vadd.f32 0.0, %v2321
    %2323 = vmatmul.f32.gmra.mxu0 %v2296
    %v2324 = vpop.f32.mrf.mxu0
    %v2325 = vadd.f32 0.0, %v2324
    %2326 = vmatmul.f32.gmra.mxu0 %v2299
    %v2327 = vpop.f32.mrf.mxu0
    %v2328 = vadd.f32 0.0, %v2327
    %2329 = vdwg.mxu0
    %v2330 = vadd.f32 %v2205, %v2319
    %v2331 = vadd.f32 %v2206, %v2322
    %v2332 = vadd.f32 %v2207, %v2325
    %v2333 = vadd.f32 %v2208, %v2328
    %v2334 = vadd.s32 %v64, 3
    %vm2335 = vcmp.eq.s32.totalorder %v47, %v2334
    %vm2336 = vcmp.eq.s32.totalorder %v48, %v2334
    %vm2337 = vcmp.eq.s32.totalorder %v49, %v2334
    %vm2338 = vcmp.eq.s32.totalorder %v50, %v2334
    %vm2339 = vcmp.eq.s32.totalorder %v51, %v2334
    %vm2340 = vcmp.eq.s32.totalorder %v52, %v2334
    %vm2341 = vcmp.eq.s32.totalorder %v53, %v2334
    %vm2342 = vcmp.eq.s32.totalorder %v54, %v2334
    %vm2343 = vcmp.eq.s32.totalorder %v55, %v2334
    %vm2344 = vcmp.eq.s32.totalorder %v56, %v2334
    %vm2345 = vcmp.eq.s32.totalorder %v57, %v2334
    %vm2346 = vcmp.eq.s32.totalorder %v58, %v2334
    %vm2347 = vcmp.eq.s32.totalorder %v59, %v2334
    %vm2348 = vcmp.eq.s32.totalorder %v60, %v2334
    %vm2349 = vcmp.eq.s32.totalorder %v61, %v2334
    %v2350 = vsel %vm2335, 1, 0
    %v2351 = vsel %vm2336, 1, 0
    %v2352 = vsel %vm2337, 1, 0
    %v2353 = vsel %vm2338, 1, 0
    %v2354 = vsel %vm2339, 1, 0
    %v2355 = vsel %vm2340, 1, 0
    %v2356 = vsel %vm2341, 1, 0
    %v2357 = vsel %vm2342, 1, 0
    %v2358 = vsel %vm2343, 1, 0
    %v2359 = vsel %vm2344, 1, 0
    %v2360 = vsel %vm2345, 1, 0
    %v2361 = vsel %vm2346, 1, 0
    %v2362 = vsel %vm2347, 1, 0
    %v2363 = vsel %vm2348, 1, 0
    %v2364 = vsel %vm2349, 1, 0
    %v2365 = vcvt.s32.f32 %v2350
    %v2366 = vcvt.s32.f32 %v2351
    %v2367 = vcvt.s32.f32 %v2352
    %v2368 = vcvt.s32.f32 %v2353
    %v2369 = vcvt.s32.f32 %v2354
    %v2370 = vcvt.s32.f32 %v2355
    %v2371 = vcvt.s32.f32 %v2356
    %v2372 = vcvt.s32.f32 %v2357
    %v2373 = vcvt.s32.f32 %v2358
    %v2374 = vcvt.s32.f32 %v2359
    %v2375 = vcvt.s32.f32 %v2360
    %v2376 = vcvt.s32.f32 %v2361
    %v2377 = vcvt.s32.f32 %v2362
    %v2378 = vcvt.s32.f32 %v2363
    %v2379 = vcvt.s32.f32 %v2364
    %2380 = vmatpush.msra.mxu0 0.0
    %2381 = vmatpush.msra.mxu0 %v2379
    %2382 = vmatpush.msra.mxu0 %v2378
    %2383 = vmatpush.msra.mxu0 %v2377
    %2384 = vmatpush.msra.mxu0 %v2376
    %2385 = vmatpush.msra.mxu0 %v2375
    %2386 = vmatpush.msra.mxu0 %v2374
    %2387 = vmatpush.msra.mxu0 %v2373
    %2388 = vmatpush.msra.mxu0 %v2372
    %2389 = vmatpush.msra.mxu0 %v2371
    %2390 = vmatpush.msra.mxu0 %v2370
    %2391 = vmatpush.msra.mxu0 %v2369
    %2392 = vmatpush.msra.mxu0 %v2368
    %2393 = vmatpush.msra.mxu0 %v2367
    %2394 = vmatpush.msra.mxu0 %v2366
    %2395 = vmatpush.msra.mxu0 %v2365
    %2396 = vmatmul.f32.gmra.mxu0 %v1958
    %v2397 = vpop.f32.mrf.mxu0
    %v2398 = vadd.f32 0.0, %v2397
    %2399 = vmatmul.f32.gmra.mxu0 %v1961
    %v2400 = vpop.f32.mrf.mxu0
    %v2401 = vadd.f32 0.0, %v2400
    %2402 = vmatmul.f32.gmra.mxu0 %v1964
    %v2403 = vpop.f32.mrf.mxu0
    %v2404 = vadd.f32 0.0, %v2403
    %2405 = vmatmul.f32.gmra.mxu0 %v1967
    %v2406 = vpop.f32.mrf.mxu0
    %v2407 = vadd.f32 0.0, %v2406
    %2408 = vdwg.mxu0
    %s2409 = scalar_lea.vmem %s8, 96
    %v2410 = vld [vmem:[%s2409] sm:$0xff]
    %v2411 = vld [vmem:[%s2409 + $0x8] sm:$0xff]
    %v2412 = vld [vmem:[%s2409 + $0x10] sm:$0xff]
    %v2413 = vld [vmem:[%s2409 + $0x18] sm:$0xff]
    %v2415 = vsel %vm302, %v2410, 0
    %v2418 = vsel %vm302, %v2411, 0
    %v2421 = vsel %vm302, %v2412, 0
    %v2424 = vsel %vm302, %v2413, 0
    %2426 = vmatpush.msra.mxu0 0.0
    %2427 = vmatpush.msra.mxu0 0.0
    %2428 = vmatpush.msra.mxu0 0.0
    %2429 = vmatpush.msra.mxu0 0.0
    %2430 = vmatpush.msra.mxu0 0.0
    %2431 = vmatpush.msra.mxu0 0.0
    %2432 = vmatpush.msra.mxu0 0.0
    %2433 = vmatpush.msra.mxu0 0.0
    %2434 = vmatpush.msra.mxu0 0.0
    %2435 = vmatpush.msra.mxu0 0.0
    %2436 = vmatpush.msra.mxu0 0.0
    %2437 = vmatpush.msra.mxu0 0.0
    %2438 = vmatpush.msra.mxu0 %v2407
    %2439 = vmatpush.msra.mxu0 %v2404
    %2440 = vmatpush.msra.mxu0 %v2401
    %2441 = vmatpush.msra.mxu0 %v2398
    %2442 = vmatmul.f32.gmra.mxu0 %v2415
    %v2443 = vpop.f32.mrf.mxu0
    %v2444 = vadd.f32 0.0, %v2443
    %2445 = vmatmul.f32.gmra.mxu0 %v2418
    %v2446 = vpop.f32.mrf.mxu0
    %v2447 = vadd.f32 0.0, %v2446
    %2448 = vmatmul.f32.gmra.mxu0 %v2421
    %v2449 = vpop.f32.mrf.mxu0
    %v2450 = vadd.f32 0.0, %v2449
    %2451 = vmatmul.f32.gmra.mxu0 %v2424
    %v2452 = vpop.f32.mrf.mxu0
    %v2453 = vadd.f32 0.0, %v2452
    %2454 = vdwg.mxu0
    %v2455 = vadd.f32 %v2330, %v2444
    %v2456 = vadd.f32 %v2331, %v2447
    %v2457 = vadd.f32 %v2332, %v2450
    %v2458 = vadd.f32 %v2333, %v2453
    %v2459 = vadd.s32 %v64, 4
    %vm2460 = vcmp.eq.s32.totalorder %v47, %v2459
    %vm2461 = vcmp.eq.s32.totalorder %v48, %v2459
    %vm2462 = vcmp.eq.s32.totalorder %v49, %v2459
    %vm2463 = vcmp.eq.s32.totalorder %v50, %v2459
    %vm2464 = vcmp.eq.s32.totalorder %v51, %v2459
    %vm2465 = vcmp.eq.s32.totalorder %v52, %v2459
    %vm2466 = vcmp.eq.s32.totalorder %v53, %v2459
    %vm2467 = vcmp.eq.s32.totalorder %v54, %v2459
    %vm2468 = vcmp.eq.s32.totalorder %v55, %v2459
    %vm2469 = vcmp.eq.s32.totalorder %v56, %v2459
    %vm2470 = vcmp.eq.s32.totalorder %v57, %v2459
    %vm2471 = vcmp.eq.s32.totalorder %v58, %v2459
    %vm2472 = vcmp.eq.s32.totalorder %v59, %v2459
    %vm2473 = vcmp.eq.s32.totalorder %v60, %v2459
    %vm2474 = vcmp.eq.s32.totalorder %v61, %v2459
    %v2475 = vsel %vm2460, 1, 0
    %v2476 = vsel %vm2461, 1, 0
    %v2477 = vsel %vm2462, 1, 0
    %v2478 = vsel %vm2463, 1, 0
    %v2479 = vsel %vm2464, 1, 0
    %v2480 = vsel %vm2465, 1, 0
    %v2481 = vsel %vm2466, 1, 0
    %v2482 = vsel %vm2467, 1, 0
    %v2483 = vsel %vm2468, 1, 0
    %v2484 = vsel %vm2469, 1, 0
    %v2485 = vsel %vm2470, 1, 0
    %v2486 = vsel %vm2471, 1, 0
    %v2487 = vsel %vm2472, 1, 0
    %v2488 = vsel %vm2473, 1, 0
    %v2489 = vsel %vm2474, 1, 0
    %v2490 = vcvt.s32.f32 %v2475
    %v2491 = vcvt.s32.f32 %v2476
    %v2492 = vcvt.s32.f32 %v2477
    %v2493 = vcvt.s32.f32 %v2478
    %v2494 = vcvt.s32.f32 %v2479
    %v2495 = vcvt.s32.f32 %v2480
    %v2496 = vcvt.s32.f32 %v2481
    %v2497 = vcvt.s32.f32 %v2482
    %v2498 = vcvt.s32.f32 %v2483
    %v2499 = vcvt.s32.f32 %v2484
    %v2500 = vcvt.s32.f32 %v2485
    %v2501 = vcvt.s32.f32 %v2486
    %v2502 = vcvt.s32.f32 %v2487
    %v2503 = vcvt.s32.f32 %v2488
    %v2504 = vcvt.s32.f32 %v2489
    %2505 = vmatpush.msra.mxu0 0.0
    %2506 = vmatpush.msra.mxu0 %v2504
    %2507 = vmatpush.msra.mxu0 %v2503
    %2508 = vmatpush.msra.mxu0 %v2502
    %2509 = vmatpush.msra.mxu0 %v2501
    %2510 = vmatpush.msra.mxu0 %v2500
    %2511 = vmatpush.msra.mxu0 %v2499
    %2512 = vmatpush.msra.mxu0 %v2498
    %2513 = vmatpush.msra.mxu0 %v2497
    %2514 = vmatpush.msra.mxu0 %v2496
    %2515 = vmatpush.msra.mxu0 %v2495
    %2516 = vmatpush.msra.mxu0 %v2494
    %2517 = vmatpush.msra.mxu0 %v2493
    %2518 = vmatpush.msra.mxu0 %v2492
    %2519 = vmatpush.msra.mxu0 %v2491
    %2520 = vmatpush.msra.mxu0 %v2490
    %2521 = vmatmul.f32.gmra.mxu0 %v1958
    %v2522 = vpop.f32.mrf.mxu0
    %v2523 = vadd.f32 0.0, %v2522
    %2524 = vmatmul.f32.gmra.mxu0 %v1961
    %v2525 = vpop.f32.mrf.mxu0
    %v2526 = vadd.f32 0.0, %v2525
    %2527 = vmatmul.f32.gmra.mxu0 %v1964
    %v2528 = vpop.f32.mrf.mxu0
    %v2529 = vadd.f32 0.0, %v2528
    %2530 = vmatmul.f32.gmra.mxu0 %v1967
    %v2531 = vpop.f32.mrf.mxu0
    %v2532 = vadd.f32 0.0, %v2531
    %2533 = vdwg.mxu0
    %s2534 = scalar_lea.vmem %s8, 128
    %v2535 = vld [vmem:[%s2534] sm:$0xff]
    %v2536 = vld [vmem:[%s2534 + $0x8] sm:$0xff]
    %v2537 = vld [vmem:[%s2534 + $0x10] sm:$0xff]
    %v2538 = vld [vmem:[%s2534 + $0x18] sm:$0xff]
    %v2540 = vsel %vm302, %v2535, 0
    %v2543 = vsel %vm302, %v2536, 0
    %v2546 = vsel %vm302, %v2537, 0
    %v2549 = vsel %vm302, %v2538, 0
    %2551 = vmatpush.msra.mxu0 0.0
    %2552 = vmatpush.msra.mxu0 0.0
    %2553 = vmatpush.msra.mxu0 0.0
    %2554 = vmatpush.msra.mxu0 0.0
    %2555 = vmatpush.msra.mxu0 0.0
    %2556 = vmatpush.msra.mxu0 0.0
    %2557 = vmatpush.msra.mxu0 0.0
    %2558 = vmatpush.msra.mxu0 0.0
    %2559 = vmatpush.msra.mxu0 0.0
    %2560 = vmatpush.msra.mxu0 0.0
    %2561 = vmatpush.msra.mxu0 0.0
    %2562 = vmatpush.msra.mxu0 0.0
    %2563 = vmatpush.msra.mxu0 %v2532
    %2564 = vmatpush.msra.mxu0 %v2529
    %2565 = vmatpush.msra.mxu0 %v2526
    %2566 = vmatpush.msra.mxu0 %v2523
    %2567 = vmatmul.f32.gmra.mxu0 %v2540
    %v2568 = vpop.f32.mrf.mxu0
    %v2569 = vadd.f32 0.0, %v2568
    %2570 = vmatmul.f32.gmra.mxu0 %v2543
    %v2571 = vpop.f32.mrf.mxu0
    %v2572 = vadd.f32 0.0, %v2571
    %2573 = vmatmul.f32.gmra.mxu0 %v2546
    %v2574 = vpop.f32.mrf.mxu0
    %v2575 = vadd.f32 0.0, %v2574
    %2576 = vmatmul.f32.gmra.mxu0 %v2549
    %v2577 = vpop.f32.mrf.mxu0
    %v2578 = vadd.f32 0.0, %v2577
    %2579 = vdwg.mxu0
    %v2580 = vadd.f32 %v2455, %v2569
    %v2581 = vadd.f32 %v2456, %v2572
    %v2582 = vadd.f32 %v2457, %v2575
    %v2583 = vadd.f32 %v2458, %v2578
    %v2584 = vadd.s32 %v64, 5
    %vm2585 = vcmp.eq.s32.totalorder %v47, %v2584
    %vm2586 = vcmp.eq.s32.totalorder %v48, %v2584
    %vm2587 = vcmp.eq.s32.totalorder %v49, %v2584
    %vm2588 = vcmp.eq.s32.totalorder %v50, %v2584
    %vm2589 = vcmp.eq.s32.totalorder %v51, %v2584
    %vm2590 = vcmp.eq.s32.totalorder %v52, %v2584
    %vm2591 = vcmp.eq.s32.totalorder %v53, %v2584
    %vm2592 = vcmp.eq.s32.totalorder %v54, %v2584
    %vm2593 = vcmp.eq.s32.totalorder %v55, %v2584
    %vm2594 = vcmp.eq.s32.totalorder %v56, %v2584
    %vm2595 = vcmp.eq.s32.totalorder %v57, %v2584
    %vm2596 = vcmp.eq.s32.totalorder %v58, %v2584
    %vm2597 = vcmp.eq.s32.totalorder %v59, %v2584
    %vm2598 = vcmp.eq.s32.totalorder %v60, %v2584
    %vm2599 = vcmp.eq.s32.totalorder %v61, %v2584
    %v2600 = vsel %vm2585, 1, 0
    %v2601 = vsel %vm2586, 1, 0
    %v2602 = vsel %vm2587, 1, 0
    %v2603 = vsel %vm2588, 1, 0
    %v2604 = vsel %vm2589, 1, 0
    %v2605 = vsel %vm2590, 1, 0
    %v2606 = vsel %vm2591, 1, 0
    %v2607 = vsel %vm2592, 1, 0
    %v2608 = vsel %vm2593, 1, 0
    %v2609 = vsel %vm2594, 1, 0
    %v2610 = vsel %vm2595, 1, 0
    %v2611 = vsel %vm2596, 1, 0
    %v2612 = vsel %vm2597, 1, 0
    %v2613 = vsel %vm2598, 1, 0
    %v2614 = vsel %vm2599, 1, 0
    %v2615 = vcvt.s32.f32 %v2600
    %v2616 = vcvt.s32.f32 %v2601
    %v2617 = vcvt.s32.f32 %v2602
    %v2618 = vcvt.s32.f32 %v2603
    %v2619 = vcvt.s32.f32 %v2604
    %v2620 = vcvt.s32.f32 %v2605
    %v2621 = vcvt.s32.f32 %v2606
    %v2622 = vcvt.s32.f32 %v2607
    %v2623 = vcvt.s32.f32 %v2608
    %v2624 = vcvt.s32.f32 %v2609
    %v2625 = vcvt.s32.f32 %v2610
    %v2626 = vcvt.s32.f32 %v2611
    %v2627 = vcvt.s32.f32 %v2612
    %v2628 = vcvt.s32.f32 %v2613
    %v2629 = vcvt.s32.f32 %v2614
    %2630 = vmatpush.msra.mxu0 0.0
    %2631 = vmatpush.msra.mxu0 %v2629
    %2632 = vmatpush.msra.mxu0 %v2628
    %2633 = vmatpush.msra.mxu0 %v2627
    %2634 = vmatpush.msra.mxu0 %v2626
    %2635 = vmatpush.msra.mxu0 %v2625
    %2636 = vmatpush.msra.mxu0 %v2624
    %2637 = vmatpush.msra.mxu0 %v2623
    %2638 = vmatpush.msra.mxu0 %v2622
    %2639 = vmatpush.msra.mxu0 %v2621
    %2640 = vmatpush.msra.mxu0 %v2620
    %2641 = vmatpush.msra.mxu0 %v2619
    %2642 = vmatpush.msra.mxu0 %v2618
    %2643 = vmatpush.msra.mxu0 %v2617
    %2644 = vmatpush.msra.mxu0 %v2616
    %2645 = vmatpush.msra.mxu0 %v2615
    %2646 = vmatmul.f32.gmra.mxu0 %v1958
    %v2647 = vpop.f32.mrf.mxu0
    %v2648 = vadd.f32 0.0, %v2647
    %2649 = vmatmul.f32.gmra.mxu0 %v1961
    %v2650 = vpop.f32.mrf.mxu0
    %v2651 = vadd.f32 0.0, %v2650
    %2652 = vmatmul.f32.gmra.mxu0 %v1964
    %v2653 = vpop.f32.mrf.mxu0
    %v2654 = vadd.f32 0.0, %v2653
    %2655 = vmatmul.f32.gmra.mxu0 %v1967
    %v2656 = vpop.f32.mrf.mxu0
    %v2657 = vadd.f32 0.0, %v2656
    %2658 = vdwg.mxu0
    %s2659 = scalar_lea.vmem %s8, 160
    %v2660 = vld [vmem:[%s2659] sm:$0xff]
    %v2661 = vld [vmem:[%s2659 + $0x8] sm:$0xff]
    %v2662 = vld [vmem:[%s2659 + $0x10] sm:$0xff]
    %v2663 = vld [vmem:[%s2659 + $0x18] sm:$0xff]
    %v2665 = vsel %vm302, %v2660, 0
    %v2668 = vsel %vm302, %v2661, 0
    %v2671 = vsel %vm302, %v2662, 0
    %v2674 = vsel %vm302, %v2663, 0
    %2676 = vmatpush.msra.mxu0 0.0
    %2677 = vmatpush.msra.mxu0 0.0
    %2678 = vmatpush.msra.mxu0 0.0
    %2679 = vmatpush.msra.mxu0 0.0
    %2680 = vmatpush.msra.mxu0 0.0
    %2681 = vmatpush.msra.mxu0 0.0
    %2682 = vmatpush.msra.mxu0 0.0
    %2683 = vmatpush.msra.mxu0 0.0
    %2684 = vmatpush.msra.mxu0 0.0
    %2685 = vmatpush.msra.mxu0 0.0
    %2686 = vmatpush.msra.mxu0 0.0
    %2687 = vmatpush.msra.mxu0 0.0
    %2688 = vmatpush.msra.mxu0 %v2657
    %2689 = vmatpush.msra.mxu0 %v2654
    %2690 = vmatpush.msra.mxu0 %v2651
    %2691 = vmatpush.msra.mxu0 %v2648
    %2692 = vmatmul.f32.gmra.mxu0 %v2665
    %v2693 = vpop.f32.mrf.mxu0
    %v2694 = vadd.f32 0.0, %v2693
    %2695 = vmatmul.f32.gmra.mxu0 %v2668
    %v2696 = vpop.f32.mrf.mxu0
    %v2697 = vadd.f32 0.0, %v2696
    %2698 = vmatmul.f32.gmra.mxu0 %v2671
    %v2699 = vpop.f32.mrf.mxu0
    %v2700 = vadd.f32 0.0, %v2699
    %2701 = vmatmul.f32.gmra.mxu0 %v2674
    %v2702 = vpop.f32.mrf.mxu0
    %v2703 = vadd.f32 0.0, %v2702
    %2704 = vdwg.mxu0
    %v2705 = vadd.f32 %v2580, %v2694
    %v2706 = vadd.f32 %v2581, %v2697
    %v2707 = vadd.f32 %v2582, %v2700
    %v2708 = vadd.f32 %v2583, %v2703
    %v2709 = vadd.s32 %v64, 6
    %vm2710 = vcmp.eq.s32.totalorder %v47, %v2709
    %vm2711 = vcmp.eq.s32.totalorder %v48, %v2709
    %vm2712 = vcmp.eq.s32.totalorder %v49, %v2709
    %vm2713 = vcmp.eq.s32.totalorder %v50, %v2709
    %vm2714 = vcmp.eq.s32.totalorder %v51, %v2709
    %vm2715 = vcmp.eq.s32.totalorder %v52, %v2709
    %vm2716 = vcmp.eq.s32.totalorder %v53, %v2709
    %vm2717 = vcmp.eq.s32.totalorder %v54, %v2709
    %vm2718 = vcmp.eq.s32.totalorder %v55, %v2709
    %vm2719 = vcmp.eq.s32.totalorder %v56, %v2709
    %vm2720 = vcmp.eq.s32.totalorder %v57, %v2709
    %vm2721 = vcmp.eq.s32.totalorder %v58, %v2709
    %vm2722 = vcmp.eq.s32.totalorder %v59, %v2709
    %vm2723 = vcmp.eq.s32.totalorder %v60, %v2709
    %vm2724 = vcmp.eq.s32.totalorder %v61, %v2709
    %v2725 = vsel %vm2710, 1, 0
    %v2726 = vsel %vm2711, 1, 0
    %v2727 = vsel %vm2712, 1, 0
    %v2728 = vsel %vm2713, 1, 0
    %v2729 = vsel %vm2714, 1, 0
    %v2730 = vsel %vm2715, 1, 0
    %v2731 = vsel %vm2716, 1, 0
    %v2732 = vsel %vm2717, 1, 0
    %v2733 = vsel %vm2718, 1, 0
    %v2734 = vsel %vm2719, 1, 0
    %v2735 = vsel %vm2720, 1, 0
    %v2736 = vsel %vm2721, 1, 0
    %v2737 = vsel %vm2722, 1, 0
    %v2738 = vsel %vm2723, 1, 0
    %v2739 = vsel %vm2724, 1, 0
    %v2740 = vcvt.s32.f32 %v2725
    %v2741 = vcvt.s32.f32 %v2726
    %v2742 = vcvt.s32.f32 %v2727
    %v2743 = vcvt.s32.f32 %v2728
    %v2744 = vcvt.s32.f32 %v2729
    %v2745 = vcvt.s32.f32 %v2730
    %v2746 = vcvt.s32.f32 %v2731
    %v2747 = vcvt.s32.f32 %v2732
    %v2748 = vcvt.s32.f32 %v2733
    %v2749 = vcvt.s32.f32 %v2734
    %v2750 = vcvt.s32.f32 %v2735
    %v2751 = vcvt.s32.f32 %v2736
    %v2752 = vcvt.s32.f32 %v2737
    %v2753 = vcvt.s32.f32 %v2738
    %v2754 = vcvt.s32.f32 %v2739
    %2755 = vmatpush.msra.mxu0 0.0
    %2756 = vmatpush.msra.mxu0 %v2754
    %2757 = vmatpush.msra.mxu0 %v2753
    %2758 = vmatpush.msra.mxu0 %v2752
    %2759 = vmatpush.msra.mxu0 %v2751
    %2760 = vmatpush.msra.mxu0 %v2750
    %2761 = vmatpush.msra.mxu0 %v2749
    %2762 = vmatpush.msra.mxu0 %v2748
    %2763 = vmatpush.msra.mxu0 %v2747
    %2764 = vmatpush.msra.mxu0 %v2746
    %2765 = vmatpush.msra.mxu0 %v2745
    %2766 = vmatpush.msra.mxu0 %v2744
    %2767 = vmatpush.msra.mxu0 %v2743
    %2768 = vmatpush.msra.mxu0 %v2742
    %2769 = vmatpush.msra.mxu0 %v2741
    %2770 = vmatpush.msra.mxu0 %v2740
    %2771 = vmatmul.f32.gmra.mxu0 %v1958
    %v2772 = vpop.f32.mrf.mxu0
    %v2773 = vadd.f32 0.0, %v2772
    %2774 = vmatmul.f32.gmra.mxu0 %v1961
    %v2775 = vpop.f32.mrf.mxu0
    %v2776 = vadd.f32 0.0, %v2775
    %2777 = vmatmul.f32.gmra.mxu0 %v1964
    %v2778 = vpop.f32.mrf.mxu0
    %v2779 = vadd.f32 0.0, %v2778
    %2780 = vmatmul.f32.gmra.mxu0 %v1967
    %v2781 = vpop.f32.mrf.mxu0
    %v2782 = vadd.f32 0.0, %v2781
    %2783 = vdwg.mxu0
    %s2784 = scalar_lea.vmem %s8, 192
    %v2785 = vld [vmem:[%s2784] sm:$0xff]
    %v2786 = vld [vmem:[%s2784 + $0x8] sm:$0xff]
    %v2787 = vld [vmem:[%s2784 + $0x10] sm:$0xff]
    %v2788 = vld [vmem:[%s2784 + $0x18] sm:$0xff]
    %v2790 = vsel %vm302, %v2785, 0
    %v2793 = vsel %vm302, %v2786, 0
    %v2796 = vsel %vm302, %v2787, 0
    %v2799 = vsel %vm302, %v2788, 0
    %2801 = vmatpush.msra.mxu0 0.0
    %2802 = vmatpush.msra.mxu0 0.0
    %2803 = vmatpush.msra.mxu0 0.0
    %2804 = vmatpush.msra.mxu0 0.0
    %2805 = vmatpush.msra.mxu0 0.0
    %2806 = vmatpush.msra.mxu0 0.0
    %2807 = vmatpush.msra.mxu0 0.0
    %2808 = vmatpush.msra.mxu0 0.0
    %2809 = vmatpush.msra.mxu0 0.0
    %2810 = vmatpush.msra.mxu0 0.0
    %2811 = vmatpush.msra.mxu0 0.0
    %2812 = vmatpush.msra.mxu0 0.0
    %2813 = vmatpush.msra.mxu0 %v2782
    %2814 = vmatpush.msra.mxu0 %v2779
    %2815 = vmatpush.msra.mxu0 %v2776
    %2816 = vmatpush.msra.mxu0 %v2773
    %2817 = vmatmul.f32.gmra.mxu0 %v2790
    %v2818 = vpop.f32.mrf.mxu0
    %v2819 = vadd.f32 0.0, %v2818
    %2820 = vmatmul.f32.gmra.mxu0 %v2793
    %v2821 = vpop.f32.mrf.mxu0
    %v2822 = vadd.f32 0.0, %v2821
    %2823 = vmatmul.f32.gmra.mxu0 %v2796
    %v2824 = vpop.f32.mrf.mxu0
    %v2825 = vadd.f32 0.0, %v2824
    %2826 = vmatmul.f32.gmra.mxu0 %v2799
    %v2827 = vpop.f32.mrf.mxu0
    %v2828 = vadd.f32 0.0, %v2827
    %2829 = vdwg.mxu0
    %v2830 = vadd.f32 %v2705, %v2819
    %v2831 = vadd.f32 %v2706, %v2822
    %v2832 = vadd.f32 %v2707, %v2825
    %v2833 = vadd.f32 %v2708, %v2828
    %v2834 = vadd.s32 %v64, 7
    %vm2835 = vcmp.eq.s32.totalorder %v47, %v2834
    %vm2836 = vcmp.eq.s32.totalorder %v48, %v2834
    %vm2837 = vcmp.eq.s32.totalorder %v49, %v2834
    %vm2838 = vcmp.eq.s32.totalorder %v50, %v2834
    %vm2839 = vcmp.eq.s32.totalorder %v51, %v2834
    %vm2840 = vcmp.eq.s32.totalorder %v52, %v2834
    %vm2841 = vcmp.eq.s32.totalorder %v53, %v2834
    %vm2842 = vcmp.eq.s32.totalorder %v54, %v2834
    %vm2843 = vcmp.eq.s32.totalorder %v55, %v2834
    %vm2844 = vcmp.eq.s32.totalorder %v56, %v2834
    %vm2845 = vcmp.eq.s32.totalorder %v57, %v2834
    %vm2846 = vcmp.eq.s32.totalorder %v58, %v2834
    %vm2847 = vcmp.eq.s32.totalorder %v59, %v2834
    %vm2848 = vcmp.eq.s32.totalorder %v60, %v2834
    %vm2849 = vcmp.eq.s32.totalorder %v61, %v2834
    %v2850 = vsel %vm2835, 1, 0
    %v2851 = vsel %vm2836, 1, 0
    %v2852 = vsel %vm2837, 1, 0
    %v2853 = vsel %vm2838, 1, 0
    %v2854 = vsel %vm2839, 1, 0
    %v2855 = vsel %vm2840, 1, 0
    %v2856 = vsel %vm2841, 1, 0
    %v2857 = vsel %vm2842, 1, 0
    %v2858 = vsel %vm2843, 1, 0
    %v2859 = vsel %vm2844, 1, 0
    %v2860 = vsel %vm2845, 1, 0
    %v2861 = vsel %vm2846, 1, 0
    %v2862 = vsel %vm2847, 1, 0
    %v2863 = vsel %vm2848, 1, 0
    %v2864 = vsel %vm2849, 1, 0
    %v2865 = vcvt.s32.f32 %v2850
    %v2866 = vcvt.s32.f32 %v2851
    %v2867 = vcvt.s32.f32 %v2852
    %v2868 = vcvt.s32.f32 %v2853
    %v2869 = vcvt.s32.f32 %v2854
    %v2870 = vcvt.s32.f32 %v2855
    %v2871 = vcvt.s32.f32 %v2856
    %v2872 = vcvt.s32.f32 %v2857
    %v2873 = vcvt.s32.f32 %v2858
    %v2874 = vcvt.s32.f32 %v2859
    %v2875 = vcvt.s32.f32 %v2860
    %v2876 = vcvt.s32.f32 %v2861
    %v2877 = vcvt.s32.f32 %v2862
    %v2878 = vcvt.s32.f32 %v2863
    %v2879 = vcvt.s32.f32 %v2864
    %2880 = vmatpush.msra.mxu0 0.0
    %2881 = vmatpush.msra.mxu0 %v2879
    %2882 = vmatpush.msra.mxu0 %v2878
    %2883 = vmatpush.msra.mxu0 %v2877
    %2884 = vmatpush.msra.mxu0 %v2876
    %2885 = vmatpush.msra.mxu0 %v2875
    %2886 = vmatpush.msra.mxu0 %v2874
    %2887 = vmatpush.msra.mxu0 %v2873
    %2888 = vmatpush.msra.mxu0 %v2872
    %2889 = vmatpush.msra.mxu0 %v2871
    %2890 = vmatpush.msra.mxu0 %v2870
    %2891 = vmatpush.msra.mxu0 %v2869
    %2892 = vmatpush.msra.mxu0 %v2868
    %2893 = vmatpush.msra.mxu0 %v2867
    %2894 = vmatpush.msra.mxu0 %v2866
    %2895 = vmatpush.msra.mxu0 %v2865
    %2896 = vmatmul.f32.gmra.mxu0 %v1958
    %v2897 = vpop.f32.mrf.mxu0
    %v2898 = vadd.f32 0.0, %v2897
    %2899 = vmatmul.f32.gmra.mxu0 %v1961
    %v2900 = vpop.f32.mrf.mxu0
    %v2901 = vadd.f32 0.0, %v2900
    %2902 = vmatmul.f32.gmra.mxu0 %v1964
    %v2903 = vpop.f32.mrf.mxu0
    %v2904 = vadd.f32 0.0, %v2903
    %2905 = vmatmul.f32.gmra.mxu0 %v1967
    %v2906 = vpop.f32.mrf.mxu0
    %v2907 = vadd.f32 0.0, %v2906
    %2908 = vdwg.mxu0
    %s2909 = scalar_lea.vmem %s8, 224
    %v2910 = vld [vmem:[%s2909] sm:$0xff]
    %v2911 = vld [vmem:[%s2909 + $0x8] sm:$0xff]
    %v2912 = vld [vmem:[%s2909 + $0x10] sm:$0xff]
    %v2913 = vld [vmem:[%s2909 + $0x18] sm:$0xff]
    %v2915 = vsel %vm302, %v2910, 0
    %v2918 = vsel %vm302, %v2911, 0
    %v2921 = vsel %vm302, %v2912, 0
    %v2924 = vsel %vm302, %v2913, 0
    %2926 = vmatpush.msra.mxu0 0.0
    %2927 = vmatpush.msra.mxu0 0.0
    %2928 = vmatpush.msra.mxu0 0.0
    %2929 = vmatpush.msra.mxu0 0.0
    %2930 = vmatpush.msra.mxu0 0.0
    %2931 = vmatpush.msra.mxu0 0.0
    %2932 = vmatpush.msra.mxu0 0.0
    %2933 = vmatpush.msra.mxu0 0.0
    %2934 = vmatpush.msra.mxu0 0.0
    %2935 = vmatpush.msra.mxu0 0.0
    %2936 = vmatpush.msra.mxu0 0.0
    %2937 = vmatpush.msra.mxu0 0.0
    %2938 = vmatpush.msra.mxu0 %v2907
    %2939 = vmatpush.msra.mxu0 %v2904
    %2940 = vmatpush.msra.mxu0 %v2901
    %2941 = vmatpush.msra.mxu0 %v2898
    %2942 = vmatmul.f32.gmra.mxu0 %v2915
    %v2943 = vpop.f32.mrf.mxu0
    %v2944 = vadd.f32 0.0, %v2943
    %2945 = vmatmul.f32.gmra.mxu0 %v2918
    %v2946 = vpop.f32.mrf.mxu0
    %v2947 = vadd.f32 0.0, %v2946
    %2948 = vmatmul.f32.gmra.mxu0 %v2921
    %v2949 = vpop.f32.mrf.mxu0
    %v2950 = vadd.f32 0.0, %v2949
    %2951 = vmatmul.f32.gmra.mxu0 %v2924
    %v2952 = vpop.f32.mrf.mxu0
    %v2953 = vadd.f32 0.0, %v2952
    %2954 = vdwg.mxu0
    %v2955 = vadd.f32 %v2830, %v2944
    %v2956 = vadd.f32 %v2831, %v2947
    %v2957 = vadd.f32 %v2832, %v2950
    %v2958 = vadd.f32 %v2833, %v2953
    %v2959 = vadd.s32 %v64, 8
    %vm2960 = vcmp.eq.s32.totalorder %v47, %v2959
    %vm2961 = vcmp.eq.s32.totalorder %v48, %v2959
    %vm2962 = vcmp.eq.s32.totalorder %v49, %v2959
    %vm2963 = vcmp.eq.s32.totalorder %v50, %v2959
    %vm2964 = vcmp.eq.s32.totalorder %v51, %v2959
    %vm2965 = vcmp.eq.s32.totalorder %v52, %v2959
    %vm2966 = vcmp.eq.s32.totalorder %v53, %v2959
    %vm2967 = vcmp.eq.s32.totalorder %v54, %v2959
    %vm2968 = vcmp.eq.s32.totalorder %v55, %v2959
    %vm2969 = vcmp.eq.s32.totalorder %v56, %v2959
    %vm2970 = vcmp.eq.s32.totalorder %v57, %v2959
    %vm2971 = vcmp.eq.s32.totalorder %v58, %v2959
    %vm2972 = vcmp.eq.s32.totalorder %v59, %v2959
    %vm2973 = vcmp.eq.s32.totalorder %v60, %v2959
    %vm2974 = vcmp.eq.s32.totalorder %v61, %v2959
    %v2975 = vsel %vm2960, 1, 0
    %v2976 = vsel %vm2961, 1, 0
    %v2977 = vsel %vm2962, 1, 0
    %v2978 = vsel %vm2963, 1, 0
    %v2979 = vsel %vm2964, 1, 0
    %v2980 = vsel %vm2965, 1, 0
    %v2981 = vsel %vm2966, 1, 0
    %v2982 = vsel %vm2967, 1, 0
    %v2983 = vsel %vm2968, 1, 0
    %v2984 = vsel %vm2969, 1, 0
    %v2985 = vsel %vm2970, 1, 0
    %v2986 = vsel %vm2971, 1, 0
    %v2987 = vsel %vm2972, 1, 0
    %v2988 = vsel %vm2973, 1, 0
    %v2989 = vsel %vm2974, 1, 0
    %v2990 = vcvt.s32.f32 %v2975
    %v2991 = vcvt.s32.f32 %v2976
    %v2992 = vcvt.s32.f32 %v2977
    %v2993 = vcvt.s32.f32 %v2978
    %v2994 = vcvt.s32.f32 %v2979
    %v2995 = vcvt.s32.f32 %v2980
    %v2996 = vcvt.s32.f32 %v2981
    %v2997 = vcvt.s32.f32 %v2982
    %v2998 = vcvt.s32.f32 %v2983
    %v2999 = vcvt.s32.f32 %v2984
    %v3000 = vcvt.s32.f32 %v2985
    %v3001 = vcvt.s32.f32 %v2986
    %v3002 = vcvt.s32.f32 %v2987
    %v3003 = vcvt.s32.f32 %v2988
    %v3004 = vcvt.s32.f32 %v2989
    %3005 = vmatpush.msra.mxu0 0.0
    %3006 = vmatpush.msra.mxu0 %v3004
    %3007 = vmatpush.msra.mxu0 %v3003
    %3008 = vmatpush.msra.mxu0 %v3002
    %3009 = vmatpush.msra.mxu0 %v3001
    %3010 = vmatpush.msra.mxu0 %v3000
    %3011 = vmatpush.msra.mxu0 %v2999
    %3012 = vmatpush.msra.mxu0 %v2998
    %3013 = vmatpush.msra.mxu0 %v2997
    %3014 = vmatpush.msra.mxu0 %v2996
    %3015 = vmatpush.msra.mxu0 %v2995
    %3016 = vmatpush.msra.mxu0 %v2994
    %3017 = vmatpush.msra.mxu0 %v2993
    %3018 = vmatpush.msra.mxu0 %v2992
    %3019 = vmatpush.msra.mxu0 %v2991
    %3020 = vmatpush.msra.mxu0 %v2990
    %3021 = vmatmul.f32.gmra.mxu0 %v1958
    %v3022 = vpop.f32.mrf.mxu0
    %v3023 = vadd.f32 0.0, %v3022
    %3024 = vmatmul.f32.gmra.mxu0 %v1961
    %v3025 = vpop.f32.mrf.mxu0
    %v3026 = vadd.f32 0.0, %v3025
    %3027 = vmatmul.f32.gmra.mxu0 %v1964
    %v3028 = vpop.f32.mrf.mxu0
    %v3029 = vadd.f32 0.0, %v3028
    %3030 = vmatmul.f32.gmra.mxu0 %v1967
    %v3031 = vpop.f32.mrf.mxu0
    %v3032 = vadd.f32 0.0, %v3031
    %3033 = vdwg.mxu0
    %s3034 = scalar_lea.vmem %s8, 256
    %v3035 = vld [vmem:[%s3034] sm:$0xff]
    %v3036 = vld [vmem:[%s3034 + $0x8] sm:$0xff]
    %v3037 = vld [vmem:[%s3034 + $0x10] sm:$0xff]
    %v3038 = vld [vmem:[%s3034 + $0x18] sm:$0xff]
    %v3040 = vsel %vm302, %v3035, 0
    %v3043 = vsel %vm302, %v3036, 0
    %v3046 = vsel %vm302, %v3037, 0
    %v3049 = vsel %vm302, %v3038, 0
    %3051 = vmatpush.msra.mxu0 0.0
    %3052 = vmatpush.msra.mxu0 0.0
    %3053 = vmatpush.msra.mxu0 0.0
    %3054 = vmatpush.msra.mxu0 0.0
    %3055 = vmatpush.msra.mxu0 0.0
    %3056 = vmatpush.msra.mxu0 0.0
    %3057 = vmatpush.msra.mxu0 0.0
    %3058 = vmatpush.msra.mxu0 0.0
    %3059 = vmatpush.msra.mxu0 0.0
    %3060 = vmatpush.msra.mxu0 0.0
    %3061 = vmatpush.msra.mxu0 0.0
    %3062 = vmatpush.msra.mxu0 0.0
    %3063 = vmatpush.msra.mxu0 %v3032
    %3064 = vmatpush.msra.mxu0 %v3029
    %3065 = vmatpush.msra.mxu0 %v3026
    %3066 = vmatpush.msra.mxu0 %v3023
    %3067 = vmatmul.f32.gmra.mxu0 %v3040
    %v3068 = vpop.f32.mrf.mxu0
    %v3069 = vadd.f32 0.0, %v3068
    %3070 = vmatmul.f32.gmra.mxu0 %v3043
    %v3071 = vpop.f32.mrf.mxu0
    %v3072 = vadd.f32 0.0, %v3071
    %3073 = vmatmul.f32.gmra.mxu0 %v3046
    %v3074 = vpop.f32.mrf.mxu0
    %v3075 = vadd.f32 0.0, %v3074
    %3076 = vmatmul.f32.gmra.mxu0 %v3049
    %v3077 = vpop.f32.mrf.mxu0
    %v3078 = vadd.f32 0.0, %v3077
    %3079 = vdwg.mxu0
    %v3080 = vadd.f32 %v2955, %v3069
    %v3081 = vadd.f32 %v2956, %v3072
    %v3082 = vadd.f32 %v2957, %v3075
    %v3083 = vadd.f32 %v2958, %v3078
    %v3084 = vadd.s32 %v64, 9
    %vm3085 = vcmp.eq.s32.totalorder %v47, %v3084
    %vm3086 = vcmp.eq.s32.totalorder %v48, %v3084
    %vm3087 = vcmp.eq.s32.totalorder %v49, %v3084
    %vm3088 = vcmp.eq.s32.totalorder %v50, %v3084
    %vm3089 = vcmp.eq.s32.totalorder %v51, %v3084
    %vm3090 = vcmp.eq.s32.totalorder %v52, %v3084
    %vm3091 = vcmp.eq.s32.totalorder %v53, %v3084
    %vm3092 = vcmp.eq.s32.totalorder %v54, %v3084
    %vm3093 = vcmp.eq.s32.totalorder %v55, %v3084
    %vm3094 = vcmp.eq.s32.totalorder %v56, %v3084
    %vm3095 = vcmp.eq.s32.totalorder %v57, %v3084
    %vm3096 = vcmp.eq.s32.totalorder %v58, %v3084
    %vm3097 = vcmp.eq.s32.totalorder %v59, %v3084
    %vm3098 = vcmp.eq.s32.totalorder %v60, %v3084
    %vm3099 = vcmp.eq.s32.totalorder %v61, %v3084
    %v3100 = vsel %vm3085, 1, 0
    %v3101 = vsel %vm3086, 1, 0
    %v3102 = vsel %vm3087, 1, 0
    %v3103 = vsel %vm3088, 1, 0
    %v3104 = vsel %vm3089, 1, 0
    %v3105 = vsel %vm3090, 1, 0
    %v3106 = vsel %vm3091, 1, 0
    %v3107 = vsel %vm3092, 1, 0
    %v3108 = vsel %vm3093, 1, 0
    %v3109 = vsel %vm3094, 1, 0
    %v3110 = vsel %vm3095, 1, 0
    %v3111 = vsel %vm3096, 1, 0
    %v3112 = vsel %vm3097, 1, 0
    %v3113 = vsel %vm3098, 1, 0
    %v3114 = vsel %vm3099, 1, 0
    %v3115 = vcvt.s32.f32 %v3100
    %v3116 = vcvt.s32.f32 %v3101
    %v3117 = vcvt.s32.f32 %v3102
    %v3118 = vcvt.s32.f32 %v3103
    %v3119 = vcvt.s32.f32 %v3104
    %v3120 = vcvt.s32.f32 %v3105
    %v3121 = vcvt.s32.f32 %v3106
    %v3122 = vcvt.s32.f32 %v3107
    %v3123 = vcvt.s32.f32 %v3108
    %v3124 = vcvt.s32.f32 %v3109
    %v3125 = vcvt.s32.f32 %v3110
    %v3126 = vcvt.s32.f32 %v3111
    %v3127 = vcvt.s32.f32 %v3112
    %v3128 = vcvt.s32.f32 %v3113
    %v3129 = vcvt.s32.f32 %v3114
    %3130 = vmatpush.msra.mxu0 0.0
    %3131 = vmatpush.msra.mxu0 %v3129
    %3132 = vmatpush.msra.mxu0 %v3128
    %3133 = vmatpush.msra.mxu0 %v3127
    %3134 = vmatpush.msra.mxu0 %v3126
    %3135 = vmatpush.msra.mxu0 %v3125
    %3136 = vmatpush.msra.mxu0 %v3124
    %3137 = vmatpush.msra.mxu0 %v3123
    %3138 = vmatpush.msra.mxu0 %v3122
    %3139 = vmatpush.msra.mxu0 %v3121
    %3140 = vmatpush.msra.mxu0 %v3120
    %3141 = vmatpush.msra.mxu0 %v3119
    %3142 = vmatpush.msra.mxu0 %v3118
    %3143 = vmatpush.msra.mxu0 %v3117
    %3144 = vmatpush.msra.mxu0 %v3116
    %3145 = vmatpush.msra.mxu0 %v3115
    %3146 = vmatmul.f32.gmra.mxu0 %v1958
    %v3147 = vpop.f32.mrf.mxu0
    %v3148 = vadd.f32 0.0, %v3147
    %3149 = vmatmul.f32.gmra.mxu0 %v1961
    %v3150 = vpop.f32.mrf.mxu0
    %v3151 = vadd.f32 0.0, %v3150
    %3152 = vmatmul.f32.gmra.mxu0 %v1964
    %v3153 = vpop.f32.mrf.mxu0
    %v3154 = vadd.f32 0.0, %v3153
    %3155 = vmatmul.f32.gmra.mxu0 %v1967
    %v3156 = vpop.f32.mrf.mxu0
    %v3157 = vadd.f32 0.0, %v3156
    %3158 = vdwg.mxu0
    %s3159 = scalar_lea.vmem %s8, 288
    %v3160 = vld [vmem:[%s3159] sm:$0xff]
    %v3161 = vld [vmem:[%s3159 + $0x8] sm:$0xff]
    %v3162 = vld [vmem:[%s3159 + $0x10] sm:$0xff]
    %v3163 = vld [vmem:[%s3159 + $0x18] sm:$0xff]
    %v3165 = vsel %vm302, %v3160, 0
    %v3168 = vsel %vm302, %v3161, 0
    %v3171 = vsel %vm302, %v3162, 0
    %v3174 = vsel %vm302, %v3163, 0
    %3176 = vmatpush.msra.mxu0 0.0
    %3177 = vmatpush.msra.mxu0 0.0
    %3178 = vmatpush.msra.mxu0 0.0
    %3179 = vmatpush.msra.mxu0 0.0
    %3180 = vmatpush.msra.mxu0 0.0
    %3181 = vmatpush.msra.mxu0 0.0
    %3182 = vmatpush.msra.mxu0 0.0
    %3183 = vmatpush.msra.mxu0 0.0
    %3184 = vmatpush.msra.mxu0 0.0
    %3185 = vmatpush.msra.mxu0 0.0
    %3186 = vmatpush.msra.mxu0 0.0
    %3187 = vmatpush.msra.mxu0 0.0
    %3188 = vmatpush.msra.mxu0 %v3157
    %3189 = vmatpush.msra.mxu0 %v3154
    %3190 = vmatpush.msra.mxu0 %v3151
    %3191 = vmatpush.msra.mxu0 %v3148
    %3192 = vmatmul.f32.gmra.mxu0 %v3165
    %v3193 = vpop.f32.mrf.mxu0
    %v3194 = vadd.f32 0.0, %v3193
    %3195 = vmatmul.f32.gmra.mxu0 %v3168
    %v3196 = vpop.f32.mrf.mxu0
    %v3197 = vadd.f32 0.0, %v3196
    %3198 = vmatmul.f32.gmra.mxu0 %v3171
    %v3199 = vpop.f32.mrf.mxu0
    %v3200 = vadd.f32 0.0, %v3199
    %3201 = vmatmul.f32.gmra.mxu0 %v3174
    %v3202 = vpop.f32.mrf.mxu0
    %v3203 = vadd.f32 0.0, %v3202
    %3204 = vdwg.mxu0
    %v3205 = vadd.f32 %v3080, %v3194
    %v3206 = vadd.f32 %v3081, %v3197
    %v3207 = vadd.f32 %v3082, %v3200
    %v3208 = vadd.f32 %v3083, %v3203
    %v3209 = vadd.s32 %v64, 10
    %vm3210 = vcmp.eq.s32.totalorder %v47, %v3209
    %vm3211 = vcmp.eq.s32.totalorder %v48, %v3209
    %vm3212 = vcmp.eq.s32.totalorder %v49, %v3209
    %vm3213 = vcmp.eq.s32.totalorder %v50, %v3209
    %vm3214 = vcmp.eq.s32.totalorder %v51, %v3209
    %vm3215 = vcmp.eq.s32.totalorder %v52, %v3209
    %vm3216 = vcmp.eq.s32.totalorder %v53, %v3209
    %vm3217 = vcmp.eq.s32.totalorder %v54, %v3209
    %vm3218 = vcmp.eq.s32.totalorder %v55, %v3209
    %vm3219 = vcmp.eq.s32.totalorder %v56, %v3209
    %vm3220 = vcmp.eq.s32.totalorder %v57, %v3209
    %vm3221 = vcmp.eq.s32.totalorder %v58, %v3209
    %vm3222 = vcmp.eq.s32.totalorder %v59, %v3209
    %vm3223 = vcmp.eq.s32.totalorder %v60, %v3209
    %vm3224 = vcmp.eq.s32.totalorder %v61, %v3209
    %v3225 = vsel %vm3210, 1, 0
    %v3226 = vsel %vm3211, 1, 0
    %v3227 = vsel %vm3212, 1, 0
    %v3228 = vsel %vm3213, 1, 0
    %v3229 = vsel %vm3214, 1, 0
    %v3230 = vsel %vm3215, 1, 0
    %v3231 = vsel %vm3216, 1, 0
    %v3232 = vsel %vm3217, 1, 0
    %v3233 = vsel %vm3218, 1, 0
    %v3234 = vsel %vm3219, 1, 0
    %v3235 = vsel %vm3220, 1, 0
    %v3236 = vsel %vm3221, 1, 0
    %v3237 = vsel %vm3222, 1, 0
    %v3238 = vsel %vm3223, 1, 0
    %v3239 = vsel %vm3224, 1, 0
    %v3240 = vcvt.s32.f32 %v3225
    %v3241 = vcvt.s32.f32 %v3226
    %v3242 = vcvt.s32.f32 %v3227
    %v3243 = vcvt.s32.f32 %v3228
    %v3244 = vcvt.s32.f32 %v3229
    %v3245 = vcvt.s32.f32 %v3230
    %v3246 = vcvt.s32.f32 %v3231
    %v3247 = vcvt.s32.f32 %v3232
    %v3248 = vcvt.s32.f32 %v3233
    %v3249 = vcvt.s32.f32 %v3234
    %v3250 = vcvt.s32.f32 %v3235
    %v3251 = vcvt.s32.f32 %v3236
    %v3252 = vcvt.s32.f32 %v3237
    %v3253 = vcvt.s32.f32 %v3238
    %v3254 = vcvt.s32.f32 %v3239
    %3255 = vmatpush.msra.mxu0 0.0
    %3256 = vmatpush.msra.mxu0 %v3254
    %3257 = vmatpush.msra.mxu0 %v3253
    %3258 = vmatpush.msra.mxu0 %v3252
    %3259 = vmatpush.msra.mxu0 %v3251
    %3260 = vmatpush.msra.mxu0 %v3250
    %3261 = vmatpush.msra.mxu0 %v3249
    %3262 = vmatpush.msra.mxu0 %v3248
    %3263 = vmatpush.msra.mxu0 %v3247
    %3264 = vmatpush.msra.mxu0 %v3246
    %3265 = vmatpush.msra.mxu0 %v3245
    %3266 = vmatpush.msra.mxu0 %v3244
    %3267 = vmatpush.msra.mxu0 %v3243
    %3268 = vmatpush.msra.mxu0 %v3242
    %3269 = vmatpush.msra.mxu0 %v3241
    %3270 = vmatpush.msra.mxu0 %v3240
    %3271 = vmatmul.f32.gmra.mxu0 %v1958
    %v3272 = vpop.f32.mrf.mxu0
    %v3273 = vadd.f32 0.0, %v3272
    %3274 = vmatmul.f32.gmra.mxu0 %v1961
    %v3275 = vpop.f32.mrf.mxu0
    %v3276 = vadd.f32 0.0, %v3275
    %3277 = vmatmul.f32.gmra.mxu0 %v1964
    %v3278 = vpop.f32.mrf.mxu0
    %v3279 = vadd.f32 0.0, %v3278
    %3280 = vmatmul.f32.gmra.mxu0 %v1967
    %v3281 = vpop.f32.mrf.mxu0
    %v3282 = vadd.f32 0.0, %v3281
    %3283 = vdwg.mxu0
    %s3284 = scalar_lea.vmem %s8, 320
    %v3285 = vld [vmem:[%s3284] sm:$0xff]
    %v3286 = vld [vmem:[%s3284 + $0x8] sm:$0xff]
    %v3287 = vld [vmem:[%s3284 + $0x10] sm:$0xff]
    %v3288 = vld [vmem:[%s3284 + $0x18] sm:$0xff]
    %v3290 = vsel %vm302, %v3285, 0
    %v3293 = vsel %vm302, %v3286, 0
    %v3296 = vsel %vm302, %v3287, 0
    %v3299 = vsel %vm302, %v3288, 0
    %3301 = vmatpush.msra.mxu0 0.0
    %3302 = vmatpush.msra.mxu0 0.0
    %3303 = vmatpush.msra.mxu0 0.0
    %3304 = vmatpush.msra.mxu0 0.0
    %3305 = vmatpush.msra.mxu0 0.0
    %3306 = vmatpush.msra.mxu0 0.0
    %3307 = vmatpush.msra.mxu0 0.0
    %3308 = vmatpush.msra.mxu0 0.0
    %3309 = vmatpush.msra.mxu0 0.0
    %3310 = vmatpush.msra.mxu0 0.0
    %3311 = vmatpush.msra.mxu0 0.0
    %3312 = vmatpush.msra.mxu0 0.0
    %3313 = vmatpush.msra.mxu0 %v3282
    %3314 = vmatpush.msra.mxu0 %v3279
    %3315 = vmatpush.msra.mxu0 %v3276
    %3316 = vmatpush.msra.mxu0 %v3273
    %3317 = vmatmul.f32.gmra.mxu0 %v3290
    %v3318 = vpop.f32.mrf.mxu0
    %v3319 = vadd.f32 0.0, %v3318
    %3320 = vmatmul.f32.gmra.mxu0 %v3293
    %v3321 = vpop.f32.mrf.mxu0
    %v3322 = vadd.f32 0.0, %v3321
    %3323 = vmatmul.f32.gmra.mxu0 %v3296
    %v3324 = vpop.f32.mrf.mxu0
    %v3325 = vadd.f32 0.0, %v3324
    %3326 = vmatmul.f32.gmra.mxu0 %v3299
    %v3327 = vpop.f32.mrf.mxu0
    %v3328 = vadd.f32 0.0, %v3327
    %3329 = vdwg.mxu0
    %v3330 = vadd.f32 %v3205, %v3319
    %v3331 = vadd.f32 %v3206, %v3322
    %v3332 = vadd.f32 %v3207, %v3325
    %v3333 = vadd.f32 %v3208, %v3328
    %v3334 = vadd.s32 %v64, 11
    %vm3335 = vcmp.eq.s32.totalorder %v47, %v3334
    %vm3336 = vcmp.eq.s32.totalorder %v48, %v3334
    %vm3337 = vcmp.eq.s32.totalorder %v49, %v3334
    %vm3338 = vcmp.eq.s32.totalorder %v50, %v3334
    %vm3339 = vcmp.eq.s32.totalorder %v51, %v3334
    %vm3340 = vcmp.eq.s32.totalorder %v52, %v3334
    %vm3341 = vcmp.eq.s32.totalorder %v53, %v3334
    %vm3342 = vcmp.eq.s32.totalorder %v54, %v3334
    %vm3343 = vcmp.eq.s32.totalorder %v55, %v3334
    %vm3344 = vcmp.eq.s32.totalorder %v56, %v3334
    %vm3345 = vcmp.eq.s32.totalorder %v57, %v3334
    %vm3346 = vcmp.eq.s32.totalorder %v58, %v3334
    %vm3347 = vcmp.eq.s32.totalorder %v59, %v3334
    %vm3348 = vcmp.eq.s32.totalorder %v60, %v3334
    %vm3349 = vcmp.eq.s32.totalorder %v61, %v3334
    %v3350 = vsel %vm3335, 1, 0
    %v3351 = vsel %vm3336, 1, 0
    %v3352 = vsel %vm3337, 1, 0
    %v3353 = vsel %vm3338, 1, 0
    %v3354 = vsel %vm3339, 1, 0
    %v3355 = vsel %vm3340, 1, 0
    %v3356 = vsel %vm3341, 1, 0
    %v3357 = vsel %vm3342, 1, 0
    %v3358 = vsel %vm3343, 1, 0
    %v3359 = vsel %vm3344, 1, 0
    %v3360 = vsel %vm3345, 1, 0
    %v3361 = vsel %vm3346, 1, 0
    %v3362 = vsel %vm3347, 1, 0
    %v3363 = vsel %vm3348, 1, 0
    %v3364 = vsel %vm3349, 1, 0
    %v3365 = vcvt.s32.f32 %v3350
    %v3366 = vcvt.s32.f32 %v3351
    %v3367 = vcvt.s32.f32 %v3352
    %v3368 = vcvt.s32.f32 %v3353
    %v3369 = vcvt.s32.f32 %v3354
    %v3370 = vcvt.s32.f32 %v3355
    %v3371 = vcvt.s32.f32 %v3356
    %v3372 = vcvt.s32.f32 %v3357
    %v3373 = vcvt.s32.f32 %v3358
    %v3374 = vcvt.s32.f32 %v3359
    %v3375 = vcvt.s32.f32 %v3360
    %v3376 = vcvt.s32.f32 %v3361
    %v3377 = vcvt.s32.f32 %v3362
    %v3378 = vcvt.s32.f32 %v3363
    %v3379 = vcvt.s32.f32 %v3364
    %3380 = vmatpush.msra.mxu0 0.0
    %3381 = vmatpush.msra.mxu0 %v3379
    %3382 = vmatpush.msra.mxu0 %v3378
    %3383 = vmatpush.msra.mxu0 %v3377
    %3384 = vmatpush.msra.mxu0 %v3376
    %3385 = vmatpush.msra.mxu0 %v3375
    %3386 = vmatpush.msra.mxu0 %v3374
    %3387 = vmatpush.msra.mxu0 %v3373
    %3388 = vmatpush.msra.mxu0 %v3372
    %3389 = vmatpush.msra.mxu0 %v3371
    %3390 = vmatpush.msra.mxu0 %v3370
    %3391 = vmatpush.msra.mxu0 %v3369
    %3392 = vmatpush.msra.mxu0 %v3368
    %3393 = vmatpush.msra.mxu0 %v3367
    %3394 = vmatpush.msra.mxu0 %v3366
    %3395 = vmatpush.msra.mxu0 %v3365
    %3396 = vmatmul.f32.gmra.mxu0 %v1958
    %v3397 = vpop.f32.mrf.mxu0
    %v3398 = vadd.f32 0.0, %v3397
    %3399 = vmatmul.f32.gmra.mxu0 %v1961
    %v3400 = vpop.f32.mrf.mxu0
    %v3401 = vadd.f32 0.0, %v3400
    %3402 = vmatmul.f32.gmra.mxu0 %v1964
    %v3403 = vpop.f32.mrf.mxu0
    %v3404 = vadd.f32 0.0, %v3403
    %3405 = vmatmul.f32.gmra.mxu0 %v1967
    %v3406 = vpop.f32.mrf.mxu0
    %v3407 = vadd.f32 0.0, %v3406
    %3408 = vdwg.mxu0
    %s3409 = scalar_lea.vmem %s8, 352
    %v3410 = vld [vmem:[%s3409] sm:$0xff]
    %v3411 = vld [vmem:[%s3409 + $0x8] sm:$0xff]
    %v3412 = vld [vmem:[%s3409 + $0x10] sm:$0xff]
    %v3413 = vld [vmem:[%s3409 + $0x18] sm:$0xff]
    %v3415 = vsel %vm302, %v3410, 0
    %v3418 = vsel %vm302, %v3411, 0
    %v3421 = vsel %vm302, %v3412, 0
    %v3424 = vsel %vm302, %v3413, 0
    %3426 = vmatpush.msra.mxu0 0.0
    %3427 = vmatpush.msra.mxu0 0.0
    %3428 = vmatpush.msra.mxu0 0.0
    %3429 = vmatpush.msra.mxu0 0.0
    %3430 = vmatpush.msra.mxu0 0.0
    %3431 = vmatpush.msra.mxu0 0.0
    %3432 = vmatpush.msra.mxu0 0.0
    %3433 = vmatpush.msra.mxu0 0.0
    %3434 = vmatpush.msra.mxu0 0.0
    %3435 = vmatpush.msra.mxu0 0.0
    %3436 = vmatpush.msra.mxu0 0.0
    %3437 = vmatpush.msra.mxu0 0.0
    %3438 = vmatpush.msra.mxu0 %v3407
    %3439 = vmatpush.msra.mxu0 %v3404
    %3440 = vmatpush.msra.mxu0 %v3401
    %3441 = vmatpush.msra.mxu0 %v3398
    %3442 = vmatmul.f32.gmra.mxu0 %v3415
    %v3443 = vpop.f32.mrf.mxu0
    %v3444 = vadd.f32 0.0, %v3443
    %3445 = vmatmul.f32.gmra.mxu0 %v3418
    %v3446 = vpop.f32.mrf.mxu0
    %v3447 = vadd.f32 0.0, %v3446
    %3448 = vmatmul.f32.gmra.mxu0 %v3421
    %v3449 = vpop.f32.mrf.mxu0
    %v3450 = vadd.f32 0.0, %v3449
    %3451 = vmatmul.f32.gmra.mxu0 %v3424
    %v3452 = vpop.f32.mrf.mxu0
    %v3453 = vadd.f32 0.0, %v3452
    %3454 = vdwg.mxu0
    %v3455 = vadd.f32 %v3330, %v3444
    %v3456 = vadd.f32 %v3331, %v3447
    %v3457 = vadd.f32 %v3332, %v3450
    %v3458 = vadd.f32 %v3333, %v3453
    %v3459 = vadd.s32 %v64, 12
    %vm3460 = vcmp.eq.s32.totalorder %v47, %v3459
    %vm3461 = vcmp.eq.s32.totalorder %v48, %v3459
    %vm3462 = vcmp.eq.s32.totalorder %v49, %v3459
    %vm3463 = vcmp.eq.s32.totalorder %v50, %v3459
    %vm3464 = vcmp.eq.s32.totalorder %v51, %v3459
    %vm3465 = vcmp.eq.s32.totalorder %v52, %v3459
    %vm3466 = vcmp.eq.s32.totalorder %v53, %v3459
    %vm3467 = vcmp.eq.s32.totalorder %v54, %v3459
    %vm3468 = vcmp.eq.s32.totalorder %v55, %v3459
    %vm3469 = vcmp.eq.s32.totalorder %v56, %v3459
    %vm3470 = vcmp.eq.s32.totalorder %v57, %v3459
    %vm3471 = vcmp.eq.s32.totalorder %v58, %v3459
    %vm3472 = vcmp.eq.s32.totalorder %v59, %v3459
    %vm3473 = vcmp.eq.s32.totalorder %v60, %v3459
    %vm3474 = vcmp.eq.s32.totalorder %v61, %v3459
    %v3475 = vsel %vm3460, 1, 0
    %v3476 = vsel %vm3461, 1, 0
    %v3477 = vsel %vm3462, 1, 0
    %v3478 = vsel %vm3463, 1, 0
    %v3479 = vsel %vm3464, 1, 0
    %v3480 = vsel %vm3465, 1, 0
    %v3481 = vsel %vm3466, 1, 0
    %v3482 = vsel %vm3467, 1, 0
    %v3483 = vsel %vm3468, 1, 0
    %v3484 = vsel %vm3469, 1, 0
    %v3485 = vsel %vm3470, 1, 0
    %v3486 = vsel %vm3471, 1, 0
    %v3487 = vsel %vm3472, 1, 0
    %v3488 = vsel %vm3473, 1, 0
    %v3489 = vsel %vm3474, 1, 0
    %v3490 = vcvt.s32.f32 %v3475
    %v3491 = vcvt.s32.f32 %v3476
    %v3492 = vcvt.s32.f32 %v3477
    %v3493 = vcvt.s32.f32 %v3478
    %v3494 = vcvt.s32.f32 %v3479
    %v3495 = vcvt.s32.f32 %v3480
    %v3496 = vcvt.s32.f32 %v3481
    %v3497 = vcvt.s32.f32 %v3482
    %v3498 = vcvt.s32.f32 %v3483
    %v3499 = vcvt.s32.f32 %v3484
    %v3500 = vcvt.s32.f32 %v3485
    %v3501 = vcvt.s32.f32 %v3486
    %v3502 = vcvt.s32.f32 %v3487
    %v3503 = vcvt.s32.f32 %v3488
    %v3504 = vcvt.s32.f32 %v3489
    %3505 = vmatpush.msra.mxu0 0.0
    %3506 = vmatpush.msra.mxu0 %v3504
    %3507 = vmatpush.msra.mxu0 %v3503
    %3508 = vmatpush.msra.mxu0 %v3502
    %3509 = vmatpush.msra.mxu0 %v3501
    %3510 = vmatpush.msra.mxu0 %v3500
    %3511 = vmatpush.msra.mxu0 %v3499
    %3512 = vmatpush.msra.mxu0 %v3498
    %3513 = vmatpush.msra.mxu0 %v3497
    %3514 = vmatpush.msra.mxu0 %v3496
    %3515 = vmatpush.msra.mxu0 %v3495
    %3516 = vmatpush.msra.mxu0 %v3494
    %3517 = vmatpush.msra.mxu0 %v3493
    %3518 = vmatpush.msra.mxu0 %v3492
    %3519 = vmatpush.msra.mxu0 %v3491
    %3520 = vmatpush.msra.mxu0 %v3490
    %3521 = vmatmul.f32.gmra.mxu0 %v1958
    %v3522 = vpop.f32.mrf.mxu0
    %v3523 = vadd.f32 0.0, %v3522
    %3524 = vmatmul.f32.gmra.mxu0 %v1961
    %v3525 = vpop.f32.mrf.mxu0
    %v3526 = vadd.f32 0.0, %v3525
    %3527 = vmatmul.f32.gmra.mxu0 %v1964
    %v3528 = vpop.f32.mrf.mxu0
    %v3529 = vadd.f32 0.0, %v3528
    %3530 = vmatmul.f32.gmra.mxu0 %v1967
    %v3531 = vpop.f32.mrf.mxu0
    %v3532 = vadd.f32 0.0, %v3531
    %3533 = vdwg.mxu0
    %s3534 = scalar_lea.vmem %s8, 384
    %v3535 = vld [vmem:[%s3534] sm:$0xff]
    %v3536 = vld [vmem:[%s3534 + $0x8] sm:$0xff]
    %v3537 = vld [vmem:[%s3534 + $0x10] sm:$0xff]
    %v3538 = vld [vmem:[%s3534 + $0x18] sm:$0xff]
    %v3540 = vsel %vm302, %v3535, 0
    %v3543 = vsel %vm302, %v3536, 0
    %v3546 = vsel %vm302, %v3537, 0
    %v3549 = vsel %vm302, %v3538, 0
    %3551 = vmatpush.msra.mxu0 0.0
    %3552 = vmatpush.msra.mxu0 0.0
    %3553 = vmatpush.msra.mxu0 0.0
    %3554 = vmatpush.msra.mxu0 0.0
    %3555 = vmatpush.msra.mxu0 0.0
    %3556 = vmatpush.msra.mxu0 0.0
    %3557 = vmatpush.msra.mxu0 0.0
    %3558 = vmatpush.msra.mxu0 0.0
    %3559 = vmatpush.msra.mxu0 0.0
    %3560 = vmatpush.msra.mxu0 0.0
    %3561 = vmatpush.msra.mxu0 0.0
    %3562 = vmatpush.msra.mxu0 0.0
    %3563 = vmatpush.msra.mxu0 %v3532
    %3564 = vmatpush.msra.mxu0 %v3529
    %3565 = vmatpush.msra.mxu0 %v3526
    %3566 = vmatpush.msra.mxu0 %v3523
    %3567 = vmatmul.f32.gmra.mxu0 %v3540
    %v3568 = vpop.f32.mrf.mxu0
    %v3569 = vadd.f32 0.0, %v3568
    %3570 = vmatmul.f32.gmra.mxu0 %v3543
    %v3571 = vpop.f32.mrf.mxu0
    %v3572 = vadd.f32 0.0, %v3571
    %3573 = vmatmul.f32.gmra.mxu0 %v3546
    %v3574 = vpop.f32.mrf.mxu0
    %v3575 = vadd.f32 0.0, %v3574
    %3576 = vmatmul.f32.gmra.mxu0 %v3549
    %v3577 = vpop.f32.mrf.mxu0
    %v3578 = vadd.f32 0.0, %v3577
    %3579 = vdwg.mxu0
    %v3580 = vadd.f32 %v3455, %v3569
    %v3581 = vadd.f32 %v3456, %v3572
    %v3582 = vadd.f32 %v3457, %v3575
    %v3583 = vadd.f32 %v3458, %v3578
    %v3584 = vadd.s32 %v64, 13
    %vm3585 = vcmp.eq.s32.totalorder %v47, %v3584
    %vm3586 = vcmp.eq.s32.totalorder %v48, %v3584
    %vm3587 = vcmp.eq.s32.totalorder %v49, %v3584
    %vm3588 = vcmp.eq.s32.totalorder %v50, %v3584
    %vm3589 = vcmp.eq.s32.totalorder %v51, %v3584
    %vm3590 = vcmp.eq.s32.totalorder %v52, %v3584
    %vm3591 = vcmp.eq.s32.totalorder %v53, %v3584
    %vm3592 = vcmp.eq.s32.totalorder %v54, %v3584
    %vm3593 = vcmp.eq.s32.totalorder %v55, %v3584
    %vm3594 = vcmp.eq.s32.totalorder %v56, %v3584
    %vm3595 = vcmp.eq.s32.totalorder %v57, %v3584
    %vm3596 = vcmp.eq.s32.totalorder %v58, %v3584
    %vm3597 = vcmp.eq.s32.totalorder %v59, %v3584
    %vm3598 = vcmp.eq.s32.totalorder %v60, %v3584
    %vm3599 = vcmp.eq.s32.totalorder %v61, %v3584
    %v3600 = vsel %vm3585, 1, 0
    %v3601 = vsel %vm3586, 1, 0
    %v3602 = vsel %vm3587, 1, 0
    %v3603 = vsel %vm3588, 1, 0
    %v3604 = vsel %vm3589, 1, 0
    %v3605 = vsel %vm3590, 1, 0
    %v3606 = vsel %vm3591, 1, 0
    %v3607 = vsel %vm3592, 1, 0
    %v3608 = vsel %vm3593, 1, 0
    %v3609 = vsel %vm3594, 1, 0
    %v3610 = vsel %vm3595, 1, 0
    %v3611 = vsel %vm3596, 1, 0
    %v3612 = vsel %vm3597, 1, 0
    %v3613 = vsel %vm3598, 1, 0
    %v3614 = vsel %vm3599, 1, 0
    %v3615 = vcvt.s32.f32 %v3600
    %v3616 = vcvt.s32.f32 %v3601
    %v3617 = vcvt.s32.f32 %v3602
    %v3618 = vcvt.s32.f32 %v3603
    %v3619 = vcvt.s32.f32 %v3604
    %v3620 = vcvt.s32.f32 %v3605
    %v3621 = vcvt.s32.f32 %v3606
    %v3622 = vcvt.s32.f32 %v3607
    %v3623 = vcvt.s32.f32 %v3608
    %v3624 = vcvt.s32.f32 %v3609
    %v3625 = vcvt.s32.f32 %v3610
    %v3626 = vcvt.s32.f32 %v3611
    %v3627 = vcvt.s32.f32 %v3612
    %v3628 = vcvt.s32.f32 %v3613
    %v3629 = vcvt.s32.f32 %v3614
    %3630 = vmatpush.msra.mxu0 0.0
    %3631 = vmatpush.msra.mxu0 %v3629
    %3632 = vmatpush.msra.mxu0 %v3628
    %3633 = vmatpush.msra.mxu0 %v3627
    %3634 = vmatpush.msra.mxu0 %v3626
    %3635 = vmatpush.msra.mxu0 %v3625
    %3636 = vmatpush.msra.mxu0 %v3624
    %3637 = vmatpush.msra.mxu0 %v3623
    %3638 = vmatpush.msra.mxu0 %v3622
    %3639 = vmatpush.msra.mxu0 %v3621
    %3640 = vmatpush.msra.mxu0 %v3620
    %3641 = vmatpush.msra.mxu0 %v3619
    %3642 = vmatpush.msra.mxu0 %v3618
    %3643 = vmatpush.msra.mxu0 %v3617
    %3644 = vmatpush.msra.mxu0 %v3616
    %3645 = vmatpush.msra.mxu0 %v3615
    %3646 = vmatmul.f32.gmra.mxu0 %v1958
    %v3647 = vpop.f32.mrf.mxu0
    %v3648 = vadd.f32 0.0, %v3647
    %3649 = vmatmul.f32.gmra.mxu0 %v1961
    %v3650 = vpop.f32.mrf.mxu0
    %v3651 = vadd.f32 0.0, %v3650
    %3652 = vmatmul.f32.gmra.mxu0 %v1964
    %v3653 = vpop.f32.mrf.mxu0
    %v3654 = vadd.f32 0.0, %v3653
    %3655 = vmatmul.f32.gmra.mxu0 %v1967
    %v3656 = vpop.f32.mrf.mxu0
    %v3657 = vadd.f32 0.0, %v3656
    %3658 = vdwg.mxu0
    %s3659 = scalar_lea.vmem %s8, 416
    %v3660 = vld [vmem:[%s3659] sm:$0xff]
    %v3661 = vld [vmem:[%s3659 + $0x8] sm:$0xff]
    %v3662 = vld [vmem:[%s3659 + $0x10] sm:$0xff]
    %v3663 = vld [vmem:[%s3659 + $0x18] sm:$0xff]
    %v3665 = vsel %vm302, %v3660, 0
    %v3668 = vsel %vm302, %v3661, 0
    %v3671 = vsel %vm302, %v3662, 0
    %v3674 = vsel %vm302, %v3663, 0
    %3676 = vmatpush.msra.mxu0 0.0
    %3677 = vmatpush.msra.mxu0 0.0
    %3678 = vmatpush.msra.mxu0 0.0
    %3679 = vmatpush.msra.mxu0 0.0
    %3680 = vmatpush.msra.mxu0 0.0
    %3681 = vmatpush.msra.mxu0 0.0
    %3682 = vmatpush.msra.mxu0 0.0
    %3683 = vmatpush.msra.mxu0 0.0
    %3684 = vmatpush.msra.mxu0 0.0
    %3685 = vmatpush.msra.mxu0 0.0
    %3686 = vmatpush.msra.mxu0 0.0
    %3687 = vmatpush.msra.mxu0 0.0
    %3688 = vmatpush.msra.mxu0 %v3657
    %3689 = vmatpush.msra.mxu0 %v3654
    %3690 = vmatpush.msra.mxu0 %v3651
    %3691 = vmatpush.msra.mxu0 %v3648
    %3692 = vmatmul.f32.gmra.mxu0 %v3665
    %v3693 = vpop.f32.mrf.mxu0
    %v3694 = vadd.f32 0.0, %v3693
    %3695 = vmatmul.f32.gmra.mxu0 %v3668
    %v3696 = vpop.f32.mrf.mxu0
    %v3697 = vadd.f32 0.0, %v3696
    %3698 = vmatmul.f32.gmra.mxu0 %v3671
    %v3699 = vpop.f32.mrf.mxu0
    %v3700 = vadd.f32 0.0, %v3699
    %3701 = vmatmul.f32.gmra.mxu0 %v3674
    %v3702 = vpop.f32.mrf.mxu0
    %v3703 = vadd.f32 0.0, %v3702
    %3704 = vdwg.mxu0
    %v3705 = vadd.f32 %v3580, %v3694
    %v3706 = vadd.f32 %v3581, %v3697
    %v3707 = vadd.f32 %v3582, %v3700
    %v3708 = vadd.f32 %v3583, %v3703
    %v3709 = vadd.s32 %v64, 14
    %vm3710 = vcmp.eq.s32.totalorder %v47, %v3709
    %vm3711 = vcmp.eq.s32.totalorder %v48, %v3709
    %vm3712 = vcmp.eq.s32.totalorder %v49, %v3709
    %vm3713 = vcmp.eq.s32.totalorder %v50, %v3709
    %vm3714 = vcmp.eq.s32.totalorder %v51, %v3709
    %vm3715 = vcmp.eq.s32.totalorder %v52, %v3709
    %vm3716 = vcmp.eq.s32.totalorder %v53, %v3709
    %vm3717 = vcmp.eq.s32.totalorder %v54, %v3709
    %vm3718 = vcmp.eq.s32.totalorder %v55, %v3709
    %vm3719 = vcmp.eq.s32.totalorder %v56, %v3709
    %vm3720 = vcmp.eq.s32.totalorder %v57, %v3709
    %vm3721 = vcmp.eq.s32.totalorder %v58, %v3709
    %vm3722 = vcmp.eq.s32.totalorder %v59, %v3709
    %vm3723 = vcmp.eq.s32.totalorder %v60, %v3709
    %vm3724 = vcmp.eq.s32.totalorder %v61, %v3709
    %v3725 = vsel %vm3710, 1, 0
    %v3726 = vsel %vm3711, 1, 0
    %v3727 = vsel %vm3712, 1, 0
    %v3728 = vsel %vm3713, 1, 0
    %v3729 = vsel %vm3714, 1, 0
    %v3730 = vsel %vm3715, 1, 0
    %v3731 = vsel %vm3716, 1, 0
    %v3732 = vsel %vm3717, 1, 0
    %v3733 = vsel %vm3718, 1, 0
    %v3734 = vsel %vm3719, 1, 0
    %v3735 = vsel %vm3720, 1, 0
    %v3736 = vsel %vm3721, 1, 0
    %v3737 = vsel %vm3722, 1, 0
    %v3738 = vsel %vm3723, 1, 0
    %v3739 = vsel %vm3724, 1, 0
    %v3740 = vcvt.s32.f32 %v3725
    %v3741 = vcvt.s32.f32 %v3726
    %v3742 = vcvt.s32.f32 %v3727
    %v3743 = vcvt.s32.f32 %v3728
    %v3744 = vcvt.s32.f32 %v3729
    %v3745 = vcvt.s32.f32 %v3730
    %v3746 = vcvt.s32.f32 %v3731
    %v3747 = vcvt.s32.f32 %v3732
    %v3748 = vcvt.s32.f32 %v3733
    %v3749 = vcvt.s32.f32 %v3734
    %v3750 = vcvt.s32.f32 %v3735
    %v3751 = vcvt.s32.f32 %v3736
    %v3752 = vcvt.s32.f32 %v3737
    %v3753 = vcvt.s32.f32 %v3738
    %v3754 = vcvt.s32.f32 %v3739
    %3755 = vmatpush.msra.mxu0 0.0
    %3756 = vmatpush.msra.mxu0 %v3754
    %3757 = vmatpush.msra.mxu0 %v3753
    %3758 = vmatpush.msra.mxu0 %v3752
    %3759 = vmatpush.msra.mxu0 %v3751
    %3760 = vmatpush.msra.mxu0 %v3750
    %3761 = vmatpush.msra.mxu0 %v3749
    %3762 = vmatpush.msra.mxu0 %v3748
    %3763 = vmatpush.msra.mxu0 %v3747
    %3764 = vmatpush.msra.mxu0 %v3746
    %3765 = vmatpush.msra.mxu0 %v3745
    %3766 = vmatpush.msra.mxu0 %v3744
    %3767 = vmatpush.msra.mxu0 %v3743
    %3768 = vmatpush.msra.mxu0 %v3742
    %3769 = vmatpush.msra.mxu0 %v3741
    %3770 = vmatpush.msra.mxu0 %v3740
    %3771 = vmatmul.f32.gmra.mxu0 %v1958
    %v3772 = vpop.f32.mrf.mxu0
    %v3773 = vadd.f32 0.0, %v3772
    %3774 = vmatmul.f32.gmra.mxu0 %v1961
    %v3775 = vpop.f32.mrf.mxu0
    %v3776 = vadd.f32 0.0, %v3775
    %3777 = vmatmul.f32.gmra.mxu0 %v1964
    %v3778 = vpop.f32.mrf.mxu0
    %v3779 = vadd.f32 0.0, %v3778
    %3780 = vmatmul.f32.gmra.mxu0 %v1967
    %v3781 = vpop.f32.mrf.mxu0
    %v3782 = vadd.f32 0.0, %v3781
    %3783 = vdwg.mxu0
    %s3784 = scalar_lea.vmem %s8, 448
    %v3785 = vld [vmem:[%s3784] sm:$0xff]
    %v3786 = vld [vmem:[%s3784 + $0x8] sm:$0xff]
    %v3787 = vld [vmem:[%s3784 + $0x10] sm:$0xff]
    %v3788 = vld [vmem:[%s3784 + $0x18] sm:$0xff]
    %v3790 = vsel %vm302, %v3785, 0
    %v3793 = vsel %vm302, %v3786, 0
    %v3796 = vsel %vm302, %v3787, 0
    %v3799 = vsel %vm302, %v3788, 0
    %3801 = vmatpush.msra.mxu0 0.0
    %3802 = vmatpush.msra.mxu0 0.0
    %3803 = vmatpush.msra.mxu0 0.0
    %3804 = vmatpush.msra.mxu0 0.0
    %3805 = vmatpush.msra.mxu0 0.0
    %3806 = vmatpush.msra.mxu0 0.0
    %3807 = vmatpush.msra.mxu0 0.0
    %3808 = vmatpush.msra.mxu0 0.0
    %3809 = vmatpush.msra.mxu0 0.0
    %3810 = vmatpush.msra.mxu0 0.0
    %3811 = vmatpush.msra.mxu0 0.0
    %3812 = vmatpush.msra.mxu0 0.0
    %3813 = vmatpush.msra.mxu0 %v3782
    %3814 = vmatpush.msra.mxu0 %v3779
    %3815 = vmatpush.msra.mxu0 %v3776
    %3816 = vmatpush.msra.mxu0 %v3773
    %3817 = vmatmul.f32.gmra.mxu0 %v3790
    %v3818 = vpop.f32.mrf.mxu0
    %v3819 = vadd.f32 0.0, %v3818
    %3820 = vmatmul.f32.gmra.mxu0 %v3793
    %v3821 = vpop.f32.mrf.mxu0
    %v3822 = vadd.f32 0.0, %v3821
    %3823 = vmatmul.f32.gmra.mxu0 %v3796
    %v3824 = vpop.f32.mrf.mxu0
    %v3825 = vadd.f32 0.0, %v3824
    %3826 = vmatmul.f32.gmra.mxu0 %v3799
    %v3827 = vpop.f32.mrf.mxu0
    %v3828 = vadd.f32 0.0, %v3827
    %3829 = vdwg.mxu0
    %v3830 = vadd.f32 %v3705, %v3819
    %v3831 = vadd.f32 %v3706, %v3822
    %v3832 = vadd.f32 %v3707, %v3825
    %v3833 = vadd.f32 %v3708, %v3828
    %v3834 = vld [vmem:[%s10] sm:$0xff]
    %v3835 = vld [vmem:[%s10 + $0x8] sm:$0xff]
    %v3836 = vld [vmem:[%s10 + $0x10] sm:$0xff]
    %v3837 = vld [vmem:[%s10 + $0x18] sm:$0xff]
    %3839 = vset.pattern.permute.xlu0 0
    %3840 = vperm.xlu0 %3839, %v3834
    %v3841 = vpop.permute.xlu0 %3840
    %3844 = vset.pattern.permute.xlu0 0
    %3845 = vperm.xlu0 %3844, %v3835
    %v3846 = vpop.permute.xlu0 %3845
    %3849 = vset.pattern.permute.xlu0 0
    %3850 = vperm.xlu0 %3849, %v3836
    %v3851 = vpop.permute.xlu0 %3850
    %3854 = vset.pattern.permute.xlu0 0
    %3855 = vperm.xlu0 %3854, %v3837
    %v3856 = vpop.permute.xlu0 %3855
    %v3858 = vadd.f32 %v3830, %v3841
    %v3859 = vadd.f32 %v3831, %v3846
    %v3860 = vadd.f32 %v3832, %v3851
    %v3861 = vadd.f32 %v3833, %v3856
    %v3862 = vmax.f32 %v3858, 0.0
    %v3863 = vmax.f32 %v3859, 0.0
    %v3864 = vmax.f32 %v3860, 0.0
    %v3865 = vmax.f32 %v3861, 0.0
    %v3866 = vld [vmem:[%s11] sm:$0x1]
    %3867 = vset.pattern.permute.xlu0 2
    %3868 = vperm.xlu0 %3867, %v45
    %v3869 = vpop.permute.xlu0 %3868
    %v3871 = vperm.slane %v3869, 0
    %v3873 = vsel %vm302, %v3866, 0
    %3875 = vmatpush.msra.mxu0 0.0
    %3876 = vmatpush.msra.mxu0 0.0
    %3877 = vmatpush.msra.mxu0 0.0
    %3878 = vmatpush.msra.mxu0 0.0
    %3879 = vmatpush.msra.mxu0 0.0
    %3880 = vmatpush.msra.mxu0 0.0
    %3881 = vmatpush.msra.mxu0 0.0
    %3882 = vmatpush.msra.mxu0 0.0
    %3883 = vmatpush.msra.mxu0 0.0
    %3884 = vmatpush.msra.mxu0 0.0
    %3885 = vmatpush.msra.mxu0 0.0
    %3886 = vmatpush.msra.mxu0 0.0
    %3887 = vmatpush.msra.mxu0 %v3865
    %3888 = vmatpush.msra.mxu0 %v3864
    %3889 = vmatpush.msra.mxu0 %v3863
    %3890 = vmatpush.msra.mxu0 %v3862
    %3891 = vmatmul.f32.gmra.mxu0 %v3873
    %v3892 = vpop.f32.mrf.mxu0
    %v3893 = vadd.f32 %v3871, %v3892
    %3894 = vdwg.mxu0
    %vm3895 = vcmask 57344
    %3896 = vst.msk [vmem:[#allocation2] sm:$0x1] %vm3895, %v3893
    // Predicated region
    $region54: #{three_deep_net_forward.1} parent=1 // pred_check
      _
    $region55: #{three_deep_net_forward.1} parent=1 // pred_check_branch
      %3898 = sbr.rel (0) target = $region57
    $region56: #{three_deep_net_forward.1} parent=1 // pred_region
      %3900 = vsyncadd [#allocation3], 0
      %s3902 = sshll.u32 [#allocation2], 4
      %s3903 = int_to_ptr.vmem [resolvable:$true] %s3902
      %s3904 = sshll.u32 %s13, 4
      %s3905 = int_to_ptr.hbm [resolvable:$true] %s3904
      %3907 = dma.vmem_to_hbm [thread:$0]  %s3903, 16, %s3905, [#allocation3]
    $region57: #{three_deep_net_forward.1} parent=1 // pred_fallthru
      _
    // Predicated region
    $region58: #{three_deep_net_forward.1} parent=1 // pred_check
      _
    $region59: #{three_deep_net_forward.1} parent=1 // pred_check_branch
      %3909 = sbr.rel (0) target = $region61
    $region60: #{three_deep_net_forward.1} parent=1 // pred_region
      %3911 = dma.done [#allocation3], 16
    $region61: #{three_deep_net_forward.1} parent=1 // pred_fallthru
      _
    %3912 = vsyncpa [#allocation3], 1

</llo_original>
